<compile_context>
chip_gen: v6e
topology: v6e:2x2x1
jax: 0.10.0
libtpu: 0.0.40
codegen_flags: <defaults>
</compile_context>

<pallas_src>
import functools

import jax
import jax.numpy as jnp
import numpy as np
from jax import lax
from jax.experimental import pallas as pl
from jax.experimental.pallas import tpu as pltpu

_VMEM_LIMIT = 64 * 1024 * 1024  # <= physical on v5e/v6e/v7x; raises 16/32 MiB scoped defaults


def _pick_tile_m(N, HC, heads):
    """Dst-row tile size: largest 128-multiple whose per-step VMEM (2 pipeline
    buffers of the bf16 (TILE_M, N) mask block + f32 logits/p/attn temps + the
    resident bf16 xw_src slab) stays under ~36 MiB (v7x-safe)."""
    if N % 128 != 0 or N <= 512:
        return N                                    # single tile (toy / test sizes)
    resident = 2 * N * HC + 4 * heads * N           # xw_src (bf16) + a_srcT (f32)
    budget = 36 * 1024 * 1024 - resident
    per_row = 18 * N + 8 * HC                       # mask x2 bufs + f32 temps + out
    for tm in (2048, 1024, 512, 256, 128):
        if N % tm == 0 and tm * per_row <= budget:
            return tm
    return 128
    # TODO(synk): for N beyond ~16k also tile the src axis with an online-softmax
    # accumulator; today the full src axis is kept per dst-row tile.


# ---------------- stage 1: fused projection + attention coefficients ----------------

def _gat_proj_kernel(x_ref, wcat_ref, brow_ref, asrc_ref, adst_ref,
                     xsrc_ref, adst_o_ref, asrcT_o_ref, *, heads, C):
    """xw = x @ [w_src|w_dst] (+ folded node_lin bias); per-head attention
    coefficients via block-diagonal f32 matmuls; xw_src stored as bf16."""
    HC = heads * C
    xw = jnp.dot(x_ref[...], wcat_ref[...],
                 preferred_element_type=jnp.float32) + brow_ref[...]   # (TM, 2HC) f32
    xw_src = xw[:, :HC]
    xw_dst = xw[:, HC:]
    nt = (((1,), (1,)), ((), ()))
    # (TM, heads): sum_c xw_dst[:, h*C+c] * att_dst[h, c]
    adst_o_ref[...] = lax.dot_general(xw_dst, adst_ref[...], nt,
                                      preferred_element_type=jnp.float32)
    # (heads, TM): head-major with TM in the lane dim -> no per-head relayout later
    asrcT_o_ref[...] = lax.dot_general(asrc_ref[...], xw_src, nt,
                                       preferred_element_type=jnp.float32)
    xsrc_ref[...] = xw_src.astype(jnp.bfloat16)      # cast hoisted out of head loop


# ---------------- stage 2: masked softmax + per-head aggregation ----------------

def _gat_attn_kernel(adst_ref, asrcT_ref, xsrc_ref, mask_ref, bias_ref, o_ref,
                     *, heads, C, relu):
    """One dst-row tile: for each head, logits -> LeakyReLU -> masked softmax
    (EUP approx reciprocal) -> attn @ xw_src; heads concatenated + bias (+ReLU),
    written as one lane-dense (TILE_M, heads*C) store."""
    a_dst = adst_ref[...]                            # (TM, heads) f32
    a_srcT = asrcT_ref[...]                          # (heads, N)  f32 (resident)
    xs = xsrc_ref[...]                               # (N, HC)     bf16 (resident)
    mask = mask_ref[...].astype(jnp.float32)         # (TM, N) {0,1}, upcast once
    edge = mask > 0.0                                # hoisted out of head loop
    outs = []
    for h in range(heads):                           # statically unrolled
        logits = a_dst[:, h:h + 1] + a_srcT[h:h + 1, :]          # (TM, N)
        logits = jnp.maximum(logits, 0.2 * logits)               # LeakyReLU(0.2)
        logits = jnp.where(edge, logits, -1e30)                  # mask non-edges
        m = jnp.max(logits, axis=-1, keepdims=True)
        p = jnp.exp(logits - m) * mask     # exact zeros keep isolated dst rows at 0
        denom = jnp.sum(p, axis=-1, keepdims=True)
        attn = p * pl.reciprocal(jnp.maximum(denom, 1e-30), approx=True)  # EUP
        outs.append(jnp.dot(attn.astype(jnp.bfloat16), xs[:, h * C:(h + 1) * C],
                            preferred_element_type=jnp.float32))          # (TM, C)
    out = outs[0] if heads == 1 else jnp.concatenate(outs, axis=-1)        # (TM, HC)
    out = out + bias_ref[...]
    if relu:
        out = jnp.maximum(out, 0.0)
    o_ref[...] = out.astype(o_ref.dtype)             # single lane-dense store


# ---------------- GATConv layer wrapper ----------------

def gat_conv_pallas(x_in, mask_bf16, p, heads, C, relu, *,
                    pre_lin=None, out_dtype=jnp.float32):
    """One PyG-style GATConv as two row-parallel pallas_calls."""
    N = x_in.shape[0]
    HC = heads * C
    hp = jax.lax.Precision.HIGHEST

    # [w_src | w_dst]; node_lin folded in algebraically (compose in f32, then bf16).
    w_cat = jnp.concatenate([p['w_src'], p['w_dst']], axis=1).astype(jnp.float32)
    if pre_lin is not None:
        w_nl, b_nl = pre_lin
        b_row = jnp.dot(b_nl.reshape(1, -1).astype(jnp.float32), w_cat, precision=hp)
        w_cat = jnp.dot(w_nl.astype(jnp.float32), w_cat, precision=hp)
    else:
        b_row = jnp.zeros((1, 2 * HC), jnp.float32)
    w_cat = w_cat.astype(jnp.bfloat16)
    Fin = w_cat.shape[0]

    eye = jnp.eye(heads, dtype=jnp.float32)
    asrc_bd = (eye[:, :, None]
               * p['att_src'].astype(jnp.float32)[:, None, :]).reshape(heads, HC)
    adst_bd = (eye[:, :, None]
               * p['att_dst'].astype(jnp.float32)[:, None, :]).reshape(heads, HC)
    bias = p['bias'].reshape(1, HC).astype(jnp.float32)

    x_bf16 = x_in.astype(jnp.bfloat16)
    tm = _pick_tile_m(N, HC, heads)
    grid = (N // tm,)
    cparams = pltpu.CompilerParams(dimension_semantics=("parallel",),
                                   vmem_limit_bytes=_VMEM_LIMIT)

    # ---- stage 1: projection + attention coefficients ----
    xw_src, a_dst, a_srcT = pl.pallas_call(
        functools.partial(_gat_proj_kernel, heads=heads, C=C),
        out_shape=(jax.ShapeDtypeStruct((N, HC), jnp.bfloat16),
                   jax.ShapeDtypeStruct((N, heads), jnp.float32),
                   jax.ShapeDtypeStruct((heads, N), jnp.float32)),
        grid=grid,
        in_specs=[pl.BlockSpec((tm, Fin), lambda i: (i, 0)),
                  pl.BlockSpec((Fin, 2 * HC), lambda i: (0, 0)),
                  pl.BlockSpec((1, 2 * HC), lambda i: (0, 0)),
                  pl.BlockSpec((heads, HC), lambda i: (0, 0)),
                  pl.BlockSpec((heads, HC), lambda i: (0, 0))],
        out_specs=(pl.BlockSpec((tm, HC), lambda i: (i, 0)),
                   pl.BlockSpec((tm, heads), lambda i: (i, 0)),
                   pl.BlockSpec((heads, tm), lambda i: (0, i))),
        compiler_params=cparams,
    )(x_bf16, w_cat, b_row, asrc_bd, adst_bd)

    # ---- stage 2: masked softmax + aggregation, tiled over dst rows ----
    out = pl.pallas_call(
        functools.partial(_gat_attn_kernel, heads=heads, C=C, relu=relu),
        out_shape=jax.ShapeDtypeStruct((N, HC), out_dtype),
        grid=grid,
        in_specs=[pl.BlockSpec((tm, heads), lambda i: (i, 0)),   # a_dst tile
                  pl.BlockSpec((heads, N), lambda i: (0, 0)),    # a_srcT (resident)
                  pl.BlockSpec((N, HC), lambda i: (0, 0)),       # xw_src (resident)
                  pl.BlockSpec((tm, N), lambda i: (i, 0)),       # bf16 mask tile
                  pl.BlockSpec((1, HC), lambda i: (0, 0))],      # bias
        out_specs=pl.BlockSpec((tm, HC), lambda i: (i, 0)),
        compiler_params=cparams,
    )(a_dst, a_srcT, xw_src, mask_bf16, bias)
    return out


# ---------------- Model forward (glue in plain JAX) ----------------

def model_forward(params, x_feat, edge_index, edge_label_index, *, hidden, heads):
    N = x_feat.shape[0]
    # Dense adjacency (dst, src); PyG convention edge_index[0]=src, [1]=dst.
    # bf16 halves the dominant HBM traffic; 0/1 are exact in bf16.
    mask = jnp.zeros((N, N), jnp.float32).at[edge_index[1], edge_index[0]].set(1.0)
    mask = mask.astype(jnp.bfloat16)
    # conv1 (node_lin folded into its weights), ReLU inside, bf16 output.
    x = gat_conv_pallas(x_feat, mask, params['conv1'], heads, hidden, relu=True,
                        pre_lin=(params['node_lin']['w'], params['node_lin']['b']),
                        out_dtype=jnp.bfloat16)
    # conv2 (heads=1), no activation, f32 output.
    # TODO(synk): for tiny graphs conv1+conv2 could be fused into one pallas_call
    # so the mask is DMA'd once and conv1 activations never round-trip HBM.
    x = gat_conv_pallas(x, mask, params['conv2'], 1, hidden, relu=False,
                        out_dtype=jnp.float32)
    # Classifier: (x[src] * x[dst]).sum(-1); kept in plain JAX (32x32 reduce).
    pred = jnp.sum(x[edge_label_index[0]] * x[edge_label_index[1]], axis=-1)
    # torch.cat((empty(0), pred.unsqueeze(0)), dim=1).squeeze(0) == pred
    # TODO(synk): unused self.node_emb = Linear(num_nodes, hidden) from __init__
    # never appears in the homogeneous forward path, so it is not materialized.
    return pred


# ---------------- deterministic parameter init ----------------

def init_params(key, num_feat, hidden, heads):
    ks = jax.random.split(key, 12)
    rnd = lambda k, shape: 0.1 * jax.random.normal(k, shape, jnp.float32)
    return {
        'node_lin': {'w': rnd(ks[0], (num_feat, hidden)), 'b': rnd(ks[1], (hidden,))},
        'conv1': {
            'w_src': rnd(ks[2], (hidden, heads * hidden)),
            'w_dst': rnd(ks[3], (hidden, heads * hidden)),
            'att_src': rnd(ks[4], (heads, hidden)),
            'att_dst': rnd(ks[5], (heads, hidden)),
            'bias': rnd(ks[6], (heads * hidden,)),
        },
        'conv2': {
            'w_src': rnd(ks[7], (heads * hidden, hidden)),
            'w_dst': rnd(ks[8], (heads * hidden, hidden)),
            'att_src': rnd(ks[9], (1, hidden)),
            'att_dst': rnd(ks[10], (1, hidden)),
            'bias': rnd(ks[11], (hidden,)),
        },
    }


# ---------------- pure-JAX reference ----------------

def ref_forward(params, x_feat, edge_index, edge_label_index, hidden, heads):
    hp = jax.lax.Precision.HIGHEST
    N = x_feat.shape[0]
    mask = jnp.zeros((N, N), jnp.float32).at[edge_index[1], edge_index[0]].set(1.0)
    x = jnp.dot(x_feat, params['node_lin']['w'], precision=hp) + params['node_lin']['b']

    def conv(x, p, h_, relu):
        xs = jnp.dot(x, p['w_src'], precision=hp).reshape(N, h_, hidden)
        xd = jnp.dot(x, p['w_dst'], precision=hp).reshape(N, h_, hidden)
        a_s = jnp.sum(xs * p['att_src'][None], axis=-1)
        a_d = jnp.sum(xd * p['att_dst'][None], axis=-1)
        outs = []
        for h in range(h_):
            lg = a_d[:, h][:, None] + a_s[:, h][None, :]
            lg = jnp.where(lg > 0, lg, 0.2 * lg)
            lg = jnp.where(mask > 0, lg, -1e30)
            m = jnp.max(lg, axis=-1, keepdims=True)
            pe = jnp.exp(lg - m) * mask
            den = jnp.sum(pe, axis=-1, keepdims=True)
            attn = pe / jnp.maximum(den, 1e-30)
            outs.append(jnp.dot(attn, xs[:, h, :], precision=hp))
        out = jnp.stack(outs, axis=1).reshape(N, h_ * hidden) + p['bias'][None]
        return jnp.maximum(out, 0.0) if relu else out

    x = conv(x, params['conv1'], heads, True)
    x = conv(x, params['conv2'], 1, False)
    return jnp.sum(x[edge_label_index[0]] * x[edge_label_index[1]], axis=-1)


if __name__ == "__main__":
    hidden, heads = 32, 8
    N, F = 64, 16
    E_label = 32

    key = jax.random.PRNGKey(0)
    kx, kp, kl = jax.random.split(key, 3)
    x_feat = jax.random.normal(kx, (N, F), jnp.float32)

    # simple bidirectional ring graph (no duplicate edges)
    src = jnp.arange(N, dtype=jnp.int32)
    dst = (src + 1) % N
    edge_index = jnp.concatenate(
        [jnp.stack([src, dst]), jnp.stack([dst, src])], axis=1)        # (2, 2N)
    edge_label_index = jax.random.randint(kl, (2, E_label), 0, N, jnp.int32)

    params = init_params(kp, F, hidden, heads)

    fwd = jax.jit(functools.partial(model_forward, hidden=hidden, heads=heads))
    pred = jax.block_until_ready(fwd(params, x_feat, edge_index, edge_label_index))
    ref = ref_forward(params, x_feat, edge_index, edge_label_index, hidden, heads)

    assert pred.shape == (E_label,)
    np.testing.assert_allclose(np.asarray(pred), np.asarray(ref), rtol=2e-2, atol=2e-2)
    print("KERNEL_OK")
</pallas_src>

<mosaic_0001>
module attributes {stable_mosaic.version = 11 : i64} {
  func.func @_gat_proj_kernel(%arg0: i32, %arg1: memref<64x16xbf16, #tpu.memory_space<vmem>>, %arg2: memref<16x512xbf16, #tpu.memory_space<vmem>>, %arg3: memref<1x512xf32, #tpu.memory_space<vmem>>, %arg4: memref<8x256xf32, #tpu.memory_space<vmem>>, %arg5: memref<8x256xf32, #tpu.memory_space<vmem>>, %arg6: memref<64x256xbf16, #tpu.memory_space<vmem>>, %arg7: memref<64x8xf32, #tpu.memory_space<vmem>>, %arg8: memref<8x64xf32, #tpu.memory_space<vmem>>) attributes {dimension_semantics = [#tpu.dimension_semantics<parallel>], iteration_bounds = array<i64: 1>, scalar_prefetch = 0 : i64, scratch_operands = 0 : i64, tpu.core_type = #tpu.core_type<tc>, window_params = [{transform_indices = @transform_0, window_bounds = array<i64: 64, 16>}, {pipeline_mode = #tpu.pipeline_mode<synchronous>, transform_indices = @transform_1, window_bounds = array<i64: 16, 512>}, {pipeline_mode = #tpu.pipeline_mode<synchronous>, transform_indices = @transform_2, window_bounds = array<i64: 1, 512>}, {pipeline_mode = #tpu.pipeline_mode<synchronous>, transform_indices = @transform_3, window_bounds = array<i64: 8, 256>}, {pipeline_mode = #tpu.pipeline_mode<synchronous>, transform_indices = @transform_4, window_bounds = array<i64: 8, 256>}, {transform_indices = @transform_5, window_bounds = array<i64: 64, 256>}, {transform_indices = @transform_6, window_bounds = array<i64: 64, 8>}, {transform_indices = @transform_7, window_bounds = array<i64: 8, 64>}]} {
    %c0 = arith.constant 0 : index
    %c0_0 = arith.constant 0 : index
    %0 = vector.load %arg1[%c0, %c0_0] : memref<64x16xbf16, #tpu.memory_space<vmem>>, vector<64x16xbf16>
    %c0_1 = arith.constant 0 : index
    %c0_2 = arith.constant 0 : index
    %1 = vector.load %arg2[%c0_1, %c0_2] : memref<16x512xbf16, #tpu.memory_space<vmem>>, vector<16x512xbf16>
    %cst = arith.constant dense<0.000000e+00> : vector<64x512xf32>
    %2 = tpu.matmul %0, %1, %cst {dimension_numbers = #tpu.dot_dimension_numbers<[1], [0], [0], [1], [0, 0, 1, 1], [], []>} : vector<64x16xbf16>, vector<16x512xbf16>, vector<64x512xf32> -> vector<64x512xf32>
    %c0_3 = arith.constant 0 : index
    %c0_4 = arith.constant 0 : index
    %3 = vector.load %arg3[%c0_3, %c0_4] : memref<1x512xf32, #tpu.memory_space<vmem>>, vector<1x512xf32>
    %4 = vector.broadcast %3 : vector<1x512xf32> to vector<64x512xf32>
    %5 = arith.addf %2, %4 : vector<64x512xf32>
    %6 = vector.extract_strided_slice %5 {offsets = [0, 0], sizes = [64, 256], strides = [1, 1]} : vector<64x512xf32> to vector<64x256xf32>
    %7 = vector.extract_strided_slice %5 {offsets = [0, 256], sizes = [64, 256], strides = [1, 1]} : vector<64x512xf32> to vector<64x256xf32>
    %c0_5 = arith.constant 0 : index
    %c0_6 = arith.constant 0 : index
    %8 = vector.load %arg5[%c0_5, %c0_6] : memref<8x256xf32, #tpu.memory_space<vmem>>, vector<8x256xf32>
    %cst_7 = arith.constant dense<0.000000e+00> : vector<64x8xf32>
    %9 = tpu.matmul %7, %8, %cst_7 {dimension_numbers = #tpu.dot_dimension_numbers<[1], [1], [0], [0], [0, 0, 1, 0], [], []>} : vector<64x256xf32>, vector<8x256xf32>, vector<64x8xf32> -> vector<64x8xf32>
    %c0_8 = arith.constant 0 : index
    %c0_9 = arith.constant 0 : index
    %10 = vector.load %arg7[%c0_8, %c0_9] : memref<64x8xf32, #tpu.memory_space<vmem>>, vector<64x8xf32>
    tpu.vector_store %arg7[%c0_8, %c0_9], %9 {strides = array<i32>} : memref<64x8xf32, #tpu.memory_space<vmem>>, vector<64x8xf32>,
    %c0_10 = arith.constant 0 : index
    %c0_11 = arith.constant 0 : index
    %11 = vector.load %arg4[%c0_10, %c0_11] : memref<8x256xf32, #tpu.memory_space<vmem>>, vector<8x256xf32>
    %cst_12 = arith.constant dense<0.000000e+00> : vector<8x64xf32>
    %12 = tpu.matmul %11, %6, %cst_12 {dimension_numbers = #tpu.dot_dimension_numbers<[1], [1], [0], [0], [0, 0, 1, 0], [], []>} : vector<8x256xf32>, vector<64x256xf32>, vector<8x64xf32> -> vector<8x64xf32>
    %c0_13 = arith.constant 0 : index
    %c0_14 = arith.constant 0 : index
    %13 = vector.load %arg8[%c0_13, %c0_14] : memref<8x64xf32, #tpu.memory_space<vmem>>, vector<8x64xf32>
    tpu.vector_store %arg8[%c0_13, %c0_14], %12 {strides = array<i32>} : memref<8x64xf32, #tpu.memory_space<vmem>>, vector<8x64xf32>,
    %14 = arith.truncf %6 : vector<64x256xf32> to vector<64x256xbf16>
    %c0_15 = arith.constant 0 : index
    %c0_16 = arith.constant 0 : index
    %15 = vector.load %arg6[%c0_15, %c0_16] : memref<64x256xbf16, #tpu.memory_space<vmem>>, vector<64x256xbf16>
    tpu.vector_store %arg6[%c0_15, %c0_16], %14 {strides = array<i32>} : memref<64x256xbf16, #tpu.memory_space<vmem>>, vector<64x256xbf16>,
    return
  }
  func.func @transform_0(%arg0: i32) -> (i32, i32) {
    %c0_i32 = arith.constant 0 : i32
    %c0_i32_0 = arith.constant 0 : i32
    return %arg0, %c0_i32 : i32, i32
  }
  func.func @transform_1(%arg0: i32) -> (i32, i32) {
    %c0_i32 = arith.constant 0 : i32
    %c0_i32_0 = arith.constant 0 : i32
    %c0_i32_1 = arith.constant 0 : i32
    return %c0_i32, %c0_i32_0 : i32, i32
  }
  func.func @transform_2(%arg0: i32) -> (i32, i32) {
    %c0_i32 = arith.constant 0 : i32
    %c0_i32_0 = arith.constant 0 : i32
    %c0_i32_1 = arith.constant 0 : i32
    return %c0_i32, %c0_i32_0 : i32, i32
  }
  func.func @transform_3(%arg0: i32) -> (i32, i32) {
    %c0_i32 = arith.constant 0 : i32
    %c0_i32_0 = arith.constant 0 : i32
    %c0_i32_1 = arith.constant 0 : i32
    return %c0_i32, %c0_i32_0 : i32, i32
  }
  func.func @transform_4(%arg0: i32) -> (i32, i32) {
    %c0_i32 = arith.constant 0 : i32
    %c0_i32_0 = arith.constant 0 : i32
    %c0_i32_1 = arith.constant 0 : i32
    return %c0_i32, %c0_i32_0 : i32, i32
  }
  func.func @transform_5(%arg0: i32) -> (i32, i32) {
    %c0_i32 = arith.constant 0 : i32
    %c0_i32_0 = arith.constant 0 : i32
    return %arg0, %c0_i32 : i32, i32
  }
  func.func @transform_6(%arg0: i32) -> (i32, i32) {
    %c0_i32 = arith.constant 0 : i32
    %c0_i32_0 = arith.constant 0 : i32
    return %arg0, %c0_i32 : i32, i32
  }
  func.func @transform_7(%arg0: i32) -> (i32, i32) {
    %c0_i32 = arith.constant 0 : i32
    %c0_i32_0 = arith.constant 0 : i32
    return %c0_i32, %arg0 : i32, i32
  }
}

module attributes {stable_mosaic.version = 11 : i64} {
  func.func @_gat_attn_kernel(%arg0: i32, %arg1: memref<64x8xf32, #tpu.memory_space<vmem>>, %arg2: memref<8x64xf32, #tpu.memory_space<vmem>>, %arg3: memref<64x256xbf16, #tpu.memory_space<vmem>>, %arg4: memref<64x64xbf16, #tpu.memory_space<vmem>>, %arg5: memref<1x256xf32, #tpu.memory_space<vmem>>, %arg6: memref<64x256xbf16, #tpu.memory_space<vmem>>) attributes {dimension_semantics = [#tpu.dimension_semantics<parallel>], iteration_bounds = array<i64: 1>, scalar_prefetch = 0 : i64, scratch_operands = 0 : i64, tpu.core_type = #tpu.core_type<tc>, window_params = [{transform_indices = @transform_0, window_bounds = array<i64: 64, 8>}, {pipeline_mode = #tpu.pipeline_mode<synchronous>, transform_indices = @transform_1, window_bounds = array<i64: 8, 64>}, {pipeline_mode = #tpu.pipeline_mode<synchronous>, transform_indices = @transform_2, window_bounds = array<i64: 64, 256>}, {transform_indices = @transform_3, window_bounds = array<i64: 64, 64>}, {pipeline_mode = #tpu.pipeline_mode<synchronous>, transform_indices = @transform_4, window_bounds = array<i64: 1, 256>}, {transform_indices = @transform_5, window_bounds = array<i64: 64, 256>}]} {
    %c0 = arith.constant 0 : index
    %c0_0 = arith.constant 0 : index
    %0 = vector.load %arg1[%c0, %c0_0] : memref<64x8xf32, #tpu.memory_space<vmem>>, vector<64x8xf32>
    %c0_1 = arith.constant 0 : index
    %c0_2 = arith.constant 0 : index
    %1 = vector.load %arg2[%c0_1, %c0_2] : memref<8x64xf32, #tpu.memory_space<vmem>>, vector<8x64xf32>
    %c0_3 = arith.constant 0 : index
    %c0_4 = arith.constant 0 : index
    %2 = vector.load %arg3[%c0_3, %c0_4] : memref<64x256xbf16, #tpu.memory_space<vmem>>, vector<64x256xbf16>
    %c0_5 = arith.constant 0 : index
    %c0_6 = arith.constant 0 : index
    %3 = vector.load %arg4[%c0_5, %c0_6] : memref<64x64xbf16, #tpu.memory_space<vmem>>, vector<64x64xbf16>
    %4 = arith.extf %3 : vector<64x64xbf16> to vector<64x64xf32>
    %cst = arith.constant 0.000000e+00 : f32
    %5 = vector.broadcast %cst : f32 to vector<64x64xf32>
    %6 = arith.cmpf ogt, %4, %5 : vector<64x64xf32>
    %7 = vector.extract_strided_slice %0 {offsets = [0, 0], sizes = [64, 1], strides = [1, 1]} : vector<64x8xf32> to vector<64x1xf32>
    %8 = vector.extract_strided_slice %1 {offsets = [0, 0], sizes = [1, 64], strides = [1, 1]} : vector<8x64xf32> to vector<1x64xf32>
    %9 = vector.broadcast %7 : vector<64x1xf32> to vector<64x64xf32>
    %10 = vector.broadcast %8 : vector<1x64xf32> to vector<64x64xf32>
    %11 = arith.addf %9, %10 : vector<64x64xf32>
    %cst_7 = arith.constant 2.000000e-01 : f32
    %12 = vector.broadcast %cst_7 : f32 to vector<64x64xf32>
    %13 = arith.mulf %12, %11 : vector<64x64xf32>
    %14 = arith.maximumf %11, %13 : vector<64x64xf32>
    %cst_8 = arith.constant -1.000000e+30 : f32
    %15 = vector.broadcast %cst_8 : f32 to vector<64x64xf32>
    %16 = arith.select %6, %14, %15 : vector<64x64xi1>, vector<64x64xf32>
    %cst_9 = arith.constant dense<0xFF800000> : vector<64xf32>
    %17 = vector.multi_reduction <maximumf>, %16, %cst_9 [1] : vector<64x64xf32> to vector<64xf32>
    %18 = vector.shape_cast %17 : vector<64xf32> to vector<64x1xf32>
    %19 = vector.broadcast %18 : vector<64x1xf32> to vector<64x64xf32>
    %20 = arith.subf %16, %19 : vector<64x64xf32>
    %21 = math.exp %20 : vector<64x64xf32>
    %22 = arith.mulf %21, %4 : vector<64x64xf32>
    %cst_10 = arith.constant dense<0.000000e+00> : vector<64xf32>
    %23 = vector.multi_reduction <add>, %22, %cst_10 [1] : vector<64x64xf32> to vector<64xf32>
    %24 = vector.shape_cast %23 : vector<64xf32> to vector<64x1xf32>
    %cst_11 = arith.constant 1.000000e-30 : f32
    %25 = vector.broadcast %cst_11 : f32 to vector<64x1xf32>
    %26 = arith.maximumf %24, %25 : vector<64x1xf32>
    %27 = tpu.reciprocal %26 {approx = true} : vector<64x1xf32> -> vector<64x1xf32>
    %28 = vector.broadcast %27 : vector<64x1xf32> to vector<64x64xf32>
    %29 = arith.mulf %22, %28 : vector<64x64xf32>
    %30 = arith.truncf %29 : vector<64x64xf32> to vector<64x64xbf16>
    %31 = vector.extract_strided_slice %2 {offsets = [0, 0], sizes = [64, 32], strides = [1, 1]} : vector<64x256xbf16> to vector<64x32xbf16>
    %cst_12 = arith.constant dense<0.000000e+00> : vector<64x32xf32>
    %32 = tpu.matmul %30, %31, %cst_12 {dimension_numbers = #tpu.dot_dimension_numbers<[1], [0], [0], [1], [0, 0, 1, 1], [], []>} : vector<64x64xbf16>, vector<64x32xbf16>, vector<64x32xf32> -> vector<64x32xf32>
    %33 = vector.extract_strided_slice %0 {offsets = [0, 1], sizes = [64, 1], strides = [1, 1]} : vector<64x8xf32> to vector<64x1xf32>
    %34 = vector.extract_strided_slice %1 {offsets = [1, 0], sizes = [1, 64], strides = [1, 1]} : vector<8x64xf32> to vector<1x64xf32>
    %35 = vector.broadcast %33 : vector<64x1xf32> to vector<64x64xf32>
    %36 = vector.broadcast %34 : vector<1x64xf32> to vector<64x64xf32>
    %37 = arith.addf %35, %36 : vector<64x64xf32>
    %cst_13 = arith.constant 2.000000e-01 : f32
    %38 = vector.broadcast %cst_13 : f32 to vector<64x64xf32>
    %39 = arith.mulf %38, %37 : vector<64x64xf32>
    %40 = arith.maximumf %37, %39 : vector<64x64xf32>
    %cst_14 = arith.constant -1.000000e+30 : f32
    %41 = vector.broadcast %cst_14 : f32 to vector<64x64xf32>
    %42 = arith.select %6, %40, %41 : vector<64x64xi1>, vector<64x64xf32>
    %cst_15 = arith.constant dense<0xFF800000> : vector<64xf32>
    %43 = vector.multi_reduction <maximumf>, %42, %cst_15 [1] : vector<64x64xf32> to vector<64xf32>
    %44 = vector.shape_cast %43 : vector<64xf32> to vector<64x1xf32>
    %45 = vector.broadcast %44 : vector<64x1xf32> to vector<64x64xf32>
    %46 = arith.subf %42, %45 : vector<64x64xf32>
    %47 = math.exp %46 : vector<64x64xf32>
    %48 = arith.mulf %47, %4 : vector<64x64xf32>
    %cst_16 = arith.constant dense<0.000000e+00> : vector<64xf32>
    %49 = vector.multi_reduction <add>, %48, %cst_16 [1] : vector<64x64xf32> to vector<64xf32>
    %50 = vector.shape_cast %49 : vector<64xf32> to vector<64x1xf32>
    %cst_17 = arith.constant 1.000000e-30 : f32
    %51 = vector.broadcast %cst_17 : f32 to vector<64x1xf32>
    %52 = arith.maximumf %50, %51 : vector<64x1xf32>
    %53 = tpu.reciprocal %52 {approx = true} : vector<64x1xf32> -> vector<64x1xf32>
    %54 = vector.broadcast %53 : vector<64x1xf32> to vector<64x64xf32>
    %55 = arith.mulf %48, %54 : vector<64x64xf32>
    %56 = arith.truncf %55 : vector<64x64xf32> to vector<64x64xbf16>
    %57 = vector.extract_strided_slice %2 {offsets = [0, 32], sizes = [64, 32], strides = [1, 1]} : vector<64x256xbf16> to vector<64x32xbf16>
    %cst_18 = arith.constant dense<0.000000e+00> : vector<64x32xf32>
    %58 = tpu.matmul %56, %57, %cst_18 {dimension_numbers = #tpu.dot_dimension_numbers<[1], [0], [0], [1], [0, 0, 1, 1], [], []>} : vector<64x64xbf16>, vector<64x32xbf16>, vector<64x32xf32> -> vector<64x32xf32>
    %59 = vector.extract_strided_slice %0 {offsets = [0, 2], sizes = [64, 1], strides = [1, 1]} : vector<64x8xf32> to vector<64x1xf32>
    %60 = vector.extract_strided_slice %1 {offsets = [2, 0], sizes = [1, 64], strides = [1, 1]} : vector<8x64xf32> to vector<1x64xf32>
    %61 = vector.broadcast %59 : vector<64x1xf32> to vector<64x64xf32>
    %62 = vector.broadcast %60 : vector<1x64xf32> to vector<64x64xf32>
    %63 = arith.addf %61, %62 : vector<64x64xf32>
    %cst_19 = arith.constant 2.000000e-01 : f32
    %64 = vector.broadcast %cst_19 : f32 to vector<64x64xf32>
    %65 = arith.mulf %64, %63 : vector<64x64xf32>
    %66 = arith.maximumf %63, %65 : vector<64x64xf32>
    %cst_20 = arith.constant -1.000000e+30 : f32
    %67 = vector.broadcast %cst_20 : f32 to vector<64x64xf32>
    %68 = arith.select %6, %66, %67 : vector<64x64xi1>, vector<64x64xf32>
    %cst_21 = arith.constant dense<0xFF800000> : vector<64xf32>
    %69 = vector.multi_reduction <maximumf>, %68, %cst_21 [1] : vector<64x64xf32> to vector<64xf32>
    %70 = vector.shape_cast %69 : vector<64xf32> to vector<64x1xf32>
    %71 = vector.broadcast %70 : vector<64x1xf32> to vector<64x64xf32>
    %72 = arith.subf %68, %71 : vector<64x64xf32>
    %73 = math.exp %72 : vector<64x64xf32>
    %74 = arith.mulf %73, %4 : vector<64x64xf32>
    %cst_22 = arith.constant dense<0.000000e+00> : vector<64xf32>
    %75 = vector.multi_reduction <add>, %74, %cst_22 [1] : vector<64x64xf32> to vector<64xf32>
    %76 = vector.shape_cast %75 : vector<64xf32> to vector<64x1xf32>
    %cst_23 = arith.constant 1.000000e-30 : f32
    %77 = vector.broadcast %cst_23 : f32 to vector<64x1xf32>
    %78 = arith.maximumf %76, %77 : vector<64x1xf32>
    %79 = tpu.reciprocal %78 {approx = true} : vector<64x1xf32> -> vector<64x1xf32>
    %80 = vector.broadcast %79 : vector<64x1xf32> to vector<64x64xf32>
    %81 = arith.mulf %74, %80 : vector<64x64xf32>
    %82 = arith.truncf %81 : vector<64x64xf32> to vector<64x64xbf16>
    %83 = vector.extract_strided_slice %2 {offsets = [0, 64], sizes = [64, 32], strides = [1, 1]} : vector<64x256xbf16> to vector<64x32xbf16>
    %cst_24 = arith.constant dense<0.000000e+00> : vector<64x32xf32>
    %84 = tpu.matmul %82, %83, %cst_24 {dimension_numbers = #tpu.dot_dimension_numbers<[1], [0], [0], [1], [0, 0, 1, 1], [], []>} : vector<64x64xbf16>, vector<64x32xbf16>, vector<64x32xf32> -> vector<64x32xf32>
    %85 = vector.extract_strided_slice %0 {offsets = [0, 3], sizes = [64, 1], strides = [1, 1]} : vector<64x8xf32> to vector<64x1xf32>
    %86 = vector.extract_strided_slice %1 {offsets = [3, 0], sizes = [1, 64], strides = [1, 1]} : vector<8x64xf32> to vector<1x64xf32>
    %87 = vector.broadcast %85 : vector<64x1xf32> to vector<64x64xf32>
    %88 = vector.broadcast %86 : vector<1x64xf32> to vector<64x64xf32>
    %89 = arith.addf %87, %88 : vector<64x64xf32>
    %cst_25 = arith.constant 2.000000e-01 : f32
    %90 = vector.broadcast %cst_25 : f32 to vector<64x64xf32>
    %91 = arith.mulf %90, %89 : vector<64x64xf32>
    %92 = arith.maximumf %89, %91 : vector<64x64xf32>
    %cst_26 = arith.constant -1.000000e+30 : f32
    %93 = vector.broadcast %cst_26 : f32 to vector<64x64xf32>
    %94 = arith.select %6, %92, %93 : vector<64x64xi1>, vector<64x64xf32>
    %cst_27 = arith.constant dense<0xFF800000> : vector<64xf32>
    %95 = vector.multi_reduction <maximumf>, %94, %cst_27 [1] : vector<64x64xf32> to vector<64xf32>
    %96 = vector.shape_cast %95 : vector<64xf32> to vector<64x1xf32>
    %97 = vector.broadcast %96 : vector<64x1xf32> to vector<64x64xf32>
    %98 = arith.subf %94, %97 : vector<64x64xf32>
    %99 = math.exp %98 : vector<64x64xf32>
    %100 = arith.mulf %99, %4 : vector<64x64xf32>
    %cst_28 = arith.constant dense<0.000000e+00> : vector<64xf32>
    %101 = vector.multi_reduction <add>, %100, %cst_28 [1] : vector<64x64xf32> to vector<64xf32>
    %102 = vector.shape_cast %101 : vector<64xf32> to vector<64x1xf32>
    %cst_29 = arith.constant 1.000000e-30 : f32
    %103 = vector.broadcast %cst_29 : f32 to vector<64x1xf32>
    %104 = arith.maximumf %102, %103 : vector<64x1xf32>
    %105 = tpu.reciprocal %104 {approx = true} : vector<64x1xf32> -> vector<64x1xf32>
    %106 = vector.broadcast %105 : vector<64x1xf32> to vector<64x64xf32>
    %107 = arith.mulf %100, %106 : vector<64x64xf32>
    %108 = arith.truncf %107 : vector<64x64xf32> to vector<64x64xbf16>
    %109 = vector.extract_strided_slice %2 {offsets = [0, 96], sizes = [64, 32], strides = [1, 1]} : vector<64x256xbf16> to vector<64x32xbf16>
    %cst_30 = arith.constant dense<0.000000e+00> : vector<64x32xf32>
    %110 = tpu.matmul %108, %109, %cst_30 {dimension_numbers = #tpu.dot_dimension_numbers<[1], [0], [0], [1], [0, 0, 1, 1], [], []>} : vector<64x64xbf16>, vector<64x32xbf16>, vector<64x32xf32> -> vector<64x32xf32>
    %111 = vector.extract_strided_slice %0 {offsets = [0, 4], sizes = [64, 1], strides = [1, 1]} : vector<64x8xf32> to vector<64x1xf32>
    %112 = vector.extract_strided_slice %1 {offsets = [4, 0], sizes = [1, 64], strides = [1, 1]} : vector<8x64xf32> to vector<1x64xf32>
    %113 = vector.broadcast %111 : vector<64x1xf32> to vector<64x64xf32>
    %114 = vector.broadcast %112 : vector<1x64xf32> to vector<64x64xf32>
    %115 = arith.addf %113, %114 : vector<64x64xf32>
    %cst_31 = arith.constant 2.000000e-01 : f32
    %116 = vector.broadcast %cst_31 : f32 to vector<64x64xf32>
    %117 = arith.mulf %116, %115 : vector<64x64xf32>
    %118 = arith.maximumf %115, %117 : vector<64x64xf32>
    %cst_32 = arith.constant -1.000000e+30 : f32
    %119 = vector.broadcast %cst_32 : f32 to vector<64x64xf32>
    %120 = arith.select %6, %118, %119 : vector<64x64xi1>, vector<64x64xf32>
    %cst_33 = arith.constant dense<0xFF800000> : vector<64xf32>
    %121 = vector.multi_reduction <maximumf>, %120, %cst_33 [1] : vector<64x64xf32> to vector<64xf32>
    %122 = vector.shape_cast %121 : vector<64xf32> to vector<64x1xf32>
    %123 = vector.broadcast %122 : vector<64x1xf32> to vector<64x64xf32>
    %124 = arith.subf %120, %123 : vector<64x64xf32>
    %125 = math.exp %124 : vector<64x64xf32>
    %126 = arith.mulf %125, %4 : vector<64x64xf32>
    %cst_34 = arith.constant dense<0.000000e+00> : vector<64xf32>
    %127 = vector.multi_reduction <add>, %126, %cst_34 [1] : vector<64x64xf32> to vector<64xf32>
    %128 = vector.shape_cast %127 : vector<64xf32> to vector<64x1xf32>
    %cst_35 = arith.constant 1.000000e-30 : f32
    %129 = vector.broadcast %cst_35 : f32 to vector<64x1xf32>
    %130 = arith.maximumf %128, %129 : vector<64x1xf32>
    %131 = tpu.reciprocal %130 {approx = true} : vector<64x1xf32> -> vector<64x1xf32>
    %132 = vector.broadcast %131 : vector<64x1xf32> to vector<64x64xf32>
    %133 = arith.mulf %126, %132 : vector<64x64xf32>
    %134 = arith.truncf %133 : vector<64x64xf32> to vector<64x64xbf16>
    %135 = vector.extract_strided_slice %2 {offsets = [0, 128], sizes = [64, 32], strides = [1, 1]} : vector<64x256xbf16> to vector<64x32xbf16>
    %cst_36 = arith.constant dense<0.000000e+00> : vector<64x32xf32>
    %136 = tpu.matmul %134, %135, %cst_36 {dimension_numbers = #tpu.dot_dimension_numbers<[1], [0], [0], [1], [0, 0, 1, 1], [], []>} : vector<64x64xbf16>, vector<64x32xbf16>, vector<64x32xf32> -> vector<64x32xf32>
    %137 = vector.extract_strided_slice %0 {offsets = [0, 5], sizes = [64, 1], strides = [1, 1]} : vector<64x8xf32> to vector<64x1xf32>
    %138 = vector.extract_strided_slice %1 {offsets = [5, 0], sizes = [1, 64], strides = [1, 1]} : vector<8x64xf32> to vector<1x64xf32>
    %139 = vector.broadcast %137 : vector<64x1xf32> to vector<64x64xf32>
    %140 = vector.broadcast %138 : vector<1x64xf32> to vector<64x64xf32>
    %141 = arith.addf %139, %140 : vector<64x64xf32>
    %cst_37 = arith.constant 2.000000e-01 : f32
    %142 = vector.broadcast %cst_37 : f32 to vector<64x64xf32>
    %143 = arith.mulf %142, %141 : vector<64x64xf32>
    %144 = arith.maximumf %141, %143 : vector<64x64xf32>
    %cst_38 = arith.constant -1.000000e+30 : f32
    %145 = vector.broadcast %cst_38 : f32 to vector<64x64xf32>
    %146 = arith.select %6, %144, %145 : vector<64x64xi1>, vector<64x64xf32>
    %cst_39 = arith.constant dense<0xFF800000> : vector<64xf32>
    %147 = vector.multi_reduction <maximumf>, %146, %cst_39 [1] : vector<64x64xf32> to vector<64xf32>
    %148 = vector.shape_cast %147 : vector<64xf32> to vector<64x1xf32>
    %149 = vector.broadcast %148 : vector<64x1xf32> to vector<64x64xf32>
    %150 = arith.subf %146, %149 : vector<64x64xf32>
    %151 = math.exp %150 : vector<64x64xf32>
    %152 = arith.mulf %151, %4 : vector<64x64xf32>
    %cst_40 = arith.constant dense<0.000000e+00> : vector<64xf32>
    %153 = vector.multi_reduction <add>, %152, %cst_40 [1] : vector<64x64xf32> to vector<64xf32>
    %154 = vector.shape_cast %153 : vector<64xf32> to vector<64x1xf32>
    %cst_41 = arith.constant 1.000000e-30 : f32
    %155 = vector.broadcast %cst_41 : f32 to vector<64x1xf32>
    %156 = arith.maximumf %154, %155 : vector<64x1xf32>
    %157 = tpu.reciprocal %156 {approx = true} : vector<64x1xf32> -> vector<64x1xf32>
    %158 = vector.broadcast %157 : vector<64x1xf32> to vector<64x64xf32>
    %159 = arith.mulf %152, %158 : vector<64x64xf32>
    %160 = arith.truncf %159 : vector<64x64xf32> to vector<64x64xbf16>
    %161 = vector.extract_strided_slice %2 {offsets = [0, 160], sizes = [64, 32], strides = [1, 1]} : vector<64x256xbf16> to vector<64x32xbf16>
    %cst_42 = arith.constant dense<0.000000e+00> : vector<64x32xf32>
    %162 = tpu.matmul %160, %161, %cst_42 {dimension_numbers = #tpu.dot_dimension_numbers<[1], [0], [0], [1], [0, 0, 1, 1], [], []>} : vector<64x64xbf16>, vector<64x32xbf16>, vector<64x32xf32> -> vector<64x32xf32>
    %163 = vector.extract_strided_slice %0 {offsets = [0, 6], sizes = [64, 1], strides = [1, 1]} : vector<64x8xf32> to vector<64x1xf32>
    %164 = vector.extract_strided_slice %1 {offsets = [6, 0], sizes = [1, 64], strides = [1, 1]} : vector<8x64xf32> to vector<1x64xf32>
    %165 = vector.broadcast %163 : vector<64x1xf32> to vector<64x64xf32>
    %166 = vector.broadcast %164 : vector<1x64xf32> to vector<64x64xf32>
    %167 = arith.addf %165, %166 : vector<64x64xf32>
    %cst_43 = arith.constant 2.000000e-01 : f32
    %168 = vector.broadcast %cst_43 : f32 to vector<64x64xf32>
    %169 = arith.mulf %168, %167 : vector<64x64xf32>
    %170 = arith.maximumf %167, %169 : vector<64x64xf32>
    %cst_44 = arith.constant -1.000000e+30 : f32
    %171 = vector.broadcast %cst_44 : f32 to vector<64x64xf32>
    %172 = arith.select %6, %170, %171 : vector<64x64xi1>, vector<64x64xf32>
    %cst_45 = arith.constant dense<0xFF800000> : vector<64xf32>
    %173 = vector.multi_reduction <maximumf>, %172, %cst_45 [1] : vector<64x64xf32> to vector<64xf32>
    %174 = vector.shape_cast %173 : vector<64xf32> to vector<64x1xf32>
    %175 = vector.broadcast %174 : vector<64x1xf32> to vector<64x64xf32>
    %176 = arith.subf %172, %175 : vector<64x64xf32>
    %177 = math.exp %176 : vector<64x64xf32>
    %178 = arith.mulf %177, %4 : vector<64x64xf32>
    %cst_46 = arith.constant dense<0.000000e+00> : vector<64xf32>
    %179 = vector.multi_reduction <add>, %178, %cst_46 [1] : vector<64x64xf32> to vector<64xf32>
    %180 = vector.shape_cast %179 : vector<64xf32> to vector<64x1xf32>
    %cst_47 = arith.constant 1.000000e-30 : f32
    %181 = vector.broadcast %cst_47 : f32 to vector<64x1xf32>
    %182 = arith.maximumf %180, %181 : vector<64x1xf32>
    %183 = tpu.reciprocal %182 {approx = true} : vector<64x1xf32> -> vector<64x1xf32>
    %184 = vector.broadcast %183 : vector<64x1xf32> to vector<64x64xf32>
    %185 = arith.mulf %178, %184 : vector<64x64xf32>
    %186 = arith.truncf %185 : vector<64x64xf32> to vector<64x64xbf16>
    %187 = vector.extract_strided_slice %2 {offsets = [0, 192], sizes = [64, 32], strides = [1, 1]} : vector<64x256xbf16> to vector<64x32xbf16>
    %cst_48 = arith.constant dense<0.000000e+00> : vector<64x32xf32>
    %188 = tpu.matmul %186, %187, %cst_48 {dimension_numbers = #tpu.dot_dimension_numbers<[1], [0], [0], [1], [0, 0, 1, 1], [], []>} : vector<64x64xbf16>, vector<64x32xbf16>, vector<64x32xf32> -> vector<64x32xf32>
    %189 = vector.extract_strided_slice %0 {offsets = [0, 7], sizes = [64, 1], strides = [1, 1]} : vector<64x8xf32> to vector<64x1xf32>
    %190 = vector.extract_strided_slice %1 {offsets = [7, 0], sizes = [1, 64], strides = [1, 1]} : vector<8x64xf32> to vector<1x64xf32>
    %191 = vector.broadcast %189 : vector<64x1xf32> to vector<64x64xf32>
    %192 = vector.broadcast %190 : vector<1x64xf32> to vector<64x64xf32>
    %193 = arith.addf %191, %192 : vector<64x64xf32>
    %cst_49 = arith.constant 2.000000e-01 : f32
    %194 = vector.broadcast %cst_49 : f32 to vector<64x64xf32>
    %195 = arith.mulf %194, %193 : vector<64x64xf32>
    %196 = arith.maximumf %193, %195 : vector<64x64xf32>
    %cst_50 = arith.constant -1.000000e+30 : f32
    %197 = vector.broadcast %cst_50 : f32 to vector<64x64xf32>
    %198 = arith.select %6, %196, %197 : vector<64x64xi1>, vector<64x64xf32>
    %cst_51 = arith.constant dense<0xFF800000> : vector<64xf32>
    %199 = vector.multi_reduction <maximumf>, %198, %cst_51 [1] : vector<64x64xf32> to vector<64xf32>
    %200 = vector.shape_cast %199 : vector<64xf32> to vector<64x1xf32>
    %201 = vector.broadcast %200 : vector<64x1xf32> to vector<64x64xf32>
    %202 = arith.subf %198, %201 : vector<64x64xf32>
    %203 = math.exp %202 : vector<64x64xf32>
    %204 = arith.mulf %203, %4 : vector<64x64xf32>
    %cst_52 = arith.constant dense<0.000000e+00> : vector<64xf32>
    %205 = vector.multi_reduction <add>, %204, %cst_52 [1] : vector<64x64xf32> to vector<64xf32>
    %206 = vector.shape_cast %205 : vector<64xf32> to vector<64x1xf32>
    %cst_53 = arith.constant 1.000000e-30 : f32
    %207 = vector.broadcast %cst_53 : f32 to vector<64x1xf32>
    %208 = arith.maximumf %206, %207 : vector<64x1xf32>
    %209 = tpu.reciprocal %208 {approx = true} : vector<64x1xf32> -> vector<64x1xf32>
    %210 = vector.broadcast %209 : vector<64x1xf32> to vector<64x64xf32>
    %211 = arith.mulf %204, %210 : vector<64x64xf32>
    %212 = arith.truncf %211 : vector<64x64xf32> to vector<64x64xbf16>
    %213 = vector.extract_strided_slice %2 {offsets = [0, 224], sizes = [64, 32], strides = [1, 1]} : vector<64x256xbf16> to vector<64x32xbf16>
    %cst_54 = arith.constant dense<0.000000e+00> : vector<64x32xf32>
    %214 = tpu.matmul %212, %213, %cst_54 {dimension_numbers = #tpu.dot_dimension_numbers<[1], [0], [0], [1], [0, 0, 1, 1], [], []>} : vector<64x64xbf16>, vector<64x32xbf16>, vector<64x32xf32> -> vector<64x32xf32>
    %215 = tpu.concatenate %32, %58, %84, %110, %136, %162, %188, %214 in 1 : vector<64x32xf32>, vector<64x32xf32>, vector<64x32xf32>, vector<64x32xf32>, vector<64x32xf32>, vector<64x32xf32>, vector<64x32xf32>, vector<64x32xf32> -> vector<64x256xf32>
    %c0_55 = arith.constant 0 : index
    %c0_56 = arith.constant 0 : index
    %216 = vector.load %arg5[%c0_55, %c0_56] : memref<1x256xf32, #tpu.memory_space<vmem>>, vector<1x256xf32>
    %217 = vector.broadcast %216 : vector<1x256xf32> to vector<64x256xf32>
    %218 = arith.addf %215, %217 : vector<64x256xf32>
    %cst_57 = arith.constant 0.000000e+00 : f32
    %219 = vector.broadcast %cst_57 : f32 to vector<64x256xf32>
    %220 = arith.maximumf %218, %219 : vector<64x256xf32>
    %221 = arith.truncf %220 : vector<64x256xf32> to vector<64x256xbf16>
    %c0_58 = arith.constant 0 : index
    %c0_59 = arith.constant 0 : index
    %222 = vector.load %arg6[%c0_58, %c0_59] : memref<64x256xbf16, #tpu.memory_space<vmem>>, vector<64x256xbf16>
    tpu.vector_store %arg6[%c0_58, %c0_59], %221 {strides = array<i32>} : memref<64x256xbf16, #tpu.memory_space<vmem>>, vector<64x256xbf16>,
    return
  }
  func.func @transform_0(%arg0: i32) -> (i32, i32) {
    %c0_i32 = arith.constant 0 : i32
    %c0_i32_0 = arith.constant 0 : i32
    return %arg0, %c0_i32 : i32, i32
  }
  func.func @transform_1(%arg0: i32) -> (i32, i32) {
    %c0_i32 = arith.constant 0 : i32
    %c0_i32_0 = arith.constant 0 : i32
    %c0_i32_1 = arith.constant 0 : i32
    return %c0_i32, %c0_i32_0 : i32, i32
  }
  func.func @transform_2(%arg0: i32) -> (i32, i32) {
    %c0_i32 = arith.constant 0 : i32
    %c0_i32_0 = arith.constant 0 : i32
    %c0_i32_1 = arith.constant 0 : i32
    return %c0_i32, %c0_i32_0 : i32, i32
  }
  func.func @transform_3(%arg0: i32) -> (i32, i32) {
    %c0_i32 = arith.constant 0 : i32
    %c0_i32_0 = arith.constant 0 : i32
    return %arg0, %c0_i32 : i32, i32
  }
  func.func @transform_4(%arg0: i32) -> (i32, i32) {
    %c0_i32 = arith.constant 0 : i32
    %c0_i32_0 = arith.constant 0 : i32
    %c0_i32_1 = arith.constant 0 : i32
    return %c0_i32, %c0_i32_0 : i32, i32
  }
  func.func @transform_5(%arg0: i32) -> (i32, i32) {
    %c0_i32 = arith.constant 0 : i32
    %c0_i32_0 = arith.constant 0 : i32
    return %arg0, %c0_i32 : i32, i32
  }
}

module attributes {stable_mosaic.version = 11 : i64} {
  func.func @_gat_proj_kernel(%arg0: i32, %arg1: memref<64x256xbf16, #tpu.memory_space<vmem>>, %arg2: memref<256x64xbf16, #tpu.memory_space<vmem>>, %arg3: memref<1x64xf32, #tpu.memory_space<vmem>>, %arg4: memref<1x32xf32, #tpu.memory_space<vmem>>, %arg5: memref<1x32xf32, #tpu.memory_space<vmem>>, %arg6: memref<64x32xbf16, #tpu.memory_space<vmem>>, %arg7: memref<64x1xf32, #tpu.memory_space<vmem>>, %arg8: memref<1x64xf32, #tpu.memory_space<vmem>>) attributes {dimension_semantics = [#tpu.dimension_semantics<parallel>], iteration_bounds = array<i64: 1>, scalar_prefetch = 0 : i64, scratch_operands = 0 : i64, tpu.core_type = #tpu.core_type<tc>, window_params = [{transform_indices = @transform_0, window_bounds = array<i64: 64, 256>}, {pipeline_mode = #tpu.pipeline_mode<synchronous>, transform_indices = @transform_1, window_bounds = array<i64: 256, 64>}, {pipeline_mode = #tpu.pipeline_mode<synchronous>, transform_indices = @transform_2, window_bounds = array<i64: 1, 64>}, {pipeline_mode = #tpu.pipeline_mode<synchronous>, transform_indices = @transform_3, window_bounds = array<i64: 1, 32>}, {pipeline_mode = #tpu.pipeline_mode<synchronous>, transform_indices = @transform_4, window_bounds = array<i64: 1, 32>}, {transform_indices = @transform_5, window_bounds = array<i64: 64, 32>}, {transform_indices = @transform_6, window_bounds = array<i64: 64, 1>}, {transform_indices = @transform_7, window_bounds = array<i64: 1, 64>}]} {
    %c0 = arith.constant 0 : index
    %c0_0 = arith.constant 0 : index
    %0 = vector.load %arg1[%c0, %c0_0] : memref<64x256xbf16, #tpu.memory_space<vmem>>, vector<64x256xbf16>
    %c0_1 = arith.constant 0 : index
    %c0_2 = arith.constant 0 : index
    %1 = vector.load %arg2[%c0_1, %c0_2] : memref<256x64xbf16, #tpu.memory_space<vmem>>, vector<256x64xbf16>
    %cst = arith.constant dense<0.000000e+00> : vector<64x64xf32>
    %2 = tpu.matmul %0, %1, %cst {dimension_numbers = #tpu.dot_dimension_numbers<[1], [0], [0], [1], [0, 0, 1, 1], [], []>} : vector<64x256xbf16>, vector<256x64xbf16>, vector<64x64xf32> -> vector<64x64xf32>
    %c0_3 = arith.constant 0 : index
    %c0_4 = arith.constant 0 : index
    %3 = vector.load %arg3[%c0_3, %c0_4] : memref<1x64xf32, #tpu.memory_space<vmem>>, vector<1x64xf32>
    %4 = vector.broadcast %3 : vector<1x64xf32> to vector<64x64xf32>
    %5 = arith.addf %2, %4 : vector<64x64xf32>
    %6 = vector.extract_strided_slice %5 {offsets = [0, 0], sizes = [64, 32], strides = [1, 1]} : vector<64x64xf32> to vector<64x32xf32>
    %7 = vector.extract_strided_slice %5 {offsets = [0, 32], sizes = [64, 32], strides = [1, 1]} : vector<64x64xf32> to vector<64x32xf32>
    %c0_5 = arith.constant 0 : index
    %c0_6 = arith.constant 0 : index
    %8 = vector.load %arg5[%c0_5, %c0_6] : memref<1x32xf32, #tpu.memory_space<vmem>>, vector<1x32xf32>
    %cst_7 = arith.constant dense<0.000000e+00> : vector<64x1xf32>
    %9 = tpu.matmul %7, %8, %cst_7 {dimension_numbers = #tpu.dot_dimension_numbers<[1], [1], [0], [0], [0, 0, 1, 0], [], []>} : vector<64x32xf32>, vector<1x32xf32>, vector<64x1xf32> -> vector<64x1xf32>
    %c0_8 = arith.constant 0 : index
    %c0_9 = arith.constant 0 : index
    %10 = vector.load %arg7[%c0_8, %c0_9] : memref<64x1xf32, #tpu.memory_space<vmem>>, vector<64x1xf32>
    tpu.vector_store %arg7[%c0_8, %c0_9], %9 {strides = array<i32>} : memref<64x1xf32, #tpu.memory_space<vmem>>, vector<64x1xf32>,
    %c0_10 = arith.constant 0 : index
    %c0_11 = arith.constant 0 : index
    %11 = vector.load %arg4[%c0_10, %c0_11] : memref<1x32xf32, #tpu.memory_space<vmem>>, vector<1x32xf32>
    %cst_12 = arith.constant dense<0.000000e+00> : vector<1x64xf32>
    %12 = tpu.matmul %11, %6, %cst_12 {dimension_numbers = #tpu.dot_dimension_numbers<[1], [1], [0], [0], [0, 0, 1, 0], [], []>} : vector<1x32xf32>, vector<64x32xf32>, vector<1x64xf32> -> vector<1x64xf32>
    %c0_13 = arith.constant 0 : index
    %c0_14 = arith.constant 0 : index
    %13 = vector.load %arg8[%c0_13, %c0_14] : memref<1x64xf32, #tpu.memory_space<vmem>>, vector<1x64xf32>
    tpu.vector_store %arg8[%c0_13, %c0_14], %12 {strides = array<i32>} : memref<1x64xf32, #tpu.memory_space<vmem>>, vector<1x64xf32>,
    %14 = arith.truncf %6 : vector<64x32xf32> to vector<64x32xbf16>
    %c0_15 = arith.constant 0 : index
    %c0_16 = arith.constant 0 : index
    %15 = vector.load %arg6[%c0_15, %c0_16] : memref<64x32xbf16, #tpu.memory_space<vmem>>, vector<64x32xbf16>
    tpu.vector_store %arg6[%c0_15, %c0_16], %14 {strides = array<i32>} : memref<64x32xbf16, #tpu.memory_space<vmem>>, vector<64x32xbf16>,
    return
  }
  func.func @transform_0(%arg0: i32) -> (i32, i32) {
    %c0_i32 = arith.constant 0 : i32
    %c0_i32_0 = arith.constant 0 : i32
    return %arg0, %c0_i32 : i32, i32
  }
  func.func @transform_1(%arg0: i32) -> (i32, i32) {
    %c0_i32 = arith.constant 0 : i32
    %c0_i32_0 = arith.constant 0 : i32
    %c0_i32_1 = arith.constant 0 : i32
    return %c0_i32, %c0_i32_0 : i32, i32
  }
  func.func @transform_2(%arg0: i32) -> (i32, i32) {
    %c0_i32 = arith.constant 0 : i32
    %c0_i32_0 = arith.constant 0 : i32
    %c0_i32_1 = arith.constant 0 : i32
    return %c0_i32, %c0_i32_0 : i32, i32
  }
  func.func @transform_3(%arg0: i32) -> (i32, i32) {
    %c0_i32 = arith.constant 0 : i32
    %c0_i32_0 = arith.constant 0 : i32
    %c0_i32_1 = arith.constant 0 : i32
    return %c0_i32, %c0_i32_0 : i32, i32
  }
  func.func @transform_4(%arg0: i32) -> (i32, i32) {
    %c0_i32 = arith.constant 0 : i32
    %c0_i32_0 = arith.constant 0 : i32
    %c0_i32_1 = arith.constant 0 : i32
    return %c0_i32, %c0_i32_0 : i32, i32
  }
  func.func @transform_5(%arg0: i32) -> (i32, i32) {
    %c0_i32 = arith.constant 0 : i32
    %c0_i32_0 = arith.constant 0 : i32
    return %arg0, %c0_i32 : i32, i32
  }
  func.func @transform_6(%arg0: i32) -> (i32, i32) {
    %c0_i32 = arith.constant 0 : i32
    %c0_i32_0 = arith.constant 0 : i32
    return %arg0, %c0_i32 : i32, i32
  }
  func.func @transform_7(%arg0: i32) -> (i32, i32) {
    %c0_i32 = arith.constant 0 : i32
    %c0_i32_0 = arith.constant 0 : i32
    return %c0_i32, %arg0 : i32, i32
  }
}

module attributes {stable_mosaic.version = 11 : i64} {
  func.func @_gat_attn_kernel(%arg0: i32, %arg1: memref<64x1xf32, #tpu.memory_space<vmem>>, %arg2: memref<1x64xf32, #tpu.memory_space<vmem>>, %arg3: memref<64x32xbf16, #tpu.memory_space<vmem>>, %arg4: memref<64x64xbf16, #tpu.memory_space<vmem>>, %arg5: memref<1x32xf32, #tpu.memory_space<vmem>>, %arg6: memref<64x32xf32, #tpu.memory_space<vmem>>) attributes {dimension_semantics = [#tpu.dimension_semantics<parallel>], iteration_bounds = array<i64: 1>, scalar_prefetch = 0 : i64, scratch_operands = 0 : i64, tpu.core_type = #tpu.core_type<tc>, window_params = [{transform_indices = @transform_0, window_bounds = array<i64: 64, 1>}, {pipeline_mode = #tpu.pipeline_mode<synchronous>, transform_indices = @transform_1, window_bounds = array<i64: 1, 64>}, {pipeline_mode = #tpu.pipeline_mode<synchronous>, transform_indices = @transform_2, window_bounds = array<i64: 64, 32>}, {transform_indices = @transform_3, window_bounds = array<i64: 64, 64>}, {pipeline_mode = #tpu.pipeline_mode<synchronous>, transform_indices = @transform_4, window_bounds = array<i64: 1, 32>}, {transform_indices = @transform_5, window_bounds = array<i64: 64, 32>}]} {
    %c0 = arith.constant 0 : index
    %c0_0 = arith.constant 0 : index
    %0 = vector.load %arg1[%c0, %c0_0] : memref<64x1xf32, #tpu.memory_space<vmem>>, vector<64x1xf32>
    %c0_1 = arith.constant 0 : index
    %c0_2 = arith.constant 0 : index
    %1 = vector.load %arg2[%c0_1, %c0_2] : memref<1x64xf32, #tpu.memory_space<vmem>>, vector<1x64xf32>
    %c0_3 = arith.constant 0 : index
    %c0_4 = arith.constant 0 : index
    %2 = vector.load %arg3[%c0_3, %c0_4] : memref<64x32xbf16, #tpu.memory_space<vmem>>, vector<64x32xbf16>
    %c0_5 = arith.constant 0 : index
    %c0_6 = arith.constant 0 : index
    %3 = vector.load %arg4[%c0_5, %c0_6] : memref<64x64xbf16, #tpu.memory_space<vmem>>, vector<64x64xbf16>
    %4 = arith.extf %3 : vector<64x64xbf16> to vector<64x64xf32>
    %cst = arith.constant 0.000000e+00 : f32
    %5 = vector.broadcast %cst : f32 to vector<64x64xf32>
    %6 = arith.cmpf ogt, %4, %5 : vector<64x64xf32>
    %7 = vector.broadcast %0 : vector<64x1xf32> to vector<64x64xf32>
    %8 = vector.broadcast %1 : vector<1x64xf32> to vector<64x64xf32>
    %9 = arith.addf %7, %8 : vector<64x64xf32>
    %cst_7 = arith.constant 2.000000e-01 : f32
    %10 = vector.broadcast %cst_7 : f32 to vector<64x64xf32>
    %11 = arith.mulf %10, %9 : vector<64x64xf32>
    %12 = arith.maximumf %9, %11 : vector<64x64xf32>
    %cst_8 = arith.constant -1.000000e+30 : f32
    %13 = vector.broadcast %cst_8 : f32 to vector<64x64xf32>
    %14 = arith.select %6, %12, %13 : vector<64x64xi1>, vector<64x64xf32>
    %cst_9 = arith.constant dense<0xFF800000> : vector<64xf32>
    %15 = vector.multi_reduction <maximumf>, %14, %cst_9 [1] : vector<64x64xf32> to vector<64xf32>
    %16 = vector.shape_cast %15 : vector<64xf32> to vector<64x1xf32>
    %17 = vector.broadcast %16 : vector<64x1xf32> to vector<64x64xf32>
    %18 = arith.subf %14, %17 : vector<64x64xf32>
    %19 = math.exp %18 : vector<64x64xf32>
    %20 = arith.mulf %19, %4 : vector<64x64xf32>
    %cst_10 = arith.constant dense<0.000000e+00> : vector<64xf32>
    %21 = vector.multi_reduction <add>, %20, %cst_10 [1] : vector<64x64xf32> to vector<64xf32>
    %22 = vector.shape_cast %21 : vector<64xf32> to vector<64x1xf32>
    %cst_11 = arith.constant 1.000000e-30 : f32
    %23 = vector.broadcast %cst_11 : f32 to vector<64x1xf32>
    %24 = arith.maximumf %22, %23 : vector<64x1xf32>
    %25 = tpu.reciprocal %24 {approx = true} : vector<64x1xf32> -> vector<64x1xf32>
    %26 = vector.broadcast %25 : vector<64x1xf32> to vector<64x64xf32>
    %27 = arith.mulf %20, %26 : vector<64x64xf32>
    %28 = arith.truncf %27 : vector<64x64xf32> to vector<64x64xbf16>
    %cst_12 = arith.constant dense<0.000000e+00> : vector<64x32xf32>
    %29 = tpu.matmul %28, %2, %cst_12 {dimension_numbers = #tpu.dot_dimension_numbers<[1], [0], [0], [1], [0, 0, 1, 1], [], []>} : vector<64x64xbf16>, vector<64x32xbf16>, vector<64x32xf32> -> vector<64x32xf32>
    %c0_13 = arith.constant 0 : index
    %c0_14 = arith.constant 0 : index
    %30 = vector.load %arg5[%c0_13, %c0_14] : memref<1x32xf32, #tpu.memory_space<vmem>>, vector<1x32xf32>
    %31 = vector.broadcast %30 : vector<1x32xf32> to vector<64x32xf32>
    %32 = arith.addf %29, %31 : vector<64x32xf32>
    %c0_15 = arith.constant 0 : index
    %c0_16 = arith.constant 0 : index
    %33 = vector.load %arg6[%c0_15, %c0_16] : memref<64x32xf32, #tpu.memory_space<vmem>>, vector<64x32xf32>
    tpu.vector_store %arg6[%c0_15, %c0_16], %32 {strides = array<i32>} : memref<64x32xf32, #tpu.memory_space<vmem>>, vector<64x32xf32>,
    return
  }
  func.func @transform_0(%arg0: i32) -> (i32, i32) {
    %c0_i32 = arith.constant 0 : i32
    %c0_i32_0 = arith.constant 0 : i32
    return %arg0, %c0_i32 : i32, i32
  }
  func.func @transform_1(%arg0: i32) -> (i32, i32) {
    %c0_i32 = arith.constant 0 : i32
    %c0_i32_0 = arith.constant 0 : i32
    %c0_i32_1 = arith.constant 0 : i32
    return %c0_i32, %c0_i32_0 : i32, i32
  }
  func.func @transform_2(%arg0: i32) -> (i32, i32) {
    %c0_i32 = arith.constant 0 : i32
    %c0_i32_0 = arith.constant 0 : i32
    %c0_i32_1 = arith.constant 0 : i32
    return %c0_i32, %c0_i32_0 : i32, i32
  }
  func.func @transform_3(%arg0: i32) -> (i32, i32) {
    %c0_i32 = arith.constant 0 : i32
    %c0_i32_0 = arith.constant 0 : i32
    return %arg0, %c0_i32 : i32, i32
  }
  func.func @transform_4(%arg0: i32) -> (i32, i32) {
    %c0_i32 = arith.constant 0 : i32
    %c0_i32_0 = arith.constant 0 : i32
    %c0_i32_1 = arith.constant 0 : i32
    return %c0_i32, %c0_i32_0 : i32, i32
  }
  func.func @transform_5(%arg0: i32) -> (i32, i32) {
    %c0_i32 = arith.constant 0 : i32
    %c0_i32_0 = arith.constant 0 : i32
    return %arg0, %c0_i32 : i32, i32
  }
}

</mosaic_0001>

<llo_original>
// kernel: model_forward.4
$region0: #{model_forward.4}
  #allocation0 [shape = 'u32[]', space=smem, size = 0x4, offset = 0x4, fixed_abs, tag = 'smem constant byte address 0x4 - core index']
  #allocation1 [shape = 'u32[144,128]{1,0:T(1,128)}', space=vmem, size = 0x12000, scoped, tag = 'internal scratch']
  %s0 = inlined_call_operand.vmem [shape: bf16[64,16], index: 0, kind: input, shape index: {}]
  %s1 = inlined_call_operand.vmem [shape: bf16[16,512], index: 1, kind: input, shape index: {}]
  %s2 = inlined_call_operand.vmem [shape: f32[1,512], index: 2, kind: input, shape index: {}]
  %s3 = inlined_call_operand.vmem [shape: f32[8,256], index: 3, kind: input, shape index: {}]
  %s4 = inlined_call_operand.vmem [shape: f32[8,256], index: 4, kind: input, shape index: {}]
  %s5 = inlined_call_operand.vmem [shape: bf16[64,256], index: 5, kind: output, shape index: {0}]
  %s6 = inlined_call_operand.vmem [shape: f32[64,8], index: 6, kind: output, shape index: {1}]
  %s7 = inlined_call_operand.vmem [shape: f32[8,64], index: 7, kind: output, shape index: {2}]
  %8 = xla_tuple %s5, %s6, %s7
  %s9 = sld [smem:[#allocation0]]
  $region46: #{model_forward.4} parent=0
    _
  %s11 = ssub.s32 1, %s9
  %s12 = scalar_select 0, %s11, %s9
  // Predicated region
  $region2: #{model_forward.4} parent=0 // pred_check
    _
  $region3: #{model_forward.4} parent=0 // pred_check_branch
    %14 = sbr.rel (0) target = $region5
  $region4: #{model_forward.4} parent=0 // pred_region
    _
  $region5: #{model_forward.4} parent=0 // pred_fallthru
    _
  // Predicated region
  $region6: #{model_forward.4} parent=0 // pred_check
    _
  $region7: #{model_forward.4} parent=0 // pred_check_branch
    %16 = sbr.rel (0) target = $region9
  $region8: #{model_forward.4} parent=0 // pred_region
    _
  $region9: #{model_forward.4} parent=0 // pred_fallthru
    _
  // Predicated region
  $region10: #{model_forward.4} parent=0 // pred_check
    _
  $region11: #{model_forward.4} parent=0 // pred_check_branch
    %18 = sbr.rel (0) target = $region13
  $region12: #{model_forward.4} parent=0 // pred_region
    _
  $region13: #{model_forward.4} parent=0 // pred_fallthru
    _
  // Predicated region
  $region14: #{model_forward.4} parent=0 // pred_check
    _
  $region15: #{model_forward.4} parent=0 // pred_check_branch
    %20 = sbr.rel (0) target = $region17
  $region16: #{model_forward.4} parent=0 // pred_region
    _
  $region17: #{model_forward.4} parent=0 // pred_fallthru
    _
  // Predicated region
  $region18: #{model_forward.4} parent=0 // pred_check
    _
  $region19: #{model_forward.4} parent=0 // pred_check_branch
    %22 = sbr.rel (0) target = $region21
  $region20: #{model_forward.4} parent=0 // pred_region
    _
  $region21: #{model_forward.4} parent=0 // pred_fallthru
    _
  %v24 = vld [vmem:[%s0] sm:$0xf]
  %v25 = vld [vmem:[%s0 + $0x4] sm:$0xf]
  %v26 = vld [vmem:[%s0 + $0x8] sm:$0xf]
  %v27 = vld [vmem:[%s0 + $0xc] sm:$0xf]
  %v28 = vld [vmem:[%s0 + $0x10] sm:$0xf]
  %v29 = vld [vmem:[%s0 + $0x14] sm:$0xf]
  %v30 = vld [vmem:[%s0 + $0x18] sm:$0xf]
  %v31 = vld [vmem:[%s0 + $0x1c] sm:$0xf]
  %v32 = vld [vmem:[%s1] sm:$0xff]
  %v33 = vld [vmem:[%s1 + $0x8] sm:$0xff]
  %v34 = vld [vmem:[%s1 + $0x10] sm:$0xff]
  %v35 = vld [vmem:[%s1 + $0x18] sm:$0xff]
  %v36 = vld [vmem:[%s2] sm:$0xf]
  %v38 = vlaneseq
  %v39 = vshrl.u32 %v38, 7
  %v40 = vsub.s32 0, %v39
  %v41 = vrot.slane %v36, %v40
  %v42 = vlaneseq
  %v43 = vshrl.u32 %v42, 7
  %v44 = vsub.s32 1, %v43
  %v45 = vrot.slane %v36, %v44
  %v46 = vlaneseq
  %v47 = vshrl.u32 %v46, 7
  %v48 = vsub.s32 2, %v47
  %v49 = vrot.slane %v36, %v48
  %v50 = vlaneseq
  %v51 = vshrl.u32 %v50, 7
  %v52 = vsub.s32 3, %v51
  %v53 = vrot.slane %v36, %v52
  %v66 = vunpack.c.l.b16 %v24
  %v67 = vunpack.c.l.b16 %v25
  %v68 = vunpack.c.l.b16 %v26
  %v69 = vunpack.c.l.b16 %v27
  %v70 = vunpack.c.l.b16 %v28
  %v71 = vunpack.c.l.b16 %v29
  %v72 = vunpack.c.l.b16 %v30
  %v73 = vunpack.c.l.b16 %v31
  %v74 = vpack.c.b16 %v67, %v66
  %v75 = vpack.c.b16 %v69, %v68
  %v76 = vpack.c.b16 %v71, %v70
  %v77 = vpack.c.b16 %v73, %v72
  %v82 = vunpack.c.l.b16 %v32
  %v83 = vunpack.c.h.b16 %v32
  %v84 = vunpack.c.l.b16 %v33
  %v85 = vunpack.c.h.b16 %v33
  %v86 = vunpack.c.l.b16 %v34
  %v87 = vunpack.c.h.b16 %v34
  %v88 = vunpack.c.l.b16 %v35
  %v89 = vunpack.c.h.b16 %v35
  %v90 = vpack.c.b16 %v86, %v82
  %v91 = vpack.c.b16 %v87, %v83
  %v92 = vpack.c.b16 %v88, %v84
  %v93 = vpack.c.b16 %v89, %v85
  %vm98 = vcmask 130048
  %v100 = vsel %vm98, %v74, 0
  %v103 = vsel %vm98, %v75, 0
  %v106 = vsel %vm98, %v76, 0
  %v109 = vsel %vm98, %v77, 0
  %111 = vmatprep.subr.bf16.mxu0 0
  %112 = vmatpush1.bf16.msra.mxu0 0
  %113 = vmatprep.subr.bf16.mxu0 0
  %114 = vmatpush1.bf16.msra.mxu0 0
  %115 = vmatprep.subr.bf16.mxu0 0
  %116 = vmatpush1.bf16.msra.mxu0 0
  %117 = vmatprep.subr.bf16.mxu0 0
  %118 = vmatpush1.bf16.msra.mxu0 0
  %119 = vmatprep.subr.bf16.mxu0 0
  %120 = vmatpush1.bf16.msra.mxu0 0
  %121 = vmatprep.subr.bf16.mxu0 0
  %122 = vmatpush1.bf16.msra.mxu0 0
  %123 = vmatprep.subr.bf16.mxu0 0
  %124 = vmatpush1.bf16.msra.mxu0 0
  %125 = vmatprep.subr.bf16.mxu0 %v91
  %126 = vmatpush1.bf16.msra.mxu0 %v90
  %127 = vmatprep.subr.bf16.mxu0 0
  %128 = vmatpush2.bf16.msra.mxu0 0
  %129 = vmatprep.subr.bf16.mxu0 0
  %130 = vmatpush2.bf16.msra.mxu0 0
  %131 = vmatprep.subr.bf16.mxu0 0
  %132 = vmatpush2.bf16.msra.mxu0 0
  %133 = vmatprep.subr.bf16.mxu0 0
  %134 = vmatpush2.bf16.msra.mxu0 0
  %135 = vmatprep.subr.bf16.mxu0 0
  %136 = vmatpush2.bf16.msra.mxu0 0
  %137 = vmatprep.subr.bf16.mxu0 0
  %138 = vmatpush2.bf16.msra.mxu0 0
  %139 = vmatprep.subr.bf16.mxu0 0
  %140 = vmatpush2.bf16.msra.mxu0 0
  %141 = vmatprep.subr.bf16.mxu0 0
  %142 = vmatpush2.bf16.msra.mxu0 0
  %143 = vmatprep.mubr.bf16.mxu0 0
  %144 = vmatmul.mubr.bf16.gmra.mxu0 %v100
  %v145 = vpop.f32.mrf.mxu0
  %v146 = vadd.f32 %v41, %v145
  %v147 = vpop.f32.mrf.mxu0
  %v148 = vadd.f32 %v45, %v147
  %v149 = vpop.f32.mrf.mxu0
  %v150 = vadd.f32 %v41, %v149
  %v151 = vpop.f32.mrf.mxu0
  %v152 = vadd.f32 %v45, %v151
  %153 = vmatprep.mubr.bf16.mxu0 0
  %154 = vmatmul.mubr.bf16.gmra.mxu0 %v103
  %v155 = vpop.f32.mrf.mxu0
  %v156 = vadd.f32 %v41, %v155
  %v157 = vpop.f32.mrf.mxu0
  %v158 = vadd.f32 %v45, %v157
  %v159 = vpop.f32.mrf.mxu0
  %v160 = vadd.f32 %v41, %v159
  %v161 = vpop.f32.mrf.mxu0
  %v162 = vadd.f32 %v45, %v161
  %163 = vmatprep.mubr.bf16.mxu0 0
  %164 = vmatmul.mubr.bf16.gmra.mxu0 %v106
  %v165 = vpop.f32.mrf.mxu0
  %v166 = vadd.f32 %v41, %v165
  %v167 = vpop.f32.mrf.mxu0
  %v168 = vadd.f32 %v45, %v167
  %v169 = vpop.f32.mrf.mxu0
  %v170 = vadd.f32 %v41, %v169
  %v171 = vpop.f32.mrf.mxu0
  %v172 = vadd.f32 %v45, %v171
  %173 = vmatprep.mubr.bf16.mxu0 0
  %174 = vmatmul.mubr.bf16.gmra.mxu0 %v109
  %v175 = vpop.f32.mrf.mxu0
  %v176 = vadd.f32 %v41, %v175
  %v177 = vpop.f32.mrf.mxu0
  %v178 = vadd.f32 %v45, %v177
  %v179 = vpop.f32.mrf.mxu0
  %v180 = vadd.f32 %v41, %v179
  %v181 = vpop.f32.mrf.mxu0
  %v182 = vadd.f32 %v45, %v181
  %183 = vdwg.mxu0
  %184 = vmatprep.subr.bf16.mxu0 0
  %185 = vmatpush1.bf16.msra.mxu0 0
  %186 = vmatprep.subr.bf16.mxu0 0
  %187 = vmatpush1.bf16.msra.mxu0 0
  %188 = vmatprep.subr.bf16.mxu0 0
  %189 = vmatpush1.bf16.msra.mxu0 0
  %190 = vmatprep.subr.bf16.mxu0 0
  %191 = vmatpush1.bf16.msra.mxu0 0
  %192 = vmatprep.subr.bf16.mxu0 0
  %193 = vmatpush1.bf16.msra.mxu0 0
  %194 = vmatprep.subr.bf16.mxu0 0
  %195 = vmatpush1.bf16.msra.mxu0 0
  %196 = vmatprep.subr.bf16.mxu0 0
  %197 = vmatpush1.bf16.msra.mxu0 0
  %198 = vmatprep.subr.bf16.mxu0 %v93
  %199 = vmatpush1.bf16.msra.mxu0 %v92
  %200 = vmatprep.subr.bf16.mxu0 0
  %201 = vmatpush2.bf16.msra.mxu0 0
  %202 = vmatprep.subr.bf16.mxu0 0
  %203 = vmatpush2.bf16.msra.mxu0 0
  %204 = vmatprep.subr.bf16.mxu0 0
  %205 = vmatpush2.bf16.msra.mxu0 0
  %206 = vmatprep.subr.bf16.mxu0 0
  %207 = vmatpush2.bf16.msra.mxu0 0
  %208 = vmatprep.subr.bf16.mxu0 0
  %209 = vmatpush2.bf16.msra.mxu0 0
  %210 = vmatprep.subr.bf16.mxu0 0
  %211 = vmatpush2.bf16.msra.mxu0 0
  %212 = vmatprep.subr.bf16.mxu0 0
  %213 = vmatpush2.bf16.msra.mxu0 0
  %214 = vmatprep.subr.bf16.mxu0 0
  %215 = vmatpush2.bf16.msra.mxu0 0
  %216 = vmatprep.mubr.bf16.mxu0 0
  %217 = vmatmul.mubr.bf16.gmra.mxu0 %v100
  %v218 = vpop.f32.mrf.mxu0
  %v219 = vadd.f32 %v49, %v218
  %v220 = vpop.f32.mrf.mxu0
  %v221 = vadd.f32 %v53, %v220
  %v222 = vpop.f32.mrf.mxu0
  %v223 = vadd.f32 %v49, %v222
  %v224 = vpop.f32.mrf.mxu0
  %v225 = vadd.f32 %v53, %v224
  %226 = vmatprep.mubr.bf16.mxu0 0
  %227 = vmatmul.mubr.bf16.gmra.mxu0 %v103
  %v228 = vpop.f32.mrf.mxu0
  %v229 = vadd.f32 %v49, %v228
  %v230 = vpop.f32.mrf.mxu0
  %v231 = vadd.f32 %v53, %v230
  %v232 = vpop.f32.mrf.mxu0
  %v233 = vadd.f32 %v49, %v232
  %v234 = vpop.f32.mrf.mxu0
  %v235 = vadd.f32 %v53, %v234
  %236 = vmatprep.mubr.bf16.mxu0 0
  %237 = vmatmul.mubr.bf16.gmra.mxu0 %v106
  %v238 = vpop.f32.mrf.mxu0
  %v239 = vadd.f32 %v49, %v238
  %v240 = vpop.f32.mrf.mxu0
  %v241 = vadd.f32 %v53, %v240
  %v242 = vpop.f32.mrf.mxu0
  %v243 = vadd.f32 %v49, %v242
  %v244 = vpop.f32.mrf.mxu0
  %v245 = vadd.f32 %v53, %v244
  %246 = vmatprep.mubr.bf16.mxu0 0
  %247 = vmatmul.mubr.bf16.gmra.mxu0 %v109
  %v248 = vpop.f32.mrf.mxu0
  %v249 = vadd.f32 %v49, %v248
  %v250 = vpop.f32.mrf.mxu0
  %v251 = vadd.f32 %v53, %v250
  %v252 = vpop.f32.mrf.mxu0
  %v253 = vadd.f32 %v49, %v252
  %v254 = vpop.f32.mrf.mxu0
  %v255 = vadd.f32 %v53, %v254
  %256 = vdwg.mxu0
  %v257 = vld [vmem:[%s4] sm:$0xff]
  %v258 = vld [vmem:[%s4 + $0x8] sm:$0xff]
  %259 = vmatprep.subr.mxu0 0.0
  %260 = vmatpush1.xpose.msra.mxu0 0.0
  %261 = vmatprep.subr.mxu0 0.0
  %262 = vmatpush1.xpose.msra.mxu0 0.0
  %263 = vmatprep.subr.mxu0 0.0
  %264 = vmatpush1.xpose.msra.mxu0 0.0
  %265 = vmatprep.subr.mxu0 0.0
  %266 = vmatpush1.xpose.msra.mxu0 0.0
  %267 = vmatprep.subr.mxu0 0.0
  %268 = vmatpush1.xpose.msra.mxu0 0.0
  %269 = vmatprep.subr.mxu0 0.0
  %270 = vmatpush1.xpose.msra.mxu0 0.0
  %271 = vmatprep.subr.mxu0 0.0
  %272 = vmatpush1.xpose.msra.mxu0 0.0
  %273 = vmatprep.subr.mxu0 0.0
  %274 = vmatpush1.xpose.msra.mxu0 0.0
  %275 = vmatprep.subr.mxu0 0.0
  %276 = vmatpush1.xpose.msra.mxu0 0.0
  %277 = vmatprep.subr.mxu0 0.0
  %278 = vmatpush1.xpose.msra.mxu0 0.0
  %279 = vmatprep.subr.mxu0 0.0
  %280 = vmatpush1.xpose.msra.mxu0 0.0
  %281 = vmatprep.subr.mxu0 0.0
  %282 = vmatpush1.xpose.msra.mxu0 0.0
  %283 = vmatprep.subr.mxu0 0.0
  %284 = vmatpush1.xpose.msra.mxu0 0.0
  %285 = vmatprep.subr.mxu0 0.0
  %286 = vmatpush1.xpose.msra.mxu0 0.0
  %287 = vmatprep.subr.mxu0 0.0
  %288 = vmatpush1.xpose.msra.mxu0 0.0
  %289 = vmatprep.subr.mxu0 %v258
  %290 = vmatpush1.xpose.msra.mxu0 %v257
  %291 = vmatprep.subr.mxu0 0.0
  %292 = vmatpush2.xpose.msra.mxu0 0.0
  %293 = vmatprep.subr.mxu0 0.0
  %294 = vmatpush2.xpose.msra.mxu0 0.0
  %295 = vmatprep.subr.mxu0 0.0
  %296 = vmatpush2.xpose.msra.mxu0 0.0
  %297 = vmatprep.subr.mxu0 0.0
  %298 = vmatpush2.xpose.msra.mxu0 0.0
  %299 = vmatprep.subr.mxu0 0.0
  %300 = vmatpush2.xpose.msra.mxu0 0.0
  %301 = vmatprep.subr.mxu0 0.0
  %302 = vmatpush2.xpose.msra.mxu0 0.0
  %303 = vmatprep.subr.mxu0 0.0
  %304 = vmatpush2.xpose.msra.mxu0 0.0
  %305 = vmatprep.subr.mxu0 0.0
  %306 = vmatpush2.xpose.msra.mxu0 0.0
  %307 = vmatprep.subr.mxu0 0.0
  %308 = vmatpush2.xpose.msra.mxu0 0.0
  %309 = vmatprep.subr.mxu0 0.0
  %310 = vmatpush2.xpose.msra.mxu0 0.0
  %311 = vmatprep.subr.mxu0 0.0
  %312 = vmatpush2.xpose.msra.mxu0 0.0
  %313 = vmatprep.subr.mxu0 0.0
  %314 = vmatpush2.xpose.msra.mxu0 0.0
  %315 = vmatprep.subr.mxu0 0.0
  %316 = vmatpush2.xpose.msra.mxu0 0.0
  %317 = vmatprep.subr.mxu0 0.0
  %318 = vmatpush2.xpose.msra.mxu0 0.0
  %319 = vmatprep.subr.mxu0 0.0
  %320 = vmatpush2.xpose.msra.mxu0 0.0
  %321 = vmatprep.subr.mxu0 0.0
  %322 = vmatpush2.xpose.msra.mxu0 0.0
  %323 = vmatprep.mubr.f32.mxu0 %v221
  %324 = vmatmul.mubr.f32.gmra.mxu0 %v219
  %v325 = vpop.f32.mrf.mxu0
  %v326 = vadd.f32 0.0, %v325
  %v327 = vpop.f32.mrf.mxu0
  %328 = vmatprep.mubr.f32.mxu0 %v225
  %329 = vmatmul.mubr.f32.gmra.mxu0 %v223
  %v330 = vpop.f32.mrf.mxu0
  %v331 = vadd.f32 0.0, %v330
  %v332 = vpop.f32.mrf.mxu0
  %333 = vmatprep.mubr.f32.mxu0 %v231
  %334 = vmatmul.mubr.f32.gmra.mxu0 %v229
  %v335 = vpop.f32.mrf.mxu0
  %v336 = vadd.f32 0.0, %v335
  %v337 = vpop.f32.mrf.mxu0
  %338 = vmatprep.mubr.f32.mxu0 %v235
  %339 = vmatmul.mubr.f32.gmra.mxu0 %v233
  %v340 = vpop.f32.mrf.mxu0
  %v341 = vadd.f32 0.0, %v340
  %v342 = vpop.f32.mrf.mxu0
  %343 = vmatprep.mubr.f32.mxu0 %v241
  %344 = vmatmul.mubr.f32.gmra.mxu0 %v239
  %v345 = vpop.f32.mrf.mxu0
  %v346 = vadd.f32 0.0, %v345
  %v347 = vpop.f32.mrf.mxu0
  %348 = vmatprep.mubr.f32.mxu0 %v245
  %349 = vmatmul.mubr.f32.gmra.mxu0 %v243
  %v350 = vpop.f32.mrf.mxu0
  %v351 = vadd.f32 0.0, %v350
  %v352 = vpop.f32.mrf.mxu0
  %353 = vmatprep.mubr.f32.mxu0 %v251
  %354 = vmatmul.mubr.f32.gmra.mxu0 %v249
  %v355 = vpop.f32.mrf.mxu0
  %v356 = vadd.f32 0.0, %v355
  %v357 = vpop.f32.mrf.mxu0
  %358 = vmatprep.mubr.f32.mxu0 %v255
  %359 = vmatmul.mubr.f32.gmra.mxu0 %v253
  %v360 = vpop.f32.mrf.mxu0
  %v361 = vadd.f32 0.0, %v360
  %v362 = vpop.f32.mrf.mxu0
  %363 = vdwg.mxu0
  %vm364 = vcmask 64512
  %365 = vst.msk [vmem:[%s6] sm:$0xff] %vm364, %v326
  %366 = vst.msk [vmem:[%s6 + $0x8] sm:$0xff] %vm364, %v331
  %367 = vst.msk [vmem:[%s6 + $0x10] sm:$0xff] %vm364, %v336
  %368 = vst.msk [vmem:[%s6 + $0x18] sm:$0xff] %vm364, %v341
  %369 = vst.msk [vmem:[%s6 + $0x20] sm:$0xff] %vm364, %v346
  %370 = vst.msk [vmem:[%s6 + $0x28] sm:$0xff] %vm364, %v351
  %371 = vst.msk [vmem:[%s6 + $0x30] sm:$0xff] %vm364, %v356
  %372 = vst.msk [vmem:[%s6 + $0x38] sm:$0xff] %vm364, %v361
  %v373 = vld [vmem:[%s3] sm:$0xff]
  %v374 = vld [vmem:[%s3 + $0x8] sm:$0xff]
  %375 = vmatprep.subr.mxu0 0.0
  %376 = vmatpush1.xpose.msra.mxu0 0.0
  %377 = vmatprep.subr.mxu0 0.0
  %378 = vmatpush1.xpose.msra.mxu0 0.0
  %379 = vmatprep.subr.mxu0 0.0
  %380 = vmatpush1.xpose.msra.mxu0 0.0
  %381 = vmatprep.subr.mxu0 0.0
  %382 = vmatpush1.xpose.msra.mxu0 0.0
  %383 = vmatprep.subr.mxu0 0.0
  %384 = vmatpush1.xpose.msra.mxu0 0.0
  %385 = vmatprep.subr.mxu0 0.0
  %386 = vmatpush1.xpose.msra.mxu0 0.0
  %387 = vmatprep.subr.mxu0 0.0
  %388 = vmatpush1.xpose.msra.mxu0 0.0
  %389 = vmatprep.subr.mxu0 0.0
  %390 = vmatpush1.xpose.msra.mxu0 0.0
  %391 = vmatprep.subr.mxu0 %v182
  %392 = vmatpush1.xpose.msra.mxu0 %v180
  %393 = vmatprep.subr.mxu0 %v178
  %394 = vmatpush1.xpose.msra.mxu0 %v176
  %395 = vmatprep.subr.mxu0 %v172
  %396 = vmatpush1.xpose.msra.mxu0 %v170
  %397 = vmatprep.subr.mxu0 %v168
  %398 = vmatpush1.xpose.msra.mxu0 %v166
  %399 = vmatprep.subr.mxu0 %v162
  %400 = vmatpush1.xpose.msra.mxu0 %v160
  %401 = vmatprep.subr.mxu0 %v158
  %402 = vmatpush1.xpose.msra.mxu0 %v156
  %403 = vmatprep.subr.mxu0 %v152
  %404 = vmatpush1.xpose.msra.mxu0 %v150
  %405 = vmatprep.subr.mxu0 %v148
  %406 = vmatpush1.xpose.msra.mxu0 %v146
  %407 = vmatprep.subr.mxu0 0.0
  %408 = vmatpush2.xpose.msra.mxu0 0.0
  %409 = vmatprep.subr.mxu0 0.0
  %410 = vmatpush2.xpose.msra.mxu0 0.0
  %411 = vmatprep.subr.mxu0 0.0
  %412 = vmatpush2.xpose.msra.mxu0 0.0
  %413 = vmatprep.subr.mxu0 0.0
  %414 = vmatpush2.xpose.msra.mxu0 0.0
  %415 = vmatprep.subr.mxu0 0.0
  %416 = vmatpush2.xpose.msra.mxu0 0.0
  %417 = vmatprep.subr.mxu0 0.0
  %418 = vmatpush2.xpose.msra.mxu0 0.0
  %419 = vmatprep.subr.mxu0 0.0
  %420 = vmatpush2.xpose.msra.mxu0 0.0
  %421 = vmatprep.subr.mxu0 0.0
  %422 = vmatpush2.xpose.msra.mxu0 0.0
  %423 = vmatprep.subr.mxu0 0.0
  %424 = vmatpush2.xpose.msra.mxu0 0.0
  %425 = vmatprep.subr.mxu0 0.0
  %426 = vmatpush2.xpose.msra.mxu0 0.0
  %427 = vmatprep.subr.mxu0 0.0
  %428 = vmatpush2.xpose.msra.mxu0 0.0
  %429 = vmatprep.subr.mxu0 0.0
  %430 = vmatpush2.xpose.msra.mxu0 0.0
  %431 = vmatprep.subr.mxu0 0.0
  %432 = vmatpush2.xpose.msra.mxu0 0.0
  %433 = vmatprep.subr.mxu0 0.0
  %434 = vmatpush2.xpose.msra.mxu0 0.0
  %435 = vmatprep.subr.mxu0 0.0
  %436 = vmatpush2.xpose.msra.mxu0 0.0
  %437 = vmatprep.subr.mxu0 0.0
  %438 = vmatpush2.xpose.msra.mxu0 0.0
  %439 = vmatprep.mubr.f32.mxu0 %v374
  %440 = vmatmul.mubr.f32.gmra.mxu0 %v373
  %v441 = vpop.f32.mrf.mxu0
  %v442 = vadd.f32 0.0, %v441
  %v443 = vpop.f32.mrf.mxu0
  %444 = vdwg.mxu0
  %vm445 = vcmask 523264
  %446 = vst.msk [vmem:[%s7] sm:$0xff] %vm445, %v442
  %v447 = vpack.c.bf16 %v150, %v146
  %v448 = vpack.c.bf16 %v152, %v148
  %v449 = vpack.c.bf16 %v160, %v156
  %v450 = vpack.c.bf16 %v162, %v158
  %v451 = vpack.c.bf16 %v170, %v166
  %v452 = vpack.c.bf16 %v172, %v168
  %v453 = vpack.c.bf16 %v180, %v176
  %v454 = vpack.c.bf16 %v182, %v178
  %v463 = vunpack.c.l.b16 %v447
  %v464 = vunpack.c.l.b16 %v448
  %v465 = vunpack.c.h.b16 %v447
  %v466 = vunpack.c.h.b16 %v448
  %v467 = vunpack.c.l.b16 %v449
  %v468 = vunpack.c.l.b16 %v450
  %v469 = vunpack.c.h.b16 %v449
  %v470 = vunpack.c.h.b16 %v450
  %v471 = vunpack.c.l.b16 %v451
  %v472 = vunpack.c.l.b16 %v452
  %v473 = vunpack.c.h.b16 %v451
  %v474 = vunpack.c.h.b16 %v452
  %v475 = vunpack.c.l.b16 %v453
  %v476 = vunpack.c.l.b16 %v454
  %v477 = vunpack.c.h.b16 %v453
  %v478 = vunpack.c.h.b16 %v454
  %v479 = vpack.c.b16 %v464, %v463
  %v480 = vpack.c.b16 %v466, %v465
  %v481 = vpack.c.b16 %v468, %v467
  %v482 = vpack.c.b16 %v470, %v469
  %v483 = vpack.c.b16 %v472, %v471
  %v484 = vpack.c.b16 %v474, %v473
  %v485 = vpack.c.b16 %v476, %v475
  %v486 = vpack.c.b16 %v478, %v477
  %495 = vst [vmem:[%s5] sm:$0xff] %v479
  %496 = vst [vmem:[%s5 + $0x8] sm:$0xff] %v480
  %497 = vst [vmem:[%s5 + $0x10] sm:$0xff] %v481
  %498 = vst [vmem:[%s5 + $0x18] sm:$0xff] %v482
  %499 = vst [vmem:[%s5 + $0x20] sm:$0xff] %v483
  %500 = vst [vmem:[%s5 + $0x28] sm:$0xff] %v484
  %501 = vst [vmem:[%s5 + $0x30] sm:$0xff] %v485
  %502 = vst [vmem:[%s5 + $0x38] sm:$0xff] %v486
  // Predicated region
  $region22: #{model_forward.4} parent=0 // pred_check
    _
  $region23: #{model_forward.4} parent=0 // pred_check_branch
    %504 = sbr.rel (0) target = $region25
  $region24: #{model_forward.4} parent=0 // pred_region
    _
  $region25: #{model_forward.4} parent=0 // pred_fallthru
    _
  // Predicated region
  $region26: #{model_forward.4} parent=0 // pred_check
    _
  $region27: #{model_forward.4} parent=0 // pred_check_branch
    %506 = sbr.rel (0) target = $region29
  $region28: #{model_forward.4} parent=0 // pred_region
    _
  $region29: #{model_forward.4} parent=0 // pred_fallthru
    _
  // Predicated region
  $region30: #{model_forward.4} parent=0 // pred_check
    _
  $region31: #{model_forward.4} parent=0 // pred_check_branch
    %508 = sbr.rel (0) target = $region33
  $region32: #{model_forward.4} parent=0 // pred_region
    _
  $region33: #{model_forward.4} parent=0 // pred_fallthru
    _
  // Predicated region
  $region34: #{model_forward.4} parent=0 // pred_check
    _
  $region35: #{model_forward.4} parent=0 // pred_check_branch
    %510 = sbr.rel (0) target = $region37
  $region36: #{model_forward.4} parent=0 // pred_region
    _
  $region37: #{model_forward.4} parent=0 // pred_fallthru
    _
  // Predicated region
  $region38: #{model_forward.4} parent=0 // pred_check
    _
  $region39: #{model_forward.4} parent=0 // pred_check_branch
    %512 = sbr.rel (0) target = $region41
  $region40: #{model_forward.4} parent=0 // pred_region
    _
  $region41: #{model_forward.4} parent=0 // pred_fallthru
    _
  // Predicated region
  $region42: #{model_forward.4} parent=0 // pred_check
    _
  $region43: #{model_forward.4} parent=0 // pred_check_branch
    %514 = sbr.rel (0) target = $region45
  $region44: #{model_forward.4} parent=0 // pred_region
    _
  $region45: #{model_forward.4} parent=0 // pred_fallthru
    _

// kernel: model_forward.6
$region0: #{model_forward.6}
  #allocation0 [shape = 'u32[]', space=smem, size = 0x4, offset = 0x4, fixed_abs, tag = 'smem constant byte address 0x4 - core index']
  #allocation1 [shape = 'u32[144,128]{1,0:T(1,128)}', space=vmem, size = 0x12000, scoped, tag = 'internal scratch']
  %s0 = inlined_call_operand.vmem [shape: bf16[64,256], index: 0, kind: input, shape index: {}]
  %s1 = inlined_call_operand.vmem [shape: bf16[256,64], index: 1, kind: input, shape index: {}]
  %s2 = inlined_call_operand.vmem [shape: f32[1,64], index: 2, kind: input, shape index: {}]
  %s3 = inlined_call_operand.vmem [shape: f32[1,32], index: 3, kind: input, shape index: {}]
  %s4 = inlined_call_operand.vmem [shape: f32[1,32], index: 4, kind: input, shape index: {}]
  %s5 = inlined_call_operand.vmem [shape: bf16[64,32], index: 5, kind: output, shape index: {0}]
  %s6 = inlined_call_operand.vmem [shape: f32[64,1], index: 6, kind: output, shape index: {1}]
  %s7 = inlined_call_operand.vmem [shape: f32[1,64], index: 7, kind: output, shape index: {2}]
  %8 = xla_tuple %s5, %s6, %s7
  %s9 = sld [smem:[#allocation0]]
  $region46: #{model_forward.6} parent=0
    _
  %s11 = ssub.s32 1, %s9
  %s12 = scalar_select 0, %s11, %s9
  // Predicated region
  $region2: #{model_forward.6} parent=0 // pred_check
    _
  $region3: #{model_forward.6} parent=0 // pred_check_branch
    %14 = sbr.rel (0) target = $region5
  $region4: #{model_forward.6} parent=0 // pred_region
    _
  $region5: #{model_forward.6} parent=0 // pred_fallthru
    _
  // Predicated region
  $region6: #{model_forward.6} parent=0 // pred_check
    _
  $region7: #{model_forward.6} parent=0 // pred_check_branch
    %16 = sbr.rel (0) target = $region9
  $region8: #{model_forward.6} parent=0 // pred_region
    _
  $region9: #{model_forward.6} parent=0 // pred_fallthru
    _
  // Predicated region
  $region10: #{model_forward.6} parent=0 // pred_check
    _
  $region11: #{model_forward.6} parent=0 // pred_check_branch
    %18 = sbr.rel (0) target = $region13
  $region12: #{model_forward.6} parent=0 // pred_region
    _
  $region13: #{model_forward.6} parent=0 // pred_fallthru
    _
  // Predicated region
  $region14: #{model_forward.6} parent=0 // pred_check
    _
  $region15: #{model_forward.6} parent=0 // pred_check_branch
    %20 = sbr.rel (0) target = $region17
  $region16: #{model_forward.6} parent=0 // pred_region
    _
  $region17: #{model_forward.6} parent=0 // pred_fallthru
    _
  // Predicated region
  $region18: #{model_forward.6} parent=0 // pred_check
    _
  $region19: #{model_forward.6} parent=0 // pred_check_branch
    %22 = sbr.rel (0) target = $region21
  $region20: #{model_forward.6} parent=0 // pred_region
    _
  $region21: #{model_forward.6} parent=0 // pred_fallthru
    _
  %v24 = vld [vmem:[%s0] sm:$0xff]
  %v25 = vld [vmem:[%s0 + $0x8] sm:$0xff]
  %v26 = vld [vmem:[%s0 + $0x10] sm:$0xff]
  %v27 = vld [vmem:[%s0 + $0x18] sm:$0xff]
  %v28 = vld [vmem:[%s0 + $0x20] sm:$0xff]
  %v29 = vld [vmem:[%s0 + $0x28] sm:$0xff]
  %v30 = vld [vmem:[%s0 + $0x30] sm:$0xff]
  %v31 = vld [vmem:[%s0 + $0x38] sm:$0xff]
  %v32 = vld [vmem:[%s1] sm:$0xf]
  %v33 = vld [vmem:[%s1 + $0x4] sm:$0xf]
  %v34 = vld [vmem:[%s1 + $0x8] sm:$0xf]
  %v35 = vld [vmem:[%s1 + $0xc] sm:$0xf]
  %v36 = vld [vmem:[%s1 + $0x10] sm:$0xf]
  %v37 = vld [vmem:[%s1 + $0x14] sm:$0xf]
  %v38 = vld [vmem:[%s1 + $0x18] sm:$0xf]
  %v39 = vld [vmem:[%s1 + $0x1c] sm:$0xf]
  %v40 = vld [vmem:[%s1 + $0x20] sm:$0xf]
  %v41 = vld [vmem:[%s1 + $0x24] sm:$0xf]
  %v42 = vld [vmem:[%s1 + $0x28] sm:$0xf]
  %v43 = vld [vmem:[%s1 + $0x2c] sm:$0xf]
  %v44 = vld [vmem:[%s1 + $0x30] sm:$0xf]
  %v45 = vld [vmem:[%s1 + $0x34] sm:$0xf]
  %v46 = vld [vmem:[%s1 + $0x38] sm:$0xf]
  %v47 = vld [vmem:[%s1 + $0x3c] sm:$0xf]
  %v48 = vld [vmem:[%s1 + $0x40] sm:$0xf]
  %v49 = vld [vmem:[%s1 + $0x44] sm:$0xf]
  %v50 = vld [vmem:[%s1 + $0x48] sm:$0xf]
  %v51 = vld [vmem:[%s1 + $0x4c] sm:$0xf]
  %v52 = vld [vmem:[%s1 + $0x50] sm:$0xf]
  %v53 = vld [vmem:[%s1 + $0x54] sm:$0xf]
  %v54 = vld [vmem:[%s1 + $0x58] sm:$0xf]
  %v55 = vld [vmem:[%s1 + $0x5c] sm:$0xf]
  %v56 = vld [vmem:[%s1 + $0x60] sm:$0xf]
  %v57 = vld [vmem:[%s1 + $0x64] sm:$0xf]
  %v58 = vld [vmem:[%s1 + $0x68] sm:$0xf]
  %v59 = vld [vmem:[%s1 + $0x6c] sm:$0xf]
  %v60 = vld [vmem:[%s1 + $0x70] sm:$0xf]
  %v61 = vld [vmem:[%s1 + $0x74] sm:$0xf]
  %v62 = vld [vmem:[%s1 + $0x78] sm:$0xf]
  %v63 = vld [vmem:[%s1 + $0x7c] sm:$0xf]
  %v64 = vld [vmem:[%s2] sm:$0x1]
  %v66 = vlaneseq
  %v67 = vshrl.u32 %v66, 7
  %v68 = vsub.s32 0, %v67
  %v69 = vrot.slane %v64, %v68
  %v79 = vunpack.c.l.b16 %v24
  %v80 = vunpack.c.h.b16 %v24
  %v81 = vunpack.c.l.b16 %v25
  %v82 = vunpack.c.h.b16 %v25
  %v83 = vunpack.c.l.b16 %v26
  %v84 = vunpack.c.h.b16 %v26
  %v85 = vunpack.c.l.b16 %v27
  %v86 = vunpack.c.h.b16 %v27
  %v87 = vunpack.c.l.b16 %v28
  %v88 = vunpack.c.h.b16 %v28
  %v89 = vunpack.c.l.b16 %v29
  %v90 = vunpack.c.h.b16 %v29
  %v91 = vunpack.c.l.b16 %v30
  %v92 = vunpack.c.h.b16 %v30
  %v93 = vunpack.c.l.b16 %v31
  %v94 = vunpack.c.h.b16 %v31
  %v95 = vpack.c.b16 %v81, %v79
  %v96 = vpack.c.b16 %v82, %v80
  %v97 = vpack.c.b16 %v85, %v83
  %v98 = vpack.c.b16 %v86, %v84
  %v99 = vpack.c.b16 %v89, %v87
  %v100 = vpack.c.b16 %v90, %v88
  %v101 = vpack.c.b16 %v93, %v91
  %v102 = vpack.c.b16 %v94, %v92
  %v143 = vunpack.c.l.b16 %v32
  %v144 = vunpack.c.l.b16 %v33
  %v145 = vunpack.c.l.b16 %v34
  %v146 = vunpack.c.l.b16 %v35
  %v147 = vunpack.c.l.b16 %v36
  %v148 = vunpack.c.l.b16 %v37
  %v149 = vunpack.c.l.b16 %v38
  %v150 = vunpack.c.l.b16 %v39
  %v151 = vunpack.c.l.b16 %v40
  %v152 = vunpack.c.l.b16 %v41
  %v153 = vunpack.c.l.b16 %v42
  %v154 = vunpack.c.l.b16 %v43
  %v155 = vunpack.c.l.b16 %v44
  %v156 = vunpack.c.l.b16 %v45
  %v157 = vunpack.c.l.b16 %v46
  %v158 = vunpack.c.l.b16 %v47
  %v159 = vunpack.c.l.b16 %v48
  %v160 = vunpack.c.l.b16 %v49
  %v161 = vunpack.c.l.b16 %v50
  %v162 = vunpack.c.l.b16 %v51
  %v163 = vunpack.c.l.b16 %v52
  %v164 = vunpack.c.l.b16 %v53
  %v165 = vunpack.c.l.b16 %v54
  %v166 = vunpack.c.l.b16 %v55
  %v167 = vunpack.c.l.b16 %v56
  %v168 = vunpack.c.l.b16 %v57
  %v169 = vunpack.c.l.b16 %v58
  %v170 = vunpack.c.l.b16 %v59
  %v171 = vunpack.c.l.b16 %v60
  %v172 = vunpack.c.l.b16 %v61
  %v173 = vunpack.c.l.b16 %v62
  %v174 = vunpack.c.l.b16 %v63
  %v175 = vpack.c.b16 %v144, %v143
  %v176 = vpack.c.b16 %v146, %v145
  %v177 = vpack.c.b16 %v148, %v147
  %v178 = vpack.c.b16 %v150, %v149
  %v179 = vpack.c.b16 %v152, %v151
  %v180 = vpack.c.b16 %v154, %v153
  %v181 = vpack.c.b16 %v156, %v155
  %v182 = vpack.c.b16 %v158, %v157
  %v183 = vpack.c.b16 %v160, %v159
  %v184 = vpack.c.b16 %v162, %v161
  %v185 = vpack.c.b16 %v164, %v163
  %v186 = vpack.c.b16 %v166, %v165
  %v187 = vpack.c.b16 %v168, %v167
  %v188 = vpack.c.b16 %v170, %v169
  %v189 = vpack.c.b16 %v172, %v171
  %v190 = vpack.c.b16 %v174, %v173
  %207 = vmatprep.subr.bf16.mxu0 0
  %208 = vmatpush1.bf16.msra.mxu0 %v182
  %209 = vmatprep.subr.bf16.mxu0 0
  %210 = vmatpush1.bf16.msra.mxu0 %v181
  %211 = vmatprep.subr.bf16.mxu0 0
  %212 = vmatpush1.bf16.msra.mxu0 %v180
  %213 = vmatprep.subr.bf16.mxu0 0
  %214 = vmatpush1.bf16.msra.mxu0 %v179
  %215 = vmatprep.subr.bf16.mxu0 0
  %216 = vmatpush1.bf16.msra.mxu0 %v178
  %217 = vmatprep.subr.bf16.mxu0 0
  %218 = vmatpush1.bf16.msra.mxu0 %v177
  %219 = vmatprep.subr.bf16.mxu0 0
  %220 = vmatpush1.bf16.msra.mxu0 %v176
  %221 = vmatprep.subr.bf16.mxu0 0
  %222 = vmatpush1.bf16.msra.mxu0 %v175
  %223 = vmatprep.subr.bf16.mxu0 0
  %224 = vmatpush2.bf16.msra.mxu0 %v190
  %225 = vmatprep.subr.bf16.mxu0 0
  %226 = vmatpush2.bf16.msra.mxu0 %v189
  %227 = vmatprep.subr.bf16.mxu0 0
  %228 = vmatpush2.bf16.msra.mxu0 %v188
  %229 = vmatprep.subr.bf16.mxu0 0
  %230 = vmatpush2.bf16.msra.mxu0 %v187
  %231 = vmatprep.subr.bf16.mxu0 0
  %232 = vmatpush2.bf16.msra.mxu0 %v186
  %233 = vmatprep.subr.bf16.mxu0 0
  %234 = vmatpush2.bf16.msra.mxu0 %v185
  %235 = vmatprep.subr.bf16.mxu0 0
  %236 = vmatpush2.bf16.msra.mxu0 %v184
  %237 = vmatprep.subr.bf16.mxu0 0
  %238 = vmatpush2.bf16.msra.mxu0 %v183
  %239 = vmatprep.mubr.bf16.mxu0 %v96
  %240 = vmatmul.mubr.bf16.gmra.mxu0 %v95
  %v241 = vpop.f32.mrf.mxu0
  %v242 = vadd.f32 %v69, %v241
  %v243 = vpop.f32.mrf.mxu0
  %v244 = vpop.f32.mrf.mxu0
  %v245 = vadd.f32 %v69, %v244
  %v246 = vpop.f32.mrf.mxu0
  %247 = vmatprep.mubr.bf16.mxu0 %v98
  %248 = vmatmul.mubr.bf16.gmra.mxu0 %v97
  %v249 = vpop.f32.mrf.mxu0
  %v250 = vadd.f32 %v69, %v249
  %v251 = vpop.f32.mrf.mxu0
  %v252 = vpop.f32.mrf.mxu0
  %v253 = vadd.f32 %v69, %v252
  %v254 = vpop.f32.mrf.mxu0
  %255 = vmatprep.mubr.bf16.mxu0 %v100
  %256 = vmatmul.mubr.bf16.gmra.mxu0 %v99
  %v257 = vpop.f32.mrf.mxu0
  %v258 = vadd.f32 %v69, %v257
  %v259 = vpop.f32.mrf.mxu0
  %v260 = vpop.f32.mrf.mxu0
  %v261 = vadd.f32 %v69, %v260
  %v262 = vpop.f32.mrf.mxu0
  %263 = vmatprep.mubr.bf16.mxu0 %v102
  %264 = vmatmul.mubr.bf16.gmra.mxu0 %v101
  %v265 = vpop.f32.mrf.mxu0
  %v266 = vadd.f32 %v69, %v265
  %v267 = vpop.f32.mrf.mxu0
  %v268 = vpop.f32.mrf.mxu0
  %v269 = vadd.f32 %v69, %v268
  %v270 = vpop.f32.mrf.mxu0
  %271 = vdwg.mxu0
  %v272 = vld [vmem:[%s4] sm:$0x1]
  %v274 = vlaneseq
  %v275 = vshrl.u32 %v274, 7
  %v276 = vsub.s32 0, %v275
  %v277 = vrot.slane %v272, %v276
  %278 = vrot.lane.b32.xlu0 %v277, 32
  %v279 = vpop.permute.xlu0 %278
  %v281 = vmul.f32 %v242, %v279
  %v282 = vmul.f32 %v245, %v279
  %v283 = vmul.f32 %v250, %v279
  %v284 = vmul.f32 %v253, %v279
  %v285 = vmul.f32 %v258, %v279
  %v286 = vmul.f32 %v261, %v279
  %v287 = vmul.f32 %v266, %v279
  %v288 = vmul.f32 %v269, %v279
  %297 = vrot.lane.b32.xlu0 %v281, 96
  %v298 = vpop.permute.xlu0 %297
  %299 = vrot.lane.b32.xlu0 %v282, 96
  %v300 = vpop.permute.xlu0 %299
  %301 = vrot.lane.b32.xlu0 %v283, 96
  %v302 = vpop.permute.xlu0 %301
  %303 = vrot.lane.b32.xlu0 %v284, 96
  %v304 = vpop.permute.xlu0 %303
  %305 = vrot.lane.b32.xlu0 %v285, 96
  %v306 = vpop.permute.xlu0 %305
  %307 = vrot.lane.b32.xlu0 %v286, 96
  %v308 = vpop.permute.xlu0 %307
  %309 = vrot.lane.b32.xlu0 %v287, 96
  %v310 = vpop.permute.xlu0 %309
  %311 = vrot.lane.b32.xlu0 %v288, 96
  %v312 = vpop.permute.xlu0 %311
  %vm321 = vcmask 261120
  %v322 = vsel %vm321, %v298, 0.0
  %323 = vadd.xlane.f32.xlu0 %v322
  %v324 = vpop.xlane.xlu0 %323
  %v325 = vsel %vm321, %v300, 0.0
  %326 = vadd.xlane.f32.xlu0 %v325
  %v327 = vpop.xlane.xlu0 %326
  %v328 = vsel %vm321, %v302, 0.0
  %329 = vadd.xlane.f32.xlu0 %v328
  %v330 = vpop.xlane.xlu0 %329
  %v331 = vsel %vm321, %v304, 0.0
  %332 = vadd.xlane.f32.xlu0 %v331
  %v333 = vpop.xlane.xlu0 %332
  %v334 = vsel %vm321, %v306, 0.0
  %335 = vadd.xlane.f32.xlu0 %v334
  %v336 = vpop.xlane.xlu0 %335
  %v337 = vsel %vm321, %v308, 0.0
  %338 = vadd.xlane.f32.xlu0 %v337
  %v339 = vpop.xlane.xlu0 %338
  %v340 = vsel %vm321, %v310, 0.0
  %341 = vadd.xlane.f32.xlu0 %v340
  %v342 = vpop.xlane.xlu0 %341
  %v343 = vsel %vm321, %v312, 0.0
  %344 = vadd.xlane.f32.xlu0 %v343
  %v345 = vpop.xlane.xlu0 %344
  %vm346 = vcmask 7168
  %347 = vst.msk [vmem:[%s6] sm:$0xff] %vm346, %v324
  %348 = vst.msk [vmem:[%s6 + $0x8] sm:$0xff] %vm346, %v327
  %349 = vst.msk [vmem:[%s6 + $0x10] sm:$0xff] %vm346, %v330
  %350 = vst.msk [vmem:[%s6 + $0x18] sm:$0xff] %vm346, %v333
  %351 = vst.msk [vmem:[%s6 + $0x20] sm:$0xff] %vm346, %v336
  %352 = vst.msk [vmem:[%s6 + $0x28] sm:$0xff] %vm346, %v339
  %353 = vst.msk [vmem:[%s6 + $0x30] sm:$0xff] %vm346, %v342
  %354 = vst.msk [vmem:[%s6 + $0x38] sm:$0xff] %vm346, %v345
  %v355 = vld [vmem:[%s3] sm:$0x1]
  %v357 = vsel %vm321, %v355, 0
  %v360 = vsel %vm321, %v242, 0
  %v363 = vsel %vm321, %v245, 0
  %v366 = vsel %vm321, %v250, 0
  %v369 = vsel %vm321, %v253, 0
  %v372 = vsel %vm321, %v258, 0
  %v375 = vsel %vm321, %v261, 0
  %v378 = vsel %vm321, %v266, 0
  %v381 = vsel %vm321, %v269, 0
  %383 = vmatprep.subr.mxu0 0.0
  %384 = vmatpush1.xpose.msra.mxu0 0.0
  %385 = vmatprep.subr.mxu0 0.0
  %386 = vmatpush1.xpose.msra.mxu0 0.0
  %387 = vmatprep.subr.mxu0 0.0
  %388 = vmatpush1.xpose.msra.mxu0 0.0
  %389 = vmatprep.subr.mxu0 0.0
  %390 = vmatpush1.xpose.msra.mxu0 0.0
  %391 = vmatprep.subr.mxu0 0.0
  %392 = vmatpush1.xpose.msra.mxu0 0.0
  %393 = vmatprep.subr.mxu0 0.0
  %394 = vmatpush1.xpose.msra.mxu0 0.0
  %395 = vmatprep.subr.mxu0 0.0
  %396 = vmatpush1.xpose.msra.mxu0 0.0
  %397 = vmatprep.subr.mxu0 0.0
  %398 = vmatpush1.xpose.msra.mxu0 0.0
  %399 = vmatprep.subr.mxu0 0.0
  %400 = vmatpush1.xpose.msra.mxu0 %v381
  %401 = vmatprep.subr.mxu0 0.0
  %402 = vmatpush1.xpose.msra.mxu0 %v378
  %403 = vmatprep.subr.mxu0 0.0
  %404 = vmatpush1.xpose.msra.mxu0 %v375
  %405 = vmatprep.subr.mxu0 0.0
  %406 = vmatpush1.xpose.msra.mxu0 %v372
  %407 = vmatprep.subr.mxu0 0.0
  %408 = vmatpush1.xpose.msra.mxu0 %v369
  %409 = vmatprep.subr.mxu0 0.0
  %410 = vmatpush1.xpose.msra.mxu0 %v366
  %411 = vmatprep.subr.mxu0 0.0
  %412 = vmatpush1.xpose.msra.mxu0 %v363
  %413 = vmatprep.subr.mxu0 0.0
  %414 = vmatpush1.xpose.msra.mxu0 %v360
  %415 = vmatprep.subr.mxu0 0.0
  %416 = vmatpush2.xpose.msra.mxu0 0.0
  %417 = vmatprep.subr.mxu0 0.0
  %418 = vmatpush2.xpose.msra.mxu0 0.0
  %419 = vmatprep.subr.mxu0 0.0
  %420 = vmatpush2.xpose.msra.mxu0 0.0
  %421 = vmatprep.subr.mxu0 0.0
  %422 = vmatpush2.xpose.msra.mxu0 0.0
  %423 = vmatprep.subr.mxu0 0.0
  %424 = vmatpush2.xpose.msra.mxu0 0.0
  %425 = vmatprep.subr.mxu0 0.0
  %426 = vmatpush2.xpose.msra.mxu0 0.0
  %427 = vmatprep.subr.mxu0 0.0
  %428 = vmatpush2.xpose.msra.mxu0 0.0
  %429 = vmatprep.subr.mxu0 0.0
  %430 = vmatpush2.xpose.msra.mxu0 0.0
  %431 = vmatprep.subr.mxu0 0.0
  %432 = vmatpush2.xpose.msra.mxu0 0.0
  %433 = vmatprep.subr.mxu0 0.0
  %434 = vmatpush2.xpose.msra.mxu0 0.0
  %435 = vmatprep.subr.mxu0 0.0
  %436 = vmatpush2.xpose.msra.mxu0 0.0
  %437 = vmatprep.subr.mxu0 0.0
  %438 = vmatpush2.xpose.msra.mxu0 0.0
  %439 = vmatprep.subr.mxu0 0.0
  %440 = vmatpush2.xpose.msra.mxu0 0.0
  %441 = vmatprep.subr.mxu0 0.0
  %442 = vmatpush2.xpose.msra.mxu0 0.0
  %443 = vmatprep.subr.mxu0 0.0
  %444 = vmatpush2.xpose.msra.mxu0 0.0
  %445 = vmatprep.subr.mxu0 0.0
  %446 = vmatpush2.xpose.msra.mxu0 0.0
  %447 = vmatprep.mubr.f32.mxu0 0.0
  %448 = vmatmul.mubr.f32.gmra.mxu0 %v357
  %v449 = vpop.f32.mrf.mxu0
  %v450 = vadd.f32 0.0, %v449
  %v451 = vpop.f32.mrf.mxu0
  %452 = vdwg.mxu0
  %vm453 = vcmask 516096
  %454 = vst.msk [vmem:[%s7] sm:$0x1] %vm453, %v450
  %v455 = vpack.c.bf16 %v245, %v242
  %v456 = vpack.c.bf16 %v253, %v250
  %v457 = vpack.c.bf16 %v261, %v258
  %v458 = vpack.c.bf16 %v269, %v266
  %v463 = vunpack.c.l.b16 %v455
  %v464 = vunpack.c.h.b16 %v455
  %v465 = vunpack.c.l.b16 %v456
  %v466 = vunpack.c.h.b16 %v456
  %v467 = vunpack.c.l.b16 %v457
  %v468 = vunpack.c.h.b16 %v457
  %v469 = vunpack.c.l.b16 %v458
  %v470 = vunpack.c.h.b16 %v458
  %v471 = vpack.c.b16 %v463, %v463
  %v472 = vpack.c.b16 %v464, %v464
  %v473 = vpack.c.b16 %v465, %v465
  %v474 = vpack.c.b16 %v466, %v466
  %v475 = vpack.c.b16 %v467, %v467
  %v476 = vpack.c.b16 %v468, %v468
  %v477 = vpack.c.b16 %v469, %v469
  %v478 = vpack.c.b16 %v470, %v470
  %vm487 = vcmask 257024
  %488 = vst.msk [vmem:[%s5] sm:$0xf] %vm487, %v471
  %489 = vst.msk [vmem:[%s5 + $0x4] sm:$0xf] %vm487, %v472
  %490 = vst.msk [vmem:[%s5 + $0x8] sm:$0xf] %vm487, %v473
  %491 = vst.msk [vmem:[%s5 + $0xc] sm:$0xf] %vm487, %v474
  %492 = vst.msk [vmem:[%s5 + $0x10] sm:$0xf] %vm487, %v475
  %493 = vst.msk [vmem:[%s5 + $0x14] sm:$0xf] %vm487, %v476
  %494 = vst.msk [vmem:[%s5 + $0x18] sm:$0xf] %vm487, %v477
  %495 = vst.msk [vmem:[%s5 + $0x1c] sm:$0xf] %vm487, %v478
  // Predicated region
  $region22: #{model_forward.6} parent=0 // pred_check
    _
  $region23: #{model_forward.6} parent=0 // pred_check_branch
    %497 = sbr.rel (0) target = $region25
  $region24: #{model_forward.6} parent=0 // pred_region
    _
  $region25: #{model_forward.6} parent=0 // pred_fallthru
    _
  // Predicated region
  $region26: #{model_forward.6} parent=0 // pred_check
    _
  $region27: #{model_forward.6} parent=0 // pred_check_branch
    %499 = sbr.rel (0) target = $region29
  $region28: #{model_forward.6} parent=0 // pred_region
    _
  $region29: #{model_forward.6} parent=0 // pred_fallthru
    _
  // Predicated region
  $region30: #{model_forward.6} parent=0 // pred_check
    _
  $region31: #{model_forward.6} parent=0 // pred_check_branch
    %501 = sbr.rel (0) target = $region33
  $region32: #{model_forward.6} parent=0 // pred_region
    _
  $region33: #{model_forward.6} parent=0 // pred_fallthru
    _
  // Predicated region
  $region34: #{model_forward.6} parent=0 // pred_check
    _
  $region35: #{model_forward.6} parent=0 // pred_check_branch
    %503 = sbr.rel (0) target = $region37
  $region36: #{model_forward.6} parent=0 // pred_region
    _
  $region37: #{model_forward.6} parent=0 // pred_fallthru
    _
  // Predicated region
  $region38: #{model_forward.6} parent=0 // pred_check
    _
  $region39: #{model_forward.6} parent=0 // pred_check_branch
    %505 = sbr.rel (0) target = $region41
  $region40: #{model_forward.6} parent=0 // pred_region
    _
  $region41: #{model_forward.6} parent=0 // pred_fallthru
    _
  // Predicated region
  $region42: #{model_forward.6} parent=0 // pred_check
    _
  $region43: #{model_forward.6} parent=0 // pred_check_branch
    %507 = sbr.rel (0) target = $region45
  $region44: #{model_forward.6} parent=0 // pred_region
    _
  $region45: #{model_forward.6} parent=0 // pred_fallthru
    _

// kernel: model_forward.5
$region0: #{model_forward.5}
  #allocation0 [shape = 'u32[]', space=smem, size = 0x4, offset = 0x4, fixed_abs, tag = 'smem constant byte address 0x4 - core index']
  #allocation1 [shape = 'u32[144,128]{1,0:T(1,128)}', space=vmem, size = 0x12000, scoped, tag = 'internal scratch']
  %s0 = inlined_call_operand.vmem [shape: f32[64,8], index: 0, kind: input, shape index: {}]
  %s1 = inlined_call_operand.vmem [shape: f32[8,64], index: 1, kind: input, shape index: {}]
  %s2 = inlined_call_operand.vmem [shape: bf16[64,256], index: 2, kind: input, shape index: {}]
  %s3 = inlined_call_operand.vmem [shape: bf16[64,64], index: 3, kind: input, shape index: {}]
  %s4 = inlined_call_operand.vmem [shape: f32[1,256], index: 4, kind: input, shape index: {}]
  %s5 = inlined_call_operand.vmem [shape: bf16[64,256], index: 5, kind: output, shape index: {}]
  %s6 = sld [smem:[#allocation0]]
  $region30: #{model_forward.5} parent=0
    _
  %s8 = ssub.s32 1, %s6
  %s9 = scalar_select 0, %s8, %s6
  // Predicated region
  $region2: #{model_forward.5} parent=0 // pred_check
    _
  $region3: #{model_forward.5} parent=0 // pred_check_branch
    %11 = sbr.rel (0) target = $region5
  $region4: #{model_forward.5} parent=0 // pred_region
    _
  $region5: #{model_forward.5} parent=0 // pred_fallthru
    _
  // Predicated region
  $region6: #{model_forward.5} parent=0 // pred_check
    _
  $region7: #{model_forward.5} parent=0 // pred_check_branch
    %13 = sbr.rel (0) target = $region9
  $region8: #{model_forward.5} parent=0 // pred_region
    _
  $region9: #{model_forward.5} parent=0 // pred_fallthru
    _
  // Predicated region
  $region10: #{model_forward.5} parent=0 // pred_check
    _
  $region11: #{model_forward.5} parent=0 // pred_check_branch
    %15 = sbr.rel (0) target = $region13
  $region12: #{model_forward.5} parent=0 // pred_region
    _
  $region13: #{model_forward.5} parent=0 // pred_fallthru
    _
  // Predicated region
  $region14: #{model_forward.5} parent=0 // pred_check
    _
  $region15: #{model_forward.5} parent=0 // pred_check_branch
    %17 = sbr.rel (0) target = $region17
  $region16: #{model_forward.5} parent=0 // pred_region
    _
  $region17: #{model_forward.5} parent=0 // pred_fallthru
    _
  // Predicated region
  $region18: #{model_forward.5} parent=0 // pred_check
    _
  $region19: #{model_forward.5} parent=0 // pred_check_branch
    %19 = sbr.rel (0) target = $region21
  $region20: #{model_forward.5} parent=0 // pred_region
    _
  $region21: #{model_forward.5} parent=0 // pred_fallthru
    _
  %v21 = vld [vmem:[%s0] sm:$0xff]
  %v22 = vld [vmem:[%s0 + $0x8] sm:$0xff]
  %v23 = vld [vmem:[%s0 + $0x10] sm:$0xff]
  %v24 = vld [vmem:[%s0 + $0x18] sm:$0xff]
  %v25 = vld [vmem:[%s0 + $0x20] sm:$0xff]
  %v26 = vld [vmem:[%s0 + $0x28] sm:$0xff]
  %v27 = vld [vmem:[%s0 + $0x30] sm:$0xff]
  %v28 = vld [vmem:[%s0 + $0x38] sm:$0xff]
  %v29 = vld [vmem:[%s1] sm:$0xff]
  %v30 = vld [vmem:[%s2] sm:$0xff]
  %v31 = vld [vmem:[%s2 + $0x8] sm:$0xff]
  %v32 = vld [vmem:[%s2 + $0x10] sm:$0xff]
  %v33 = vld [vmem:[%s2 + $0x18] sm:$0xff]
  %v34 = vld [vmem:[%s2 + $0x20] sm:$0xff]
  %v35 = vld [vmem:[%s2 + $0x28] sm:$0xff]
  %v36 = vld [vmem:[%s2 + $0x30] sm:$0xff]
  %v37 = vld [vmem:[%s2 + $0x38] sm:$0xff]
  %v38 = vld [vmem:[%s3] sm:$0xf]
  %v39 = vld [vmem:[%s3 + $0x4] sm:$0xf]
  %v40 = vld [vmem:[%s3 + $0x8] sm:$0xf]
  %v41 = vld [vmem:[%s3 + $0xc] sm:$0xf]
  %v42 = vld [vmem:[%s3 + $0x10] sm:$0xf]
  %v43 = vld [vmem:[%s3 + $0x14] sm:$0xf]
  %v44 = vld [vmem:[%s3 + $0x18] sm:$0xf]
  %v45 = vld [vmem:[%s3 + $0x1c] sm:$0xf]
  %v46 = vunpack.c.l.bf16 %v38
  %v47 = vunpack.c.l.bf16 %v39
  %v48 = vunpack.c.l.bf16 %v40
  %v49 = vunpack.c.l.bf16 %v41
  %v50 = vunpack.c.l.bf16 %v42
  %v51 = vunpack.c.l.bf16 %v43
  %v52 = vunpack.c.l.bf16 %v44
  %v53 = vunpack.c.l.bf16 %v45
  %vm54 = vcmp.gt.f32.partialorder %v46, 0.0
  %vm55 = vcmp.gt.f32.partialorder %v47, 0.0
  %vm56 = vcmp.gt.f32.partialorder %v48, 0.0
  %vm57 = vcmp.gt.f32.partialorder %v49, 0.0
  %vm58 = vcmp.gt.f32.partialorder %v50, 0.0
  %vm59 = vcmp.gt.f32.partialorder %v51, 0.0
  %vm60 = vcmp.gt.f32.partialorder %v52, 0.0
  %vm61 = vcmp.gt.f32.partialorder %v53, 0.0
  %63 = vset.pattern.permute.xlu0 0
  %64 = vperm.xlu0 %63, %v21
  %v65 = vpop.permute.xlu0 %64
  %68 = vset.pattern.permute.xlu0 0
  %69 = vperm.xlu0 %68, %v22
  %v70 = vpop.permute.xlu0 %69
  %73 = vset.pattern.permute.xlu0 0
  %74 = vperm.xlu0 %73, %v23
  %v75 = vpop.permute.xlu0 %74
  %78 = vset.pattern.permute.xlu0 0
  %79 = vperm.xlu0 %78, %v24
  %v80 = vpop.permute.xlu0 %79
  %83 = vset.pattern.permute.xlu0 0
  %84 = vperm.xlu0 %83, %v25
  %v85 = vpop.permute.xlu0 %84
  %88 = vset.pattern.permute.xlu0 0
  %89 = vperm.xlu0 %88, %v26
  %v90 = vpop.permute.xlu0 %89
  %93 = vset.pattern.permute.xlu0 0
  %94 = vperm.xlu0 %93, %v27
  %v95 = vpop.permute.xlu0 %94
  %98 = vset.pattern.permute.xlu0 0
  %99 = vperm.xlu0 %98, %v28
  %v100 = vpop.permute.xlu0 %99
  %v102 = vlaneseq
  %v103 = vshrl.u32 %v102, 7
  %v104 = vsub.s32 0, %v103
  %v105 = vrot.slane %v29, %v104
  %v106 = vadd.f32 %v65, %v105
  %v107 = vadd.f32 %v70, %v105
  %v108 = vadd.f32 %v75, %v105
  %v109 = vadd.f32 %v80, %v105
  %v110 = vadd.f32 %v85, %v105
  %v111 = vadd.f32 %v90, %v105
  %v112 = vadd.f32 %v95, %v105
  %v113 = vadd.f32 %v100, %v105
  %v114 = vmul.f32 %v106, 0.2
  %v115 = vmul.f32 %v107, 0.2
  %v116 = vmul.f32 %v108, 0.2
  %v117 = vmul.f32 %v109, 0.2
  %v118 = vmul.f32 %v110, 0.2
  %v119 = vmul.f32 %v111, 0.2
  %v120 = vmul.f32 %v112, 0.2
  %v121 = vmul.f32 %v113, 0.2
  %v122 = vmax.f32 %v106, %v114
  %v123 = vmax.f32 %v107, %v115
  %v124 = vmax.f32 %v108, %v116
  %v125 = vmax.f32 %v109, %v117
  %v126 = vmax.f32 %v110, %v118
  %v127 = vmax.f32 %v111, %v119
  %v128 = vmax.f32 %v112, %v120
  %v129 = vmax.f32 %v113, %v121
  %v130 = vsel %vm54, %v122, -1e+30
  %v131 = vsel %vm55, %v123, -1e+30
  %v132 = vsel %vm56, %v124, -1e+30
  %v133 = vsel %vm57, %v125, -1e+30
  %v134 = vsel %vm58, %v126, -1e+30
  %v135 = vsel %vm59, %v127, -1e+30
  %v136 = vsel %vm60, %v128, -1e+30
  %v137 = vsel %vm61, %v129, -1e+30
  %vm138 = vcmask 523264
  %v139 = vsel %vm138, %v130, -inf
  %140 = vmax.xlane.f32.xlu0 %v139
  %v141 = vpop.xlane.xlu0 %140
  %v142 = vsel %vm138, %v131, -inf
  %143 = vmax.xlane.f32.xlu0 %v142
  %v144 = vpop.xlane.xlu0 %143
  %v145 = vsel %vm138, %v132, -inf
  %146 = vmax.xlane.f32.xlu0 %v145
  %v147 = vpop.xlane.xlu0 %146
  %v148 = vsel %vm138, %v133, -inf
  %149 = vmax.xlane.f32.xlu0 %v148
  %v150 = vpop.xlane.xlu0 %149
  %v151 = vsel %vm138, %v134, -inf
  %152 = vmax.xlane.f32.xlu0 %v151
  %v153 = vpop.xlane.xlu0 %152
  %v154 = vsel %vm138, %v135, -inf
  %155 = vmax.xlane.f32.xlu0 %v154
  %v156 = vpop.xlane.xlu0 %155
  %v157 = vsel %vm138, %v136, -inf
  %158 = vmax.xlane.f32.xlu0 %v157
  %v159 = vpop.xlane.xlu0 %158
  %v160 = vsel %vm138, %v137, -inf
  %161 = vmax.xlane.f32.xlu0 %v160
  %v162 = vpop.xlane.xlu0 %161
  %v163 = vsub.f32 %v130, %v141
  %v164 = vsub.f32 %v131, %v144
  %v165 = vsub.f32 %v132, %v147
  %v166 = vsub.f32 %v133, %v150
  %v167 = vsub.f32 %v134, %v153
  %v168 = vsub.f32 %v135, %v156
  %v169 = vsub.f32 %v136, %v159
  %v170 = vsub.f32 %v137, %v162
  %v171 = vmul.f32 %v163, 1.442695
  %v172 = vpow.pop %v171
  %v173 = vmul.f32 %v164, 1.442695
  %v174 = vpow.pop %v173
  %v175 = vmul.f32 %v165, 1.442695
  %v176 = vpow.pop %v175
  %v177 = vmul.f32 %v166, 1.442695
  %v178 = vpow.pop %v177
  %v179 = vmul.f32 %v167, 1.442695
  %v180 = vpow.pop %v179
  %v181 = vmul.f32 %v168, 1.442695
  %v182 = vpow.pop %v181
  %v183 = vmul.f32 %v169, 1.442695
  %v184 = vpow.pop %v183
  %v185 = vmul.f32 %v170, 1.442695
  %v186 = vpow.pop %v185
  %v187 = vmul.f32 %v172, %v46
  %v188 = vmul.f32 %v174, %v47
  %v189 = vmul.f32 %v176, %v48
  %v190 = vmul.f32 %v178, %v49
  %v191 = vmul.f32 %v180, %v50
  %v192 = vmul.f32 %v182, %v51
  %v193 = vmul.f32 %v184, %v52
  %v194 = vmul.f32 %v186, %v53
  %v195 = vsel %vm138, %v187, 0.0
  %196 = vadd.xlane.f32.xlu0 %v195
  %v197 = vpop.xlane.xlu0 %196
  %v198 = vsel %vm138, %v188, 0.0
  %199 = vadd.xlane.f32.xlu0 %v198
  %v200 = vpop.xlane.xlu0 %199
  %v201 = vsel %vm138, %v189, 0.0
  %202 = vadd.xlane.f32.xlu0 %v201
  %v203 = vpop.xlane.xlu0 %202
  %v204 = vsel %vm138, %v190, 0.0
  %205 = vadd.xlane.f32.xlu0 %v204
  %v206 = vpop.xlane.xlu0 %205
  %v207 = vsel %vm138, %v191, 0.0
  %208 = vadd.xlane.f32.xlu0 %v207
  %v209 = vpop.xlane.xlu0 %208
  %v210 = vsel %vm138, %v192, 0.0
  %211 = vadd.xlane.f32.xlu0 %v210
  %v212 = vpop.xlane.xlu0 %211
  %v213 = vsel %vm138, %v193, 0.0
  %214 = vadd.xlane.f32.xlu0 %v213
  %v215 = vpop.xlane.xlu0 %214
  %v216 = vsel %vm138, %v194, 0.0
  %217 = vadd.xlane.f32.xlu0 %v216
  %v218 = vpop.xlane.xlu0 %217
  %v219 = vmax.f32 %v197, 1e-30
  %v220 = vmax.f32 %v200, 1e-30
  %v221 = vmax.f32 %v203, 1e-30
  %v222 = vmax.f32 %v206, 1e-30
  %v223 = vmax.f32 %v209, 1e-30
  %v224 = vmax.f32 %v212, 1e-30
  %v225 = vmax.f32 %v215, 1e-30
  %v226 = vmax.f32 %v218, 1e-30
  %v227 = vrcp.pop %v219
  %v228 = vrcp.pop %v220
  %v229 = vrcp.pop %v221
  %v230 = vrcp.pop %v222
  %v231 = vrcp.pop %v223
  %v232 = vrcp.pop %v224
  %v233 = vrcp.pop %v225
  %v234 = vrcp.pop %v226
  %v235 = vmul.f32 %v187, %v227
  %v236 = vmul.f32 %v188, %v228
  %v237 = vmul.f32 %v189, %v229
  %v238 = vmul.f32 %v190, %v230
  %v239 = vmul.f32 %v191, %v231
  %v240 = vmul.f32 %v192, %v232
  %v241 = vmul.f32 %v193, %v233
  %v242 = vmul.f32 %v194, %v234
  %v243 = vpack.c.bf16 %v236, %v235
  %v244 = vpack.c.bf16 %v238, %v237
  %v245 = vpack.c.bf16 %v240, %v239
  %v246 = vpack.c.bf16 %v242, %v241
  %v255 = vunpack.c.l.b16 %v30
  %v256 = vunpack.c.l.b16 %v31
  %v257 = vunpack.c.l.b16 %v32
  %v258 = vunpack.c.l.b16 %v33
  %v259 = vunpack.c.l.b16 %v34
  %v260 = vunpack.c.l.b16 %v35
  %v261 = vunpack.c.l.b16 %v36
  %v262 = vunpack.c.l.b16 %v37
  %v263 = vpack.c.b16 %v256, %v255
  %v264 = vpack.c.b16 %v258, %v257
  %v265 = vpack.c.b16 %v260, %v259
  %v266 = vpack.c.b16 %v262, %v261
  %v272 = vsel %vm138, %v243, 0
  %v275 = vsel %vm138, %v244, 0
  %v278 = vsel %vm138, %v245, 0
  %v281 = vsel %vm138, %v246, 0
  %283 = vmatprep.subr.bf16.mxu0 0
  %284 = vmatpush1.bf16.msra.mxu0 0
  %285 = vmatprep.subr.bf16.mxu0 0
  %286 = vmatpush1.bf16.msra.mxu0 0
  %287 = vmatprep.subr.bf16.mxu0 0
  %288 = vmatpush1.bf16.msra.mxu0 0
  %289 = vmatprep.subr.bf16.mxu0 0
  %290 = vmatpush1.bf16.msra.mxu0 0
  %291 = vmatprep.subr.bf16.mxu0 0
  %292 = vmatpush1.bf16.msra.mxu0 %v266
  %293 = vmatprep.subr.bf16.mxu0 0
  %294 = vmatpush1.bf16.msra.mxu0 %v265
  %295 = vmatprep.subr.bf16.mxu0 0
  %296 = vmatpush1.bf16.msra.mxu0 %v264
  %297 = vmatprep.subr.bf16.mxu0 0
  %298 = vmatpush1.bf16.msra.mxu0 %v263
  %299 = vmatprep.subr.bf16.mxu0 0
  %300 = vmatpush2.bf16.msra.mxu0 0
  %301 = vmatprep.subr.bf16.mxu0 0
  %302 = vmatpush2.bf16.msra.mxu0 0
  %303 = vmatprep.subr.bf16.mxu0 0
  %304 = vmatpush2.bf16.msra.mxu0 0
  %305 = vmatprep.subr.bf16.mxu0 0
  %306 = vmatpush2.bf16.msra.mxu0 0
  %307 = vmatprep.subr.bf16.mxu0 0
  %308 = vmatpush2.bf16.msra.mxu0 0
  %309 = vmatprep.subr.bf16.mxu0 0
  %310 = vmatpush2.bf16.msra.mxu0 0
  %311 = vmatprep.subr.bf16.mxu0 0
  %312 = vmatpush2.bf16.msra.mxu0 0
  %313 = vmatprep.subr.bf16.mxu0 0
  %314 = vmatpush2.bf16.msra.mxu0 0
  %315 = vmatprep.mubr.bf16.mxu0 0
  %316 = vmatmul.mubr.bf16.gmra.mxu0 %v272
  %v317 = vpop.f32.mrf.mxu0
  %v318 = vadd.f32 0.0, %v317
  %v319 = vpop.f32.mrf.mxu0
  %v320 = vpop.f32.mrf.mxu0
  %v321 = vadd.f32 0.0, %v320
  %v322 = vpop.f32.mrf.mxu0
  %323 = vmatprep.mubr.bf16.mxu0 0
  %324 = vmatmul.mubr.bf16.gmra.mxu0 %v275
  %v325 = vpop.f32.mrf.mxu0
  %v326 = vadd.f32 0.0, %v325
  %v327 = vpop.f32.mrf.mxu0
  %v328 = vpop.f32.mrf.mxu0
  %v329 = vadd.f32 0.0, %v328
  %v330 = vpop.f32.mrf.mxu0
  %331 = vmatprep.mubr.bf16.mxu0 0
  %332 = vmatmul.mubr.bf16.gmra.mxu0 %v278
  %v333 = vpop.f32.mrf.mxu0
  %v334 = vadd.f32 0.0, %v333
  %v335 = vpop.f32.mrf.mxu0
  %v336 = vpop.f32.mrf.mxu0
  %v337 = vadd.f32 0.0, %v336
  %v338 = vpop.f32.mrf.mxu0
  %339 = vmatprep.mubr.bf16.mxu0 0
  %340 = vmatmul.mubr.bf16.gmra.mxu0 %v281
  %v341 = vpop.f32.mrf.mxu0
  %v342 = vadd.f32 0.0, %v341
  %v343 = vpop.f32.mrf.mxu0
  %v344 = vpop.f32.mrf.mxu0
  %v345 = vadd.f32 0.0, %v344
  %v346 = vpop.f32.mrf.mxu0
  %347 = vdwg.mxu0
  %348 = vset.pattern.permute.xlu0 1
  %349 = vperm.xlu0 %348, %v21
  %v350 = vpop.permute.xlu0 %349
  %352 = vset.pattern.permute.xlu0 1
  %353 = vperm.xlu0 %352, %v22
  %v354 = vpop.permute.xlu0 %353
  %356 = vset.pattern.permute.xlu0 1
  %357 = vperm.xlu0 %356, %v23
  %v358 = vpop.permute.xlu0 %357
  %360 = vset.pattern.permute.xlu0 1
  %361 = vperm.xlu0 %360, %v24
  %v362 = vpop.permute.xlu0 %361
  %364 = vset.pattern.permute.xlu0 1
  %365 = vperm.xlu0 %364, %v25
  %v366 = vpop.permute.xlu0 %365
  %368 = vset.pattern.permute.xlu0 1
  %369 = vperm.xlu0 %368, %v26
  %v370 = vpop.permute.xlu0 %369
  %372 = vset.pattern.permute.xlu0 1
  %373 = vperm.xlu0 %372, %v27
  %v374 = vpop.permute.xlu0 %373
  %376 = vset.pattern.permute.xlu0 1
  %377 = vperm.xlu0 %376, %v28
  %v378 = vpop.permute.xlu0 %377
  %v380 = vlaneseq
  %v381 = vshrl.u32 %v380, 7
  %v382 = vsub.s32 1, %v381
  %v383 = vrot.slane %v29, %v382
  %v384 = vadd.f32 %v350, %v383
  %v385 = vadd.f32 %v354, %v383
  %v386 = vadd.f32 %v358, %v383
  %v387 = vadd.f32 %v362, %v383
  %v388 = vadd.f32 %v366, %v383
  %v389 = vadd.f32 %v370, %v383
  %v390 = vadd.f32 %v374, %v383
  %v391 = vadd.f32 %v378, %v383
  %v392 = vmul.f32 %v384, 0.2
  %v393 = vmul.f32 %v385, 0.2
  %v394 = vmul.f32 %v386, 0.2
  %v395 = vmul.f32 %v387, 0.2
  %v396 = vmul.f32 %v388, 0.2
  %v397 = vmul.f32 %v389, 0.2
  %v398 = vmul.f32 %v390, 0.2
  %v399 = vmul.f32 %v391, 0.2
  %v400 = vmax.f32 %v384, %v392
  %v401 = vmax.f32 %v385, %v393
  %v402 = vmax.f32 %v386, %v394
  %v403 = vmax.f32 %v387, %v395
  %v404 = vmax.f32 %v388, %v396
  %v405 = vmax.f32 %v389, %v397
  %v406 = vmax.f32 %v390, %v398
  %v407 = vmax.f32 %v391, %v399
  %v408 = vsel %vm54, %v400, -1e+30
  %v409 = vsel %vm55, %v401, -1e+30
  %v410 = vsel %vm56, %v402, -1e+30
  %v411 = vsel %vm57, %v403, -1e+30
  %v412 = vsel %vm58, %v404, -1e+30
  %v413 = vsel %vm59, %v405, -1e+30
  %v414 = vsel %vm60, %v406, -1e+30
  %v415 = vsel %vm61, %v407, -1e+30
  %v416 = vsel %vm138, %v408, -inf
  %417 = vmax.xlane.f32.xlu0 %v416
  %v418 = vpop.xlane.xlu0 %417
  %v419 = vsel %vm138, %v409, -inf
  %420 = vmax.xlane.f32.xlu0 %v419
  %v421 = vpop.xlane.xlu0 %420
  %v422 = vsel %vm138, %v410, -inf
  %423 = vmax.xlane.f32.xlu0 %v422
  %v424 = vpop.xlane.xlu0 %423
  %v425 = vsel %vm138, %v411, -inf
  %426 = vmax.xlane.f32.xlu0 %v425
  %v427 = vpop.xlane.xlu0 %426
  %v428 = vsel %vm138, %v412, -inf
  %429 = vmax.xlane.f32.xlu0 %v428
  %v430 = vpop.xlane.xlu0 %429
  %v431 = vsel %vm138, %v413, -inf
  %432 = vmax.xlane.f32.xlu0 %v431
  %v433 = vpop.xlane.xlu0 %432
  %v434 = vsel %vm138, %v414, -inf
  %435 = vmax.xlane.f32.xlu0 %v434
  %v436 = vpop.xlane.xlu0 %435
  %v437 = vsel %vm138, %v415, -inf
  %438 = vmax.xlane.f32.xlu0 %v437
  %v439 = vpop.xlane.xlu0 %438
  %v440 = vsub.f32 %v408, %v418
  %v441 = vsub.f32 %v409, %v421
  %v442 = vsub.f32 %v410, %v424
  %v443 = vsub.f32 %v411, %v427
  %v444 = vsub.f32 %v412, %v430
  %v445 = vsub.f32 %v413, %v433
  %v446 = vsub.f32 %v414, %v436
  %v447 = vsub.f32 %v415, %v439
  %v448 = vmul.f32 %v440, 1.442695
  %v449 = vpow.pop %v448
  %v450 = vmul.f32 %v441, 1.442695
  %v451 = vpow.pop %v450
  %v452 = vmul.f32 %v442, 1.442695
  %v453 = vpow.pop %v452
  %v454 = vmul.f32 %v443, 1.442695
  %v455 = vpow.pop %v454
  %v456 = vmul.f32 %v444, 1.442695
  %v457 = vpow.pop %v456
  %v458 = vmul.f32 %v445, 1.442695
  %v459 = vpow.pop %v458
  %v460 = vmul.f32 %v446, 1.442695
  %v461 = vpow.pop %v460
  %v462 = vmul.f32 %v447, 1.442695
  %v463 = vpow.pop %v462
  %v464 = vmul.f32 %v449, %v46
  %v465 = vmul.f32 %v451, %v47
  %v466 = vmul.f32 %v453, %v48
  %v467 = vmul.f32 %v455, %v49
  %v468 = vmul.f32 %v457, %v50
  %v469 = vmul.f32 %v459, %v51
  %v470 = vmul.f32 %v461, %v52
  %v471 = vmul.f32 %v463, %v53
  %v472 = vsel %vm138, %v464, 0.0
  %473 = vadd.xlane.f32.xlu0 %v472
  %v474 = vpop.xlane.xlu0 %473
  %v475 = vsel %vm138, %v465, 0.0
  %476 = vadd.xlane.f32.xlu0 %v475
  %v477 = vpop.xlane.xlu0 %476
  %v478 = vsel %vm138, %v466, 0.0
  %479 = vadd.xlane.f32.xlu0 %v478
  %v480 = vpop.xlane.xlu0 %479
  %v481 = vsel %vm138, %v467, 0.0
  %482 = vadd.xlane.f32.xlu0 %v481
  %v483 = vpop.xlane.xlu0 %482
  %v484 = vsel %vm138, %v468, 0.0
  %485 = vadd.xlane.f32.xlu0 %v484
  %v486 = vpop.xlane.xlu0 %485
  %v487 = vsel %vm138, %v469, 0.0
  %488 = vadd.xlane.f32.xlu0 %v487
  %v489 = vpop.xlane.xlu0 %488
  %v490 = vsel %vm138, %v470, 0.0
  %491 = vadd.xlane.f32.xlu0 %v490
  %v492 = vpop.xlane.xlu0 %491
  %v493 = vsel %vm138, %v471, 0.0
  %494 = vadd.xlane.f32.xlu0 %v493
  %v495 = vpop.xlane.xlu0 %494
  %v496 = vmax.f32 %v474, 1e-30
  %v497 = vmax.f32 %v477, 1e-30
  %v498 = vmax.f32 %v480, 1e-30
  %v499 = vmax.f32 %v483, 1e-30
  %v500 = vmax.f32 %v486, 1e-30
  %v501 = vmax.f32 %v489, 1e-30
  %v502 = vmax.f32 %v492, 1e-30
  %v503 = vmax.f32 %v495, 1e-30
  %v504 = vrcp.pop %v496
  %v505 = vrcp.pop %v497
  %v506 = vrcp.pop %v498
  %v507 = vrcp.pop %v499
  %v508 = vrcp.pop %v500
  %v509 = vrcp.pop %v501
  %v510 = vrcp.pop %v502
  %v511 = vrcp.pop %v503
  %v512 = vmul.f32 %v464, %v504
  %v513 = vmul.f32 %v465, %v505
  %v514 = vmul.f32 %v466, %v506
  %v515 = vmul.f32 %v467, %v507
  %v516 = vmul.f32 %v468, %v508
  %v517 = vmul.f32 %v469, %v509
  %v518 = vmul.f32 %v470, %v510
  %v519 = vmul.f32 %v471, %v511
  %v520 = vpack.c.bf16 %v513, %v512
  %v521 = vpack.c.bf16 %v515, %v514
  %v522 = vpack.c.bf16 %v517, %v516
  %v523 = vpack.c.bf16 %v519, %v518
  %524 = vrot.lane.b32.xlu0 %v263, 96
  %v525 = vpop.permute.xlu0 %524
  %526 = vrot.lane.b32.xlu0 %v264, 96
  %v527 = vpop.permute.xlu0 %526
  %528 = vrot.lane.b32.xlu0 %v265, 96
  %v529 = vpop.permute.xlu0 %528
  %530 = vrot.lane.b32.xlu0 %v266, 96
  %v531 = vpop.permute.xlu0 %530
  %v537 = vsel %vm138, %v520, 0
  %v540 = vsel %vm138, %v521, 0
  %v543 = vsel %vm138, %v522, 0
  %v546 = vsel %vm138, %v523, 0
  %548 = vmatprep.subr.bf16.mxu0 0
  %549 = vmatpush1.bf16.msra.mxu0 0
  %550 = vmatprep.subr.bf16.mxu0 0
  %551 = vmatpush1.bf16.msra.mxu0 0
  %552 = vmatprep.subr.bf16.mxu0 0
  %553 = vmatpush1.bf16.msra.mxu0 0
  %554 = vmatprep.subr.bf16.mxu0 0
  %555 = vmatpush1.bf16.msra.mxu0 0
  %556 = vmatprep.subr.bf16.mxu0 0
  %557 = vmatpush1.bf16.msra.mxu0 %v531
  %558 = vmatprep.subr.bf16.mxu0 0
  %559 = vmatpush1.bf16.msra.mxu0 %v529
  %560 = vmatprep.subr.bf16.mxu0 0
  %561 = vmatpush1.bf16.msra.mxu0 %v527
  %562 = vmatprep.subr.bf16.mxu0 0
  %563 = vmatpush1.bf16.msra.mxu0 %v525
  %564 = vmatprep.subr.bf16.mxu0 0
  %565 = vmatpush2.bf16.msra.mxu0 0
  %566 = vmatprep.subr.bf16.mxu0 0
  %567 = vmatpush2.bf16.msra.mxu0 0
  %568 = vmatprep.subr.bf16.mxu0 0
  %569 = vmatpush2.bf16.msra.mxu0 0
  %570 = vmatprep.subr.bf16.mxu0 0
  %571 = vmatpush2.bf16.msra.mxu0 0
  %572 = vmatprep.subr.bf16.mxu0 0
  %573 = vmatpush2.bf16.msra.mxu0 0
  %574 = vmatprep.subr.bf16.mxu0 0
  %575 = vmatpush2.bf16.msra.mxu0 0
  %576 = vmatprep.subr.bf16.mxu0 0
  %577 = vmatpush2.bf16.msra.mxu0 0
  %578 = vmatprep.subr.bf16.mxu0 0
  %579 = vmatpush2.bf16.msra.mxu0 0
  %580 = vmatprep.mubr.bf16.mxu0 0
  %581 = vmatmul.mubr.bf16.gmra.mxu0 %v537
  %v582 = vpop.f32.mrf.mxu0
  %v583 = vadd.f32 0.0, %v582
  %v584 = vpop.f32.mrf.mxu0
  %v585 = vpop.f32.mrf.mxu0
  %v586 = vadd.f32 0.0, %v585
  %v587 = vpop.f32.mrf.mxu0
  %588 = vmatprep.mubr.bf16.mxu0 0
  %589 = vmatmul.mubr.bf16.gmra.mxu0 %v540
  %v590 = vpop.f32.mrf.mxu0
  %v591 = vadd.f32 0.0, %v590
  %v592 = vpop.f32.mrf.mxu0
  %v593 = vpop.f32.mrf.mxu0
  %v594 = vadd.f32 0.0, %v593
  %v595 = vpop.f32.mrf.mxu0
  %596 = vmatprep.mubr.bf16.mxu0 0
  %597 = vmatmul.mubr.bf16.gmra.mxu0 %v543
  %v598 = vpop.f32.mrf.mxu0
  %v599 = vadd.f32 0.0, %v598
  %v600 = vpop.f32.mrf.mxu0
  %v601 = vpop.f32.mrf.mxu0
  %v602 = vadd.f32 0.0, %v601
  %v603 = vpop.f32.mrf.mxu0
  %604 = vmatprep.mubr.bf16.mxu0 0
  %605 = vmatmul.mubr.bf16.gmra.mxu0 %v546
  %v606 = vpop.f32.mrf.mxu0
  %v607 = vadd.f32 0.0, %v606
  %v608 = vpop.f32.mrf.mxu0
  %v609 = vpop.f32.mrf.mxu0
  %v610 = vadd.f32 0.0, %v609
  %v611 = vpop.f32.mrf.mxu0
  %612 = vdwg.mxu0
  %613 = vset.pattern.permute.xlu0 2
  %614 = vperm.xlu0 %613, %v21
  %v615 = vpop.permute.xlu0 %614
  %617 = vset.pattern.permute.xlu0 2
  %618 = vperm.xlu0 %617, %v22
  %v619 = vpop.permute.xlu0 %618
  %621 = vset.pattern.permute.xlu0 2
  %622 = vperm.xlu0 %621, %v23
  %v623 = vpop.permute.xlu0 %622
  %625 = vset.pattern.permute.xlu0 2
  %626 = vperm.xlu0 %625, %v24
  %v627 = vpop.permute.xlu0 %626
  %629 = vset.pattern.permute.xlu0 2
  %630 = vperm.xlu0 %629, %v25
  %v631 = vpop.permute.xlu0 %630
  %633 = vset.pattern.permute.xlu0 2
  %634 = vperm.xlu0 %633, %v26
  %v635 = vpop.permute.xlu0 %634
  %637 = vset.pattern.permute.xlu0 2
  %638 = vperm.xlu0 %637, %v27
  %v639 = vpop.permute.xlu0 %638
  %641 = vset.pattern.permute.xlu0 2
  %642 = vperm.xlu0 %641, %v28
  %v643 = vpop.permute.xlu0 %642
  %v645 = vlaneseq
  %v646 = vshrl.u32 %v645, 7
  %v647 = vsub.s32 2, %v646
  %v648 = vrot.slane %v29, %v647
  %v649 = vadd.f32 %v615, %v648
  %v650 = vadd.f32 %v619, %v648
  %v651 = vadd.f32 %v623, %v648
  %v652 = vadd.f32 %v627, %v648
  %v653 = vadd.f32 %v631, %v648
  %v654 = vadd.f32 %v635, %v648
  %v655 = vadd.f32 %v639, %v648
  %v656 = vadd.f32 %v643, %v648
  %v657 = vmul.f32 %v649, 0.2
  %v658 = vmul.f32 %v650, 0.2
  %v659 = vmul.f32 %v651, 0.2
  %v660 = vmul.f32 %v652, 0.2
  %v661 = vmul.f32 %v653, 0.2
  %v662 = vmul.f32 %v654, 0.2
  %v663 = vmul.f32 %v655, 0.2
  %v664 = vmul.f32 %v656, 0.2
  %v665 = vmax.f32 %v649, %v657
  %v666 = vmax.f32 %v650, %v658
  %v667 = vmax.f32 %v651, %v659
  %v668 = vmax.f32 %v652, %v660
  %v669 = vmax.f32 %v653, %v661
  %v670 = vmax.f32 %v654, %v662
  %v671 = vmax.f32 %v655, %v663
  %v672 = vmax.f32 %v656, %v664
  %v673 = vsel %vm54, %v665, -1e+30
  %v674 = vsel %vm55, %v666, -1e+30
  %v675 = vsel %vm56, %v667, -1e+30
  %v676 = vsel %vm57, %v668, -1e+30
  %v677 = vsel %vm58, %v669, -1e+30
  %v678 = vsel %vm59, %v670, -1e+30
  %v679 = vsel %vm60, %v671, -1e+30
  %v680 = vsel %vm61, %v672, -1e+30
  %v681 = vsel %vm138, %v673, -inf
  %682 = vmax.xlane.f32.xlu0 %v681
  %v683 = vpop.xlane.xlu0 %682
  %v684 = vsel %vm138, %v674, -inf
  %685 = vmax.xlane.f32.xlu0 %v684
  %v686 = vpop.xlane.xlu0 %685
  %v687 = vsel %vm138, %v675, -inf
  %688 = vmax.xlane.f32.xlu0 %v687
  %v689 = vpop.xlane.xlu0 %688
  %v690 = vsel %vm138, %v676, -inf
  %691 = vmax.xlane.f32.xlu0 %v690
  %v692 = vpop.xlane.xlu0 %691
  %v693 = vsel %vm138, %v677, -inf
  %694 = vmax.xlane.f32.xlu0 %v693
  %v695 = vpop.xlane.xlu0 %694
  %v696 = vsel %vm138, %v678, -inf
  %697 = vmax.xlane.f32.xlu0 %v696
  %v698 = vpop.xlane.xlu0 %697
  %v699 = vsel %vm138, %v679, -inf
  %700 = vmax.xlane.f32.xlu0 %v699
  %v701 = vpop.xlane.xlu0 %700
  %v702 = vsel %vm138, %v680, -inf
  %703 = vmax.xlane.f32.xlu0 %v702
  %v704 = vpop.xlane.xlu0 %703
  %v705 = vsub.f32 %v673, %v683
  %v706 = vsub.f32 %v674, %v686
  %v707 = vsub.f32 %v675, %v689
  %v708 = vsub.f32 %v676, %v692
  %v709 = vsub.f32 %v677, %v695
  %v710 = vsub.f32 %v678, %v698
  %v711 = vsub.f32 %v679, %v701
  %v712 = vsub.f32 %v680, %v704
  %v713 = vmul.f32 %v705, 1.442695
  %v714 = vpow.pop %v713
  %v715 = vmul.f32 %v706, 1.442695
  %v716 = vpow.pop %v715
  %v717 = vmul.f32 %v707, 1.442695
  %v718 = vpow.pop %v717
  %v719 = vmul.f32 %v708, 1.442695
  %v720 = vpow.pop %v719
  %v721 = vmul.f32 %v709, 1.442695
  %v722 = vpow.pop %v721
  %v723 = vmul.f32 %v710, 1.442695
  %v724 = vpow.pop %v723
  %v725 = vmul.f32 %v711, 1.442695
  %v726 = vpow.pop %v725
  %v727 = vmul.f32 %v712, 1.442695
  %v728 = vpow.pop %v727
  %v729 = vmul.f32 %v714, %v46
  %v730 = vmul.f32 %v716, %v47
  %v731 = vmul.f32 %v718, %v48
  %v732 = vmul.f32 %v720, %v49
  %v733 = vmul.f32 %v722, %v50
  %v734 = vmul.f32 %v724, %v51
  %v735 = vmul.f32 %v726, %v52
  %v736 = vmul.f32 %v728, %v53
  %v737 = vsel %vm138, %v729, 0.0
  %738 = vadd.xlane.f32.xlu0 %v737
  %v739 = vpop.xlane.xlu0 %738
  %v740 = vsel %vm138, %v730, 0.0
  %741 = vadd.xlane.f32.xlu0 %v740
  %v742 = vpop.xlane.xlu0 %741
  %v743 = vsel %vm138, %v731, 0.0
  %744 = vadd.xlane.f32.xlu0 %v743
  %v745 = vpop.xlane.xlu0 %744
  %v746 = vsel %vm138, %v732, 0.0
  %747 = vadd.xlane.f32.xlu0 %v746
  %v748 = vpop.xlane.xlu0 %747
  %v749 = vsel %vm138, %v733, 0.0
  %750 = vadd.xlane.f32.xlu0 %v749
  %v751 = vpop.xlane.xlu0 %750
  %v752 = vsel %vm138, %v734, 0.0
  %753 = vadd.xlane.f32.xlu0 %v752
  %v754 = vpop.xlane.xlu0 %753
  %v755 = vsel %vm138, %v735, 0.0
  %756 = vadd.xlane.f32.xlu0 %v755
  %v757 = vpop.xlane.xlu0 %756
  %v758 = vsel %vm138, %v736, 0.0
  %759 = vadd.xlane.f32.xlu0 %v758
  %v760 = vpop.xlane.xlu0 %759
  %v761 = vmax.f32 %v739, 1e-30
  %v762 = vmax.f32 %v742, 1e-30
  %v763 = vmax.f32 %v745, 1e-30
  %v764 = vmax.f32 %v748, 1e-30
  %v765 = vmax.f32 %v751, 1e-30
  %v766 = vmax.f32 %v754, 1e-30
  %v767 = vmax.f32 %v757, 1e-30
  %v768 = vmax.f32 %v760, 1e-30
  %v769 = vrcp.pop %v761
  %v770 = vrcp.pop %v762
  %v771 = vrcp.pop %v763
  %v772 = vrcp.pop %v764
  %v773 = vrcp.pop %v765
  %v774 = vrcp.pop %v766
  %v775 = vrcp.pop %v767
  %v776 = vrcp.pop %v768
  %v777 = vmul.f32 %v729, %v769
  %v778 = vmul.f32 %v730, %v770
  %v779 = vmul.f32 %v731, %v771
  %v780 = vmul.f32 %v732, %v772
  %v781 = vmul.f32 %v733, %v773
  %v782 = vmul.f32 %v734, %v774
  %v783 = vmul.f32 %v735, %v775
  %v784 = vmul.f32 %v736, %v776
  %v785 = vpack.c.bf16 %v778, %v777
  %v786 = vpack.c.bf16 %v780, %v779
  %v787 = vpack.c.bf16 %v782, %v781
  %v788 = vpack.c.bf16 %v784, %v783
  %789 = vrot.lane.b32.xlu0 %v263, 64
  %v790 = vpop.permute.xlu0 %789
  %791 = vrot.lane.b32.xlu0 %v264, 64
  %v792 = vpop.permute.xlu0 %791
  %793 = vrot.lane.b32.xlu0 %v265, 64
  %v794 = vpop.permute.xlu0 %793
  %795 = vrot.lane.b32.xlu0 %v266, 64
  %v796 = vpop.permute.xlu0 %795
  %v802 = vsel %vm138, %v785, 0
  %v805 = vsel %vm138, %v786, 0
  %v808 = vsel %vm138, %v787, 0
  %v811 = vsel %vm138, %v788, 0
  %813 = vmatprep.subr.bf16.mxu0 0
  %814 = vmatpush1.bf16.msra.mxu0 0
  %815 = vmatprep.subr.bf16.mxu0 0
  %816 = vmatpush1.bf16.msra.mxu0 0
  %817 = vmatprep.subr.bf16.mxu0 0
  %818 = vmatpush1.bf16.msra.mxu0 0
  %819 = vmatprep.subr.bf16.mxu0 0
  %820 = vmatpush1.bf16.msra.mxu0 0
  %821 = vmatprep.subr.bf16.mxu0 0
  %822 = vmatpush1.bf16.msra.mxu0 %v796
  %823 = vmatprep.subr.bf16.mxu0 0
  %824 = vmatpush1.bf16.msra.mxu0 %v794
  %825 = vmatprep.subr.bf16.mxu0 0
  %826 = vmatpush1.bf16.msra.mxu0 %v792
  %827 = vmatprep.subr.bf16.mxu0 0
  %828 = vmatpush1.bf16.msra.mxu0 %v790
  %829 = vmatprep.subr.bf16.mxu0 0
  %830 = vmatpush2.bf16.msra.mxu0 0
  %831 = vmatprep.subr.bf16.mxu0 0
  %832 = vmatpush2.bf16.msra.mxu0 0
  %833 = vmatprep.subr.bf16.mxu0 0
  %834 = vmatpush2.bf16.msra.mxu0 0
  %835 = vmatprep.subr.bf16.mxu0 0
  %836 = vmatpush2.bf16.msra.mxu0 0
  %837 = vmatprep.subr.bf16.mxu0 0
  %838 = vmatpush2.bf16.msra.mxu0 0
  %839 = vmatprep.subr.bf16.mxu0 0
  %840 = vmatpush2.bf16.msra.mxu0 0
  %841 = vmatprep.subr.bf16.mxu0 0
  %842 = vmatpush2.bf16.msra.mxu0 0
  %843 = vmatprep.subr.bf16.mxu0 0
  %844 = vmatpush2.bf16.msra.mxu0 0
  %845 = vmatprep.mubr.bf16.mxu0 0
  %846 = vmatmul.mubr.bf16.gmra.mxu0 %v802
  %v847 = vpop.f32.mrf.mxu0
  %v848 = vadd.f32 0.0, %v847
  %v849 = vpop.f32.mrf.mxu0
  %v850 = vpop.f32.mrf.mxu0
  %v851 = vadd.f32 0.0, %v850
  %v852 = vpop.f32.mrf.mxu0
  %853 = vmatprep.mubr.bf16.mxu0 0
  %854 = vmatmul.mubr.bf16.gmra.mxu0 %v805
  %v855 = vpop.f32.mrf.mxu0
  %v856 = vadd.f32 0.0, %v855
  %v857 = vpop.f32.mrf.mxu0
  %v858 = vpop.f32.mrf.mxu0
  %v859 = vadd.f32 0.0, %v858
  %v860 = vpop.f32.mrf.mxu0
  %861 = vmatprep.mubr.bf16.mxu0 0
  %862 = vmatmul.mubr.bf16.gmra.mxu0 %v808
  %v863 = vpop.f32.mrf.mxu0
  %v864 = vadd.f32 0.0, %v863
  %v865 = vpop.f32.mrf.mxu0
  %v866 = vpop.f32.mrf.mxu0
  %v867 = vadd.f32 0.0, %v866
  %v868 = vpop.f32.mrf.mxu0
  %869 = vmatprep.mubr.bf16.mxu0 0
  %870 = vmatmul.mubr.bf16.gmra.mxu0 %v811
  %v871 = vpop.f32.mrf.mxu0
  %v872 = vadd.f32 0.0, %v871
  %v873 = vpop.f32.mrf.mxu0
  %v874 = vpop.f32.mrf.mxu0
  %v875 = vadd.f32 0.0, %v874
  %v876 = vpop.f32.mrf.mxu0
  %877 = vdwg.mxu0
  %878 = vset.pattern.permute.xlu0 3
  %879 = vperm.xlu0 %878, %v21
  %v880 = vpop.permute.xlu0 %879
  %882 = vset.pattern.permute.xlu0 3
  %883 = vperm.xlu0 %882, %v22
  %v884 = vpop.permute.xlu0 %883
  %886 = vset.pattern.permute.xlu0 3
  %887 = vperm.xlu0 %886, %v23
  %v888 = vpop.permute.xlu0 %887
  %890 = vset.pattern.permute.xlu0 3
  %891 = vperm.xlu0 %890, %v24
  %v892 = vpop.permute.xlu0 %891
  %894 = vset.pattern.permute.xlu0 3
  %895 = vperm.xlu0 %894, %v25
  %v896 = vpop.permute.xlu0 %895
  %898 = vset.pattern.permute.xlu0 3
  %899 = vperm.xlu0 %898, %v26
  %v900 = vpop.permute.xlu0 %899
  %902 = vset.pattern.permute.xlu0 3
  %903 = vperm.xlu0 %902, %v27
  %v904 = vpop.permute.xlu0 %903
  %906 = vset.pattern.permute.xlu0 3
  %907 = vperm.xlu0 %906, %v28
  %v908 = vpop.permute.xlu0 %907
  %v910 = vlaneseq
  %v911 = vshrl.u32 %v910, 7
  %v912 = vsub.s32 3, %v911
  %v913 = vrot.slane %v29, %v912
  %v914 = vadd.f32 %v880, %v913
  %v915 = vadd.f32 %v884, %v913
  %v916 = vadd.f32 %v888, %v913
  %v917 = vadd.f32 %v892, %v913
  %v918 = vadd.f32 %v896, %v913
  %v919 = vadd.f32 %v900, %v913
  %v920 = vadd.f32 %v904, %v913
  %v921 = vadd.f32 %v908, %v913
  %v922 = vmul.f32 %v914, 0.2
  %v923 = vmul.f32 %v915, 0.2
  %v924 = vmul.f32 %v916, 0.2
  %v925 = vmul.f32 %v917, 0.2
  %v926 = vmul.f32 %v918, 0.2
  %v927 = vmul.f32 %v919, 0.2
  %v928 = vmul.f32 %v920, 0.2
  %v929 = vmul.f32 %v921, 0.2
  %v930 = vmax.f32 %v914, %v922
  %v931 = vmax.f32 %v915, %v923
  %v932 = vmax.f32 %v916, %v924
  %v933 = vmax.f32 %v917, %v925
  %v934 = vmax.f32 %v918, %v926
  %v935 = vmax.f32 %v919, %v927
  %v936 = vmax.f32 %v920, %v928
  %v937 = vmax.f32 %v921, %v929
  %v938 = vsel %vm54, %v930, -1e+30
  %v939 = vsel %vm55, %v931, -1e+30
  %v940 = vsel %vm56, %v932, -1e+30
  %v941 = vsel %vm57, %v933, -1e+30
  %v942 = vsel %vm58, %v934, -1e+30
  %v943 = vsel %vm59, %v935, -1e+30
  %v944 = vsel %vm60, %v936, -1e+30
  %v945 = vsel %vm61, %v937, -1e+30
  %v946 = vsel %vm138, %v938, -inf
  %947 = vmax.xlane.f32.xlu0 %v946
  %v948 = vpop.xlane.xlu0 %947
  %v949 = vsel %vm138, %v939, -inf
  %950 = vmax.xlane.f32.xlu0 %v949
  %v951 = vpop.xlane.xlu0 %950
  %v952 = vsel %vm138, %v940, -inf
  %953 = vmax.xlane.f32.xlu0 %v952
  %v954 = vpop.xlane.xlu0 %953
  %v955 = vsel %vm138, %v941, -inf
  %956 = vmax.xlane.f32.xlu0 %v955
  %v957 = vpop.xlane.xlu0 %956
  %v958 = vsel %vm138, %v942, -inf
  %959 = vmax.xlane.f32.xlu0 %v958
  %v960 = vpop.xlane.xlu0 %959
  %v961 = vsel %vm138, %v943, -inf
  %962 = vmax.xlane.f32.xlu0 %v961
  %v963 = vpop.xlane.xlu0 %962
  %v964 = vsel %vm138, %v944, -inf
  %965 = vmax.xlane.f32.xlu0 %v964
  %v966 = vpop.xlane.xlu0 %965
  %v967 = vsel %vm138, %v945, -inf
  %968 = vmax.xlane.f32.xlu0 %v967
  %v969 = vpop.xlane.xlu0 %968
  %v970 = vsub.f32 %v938, %v948
  %v971 = vsub.f32 %v939, %v951
  %v972 = vsub.f32 %v940, %v954
  %v973 = vsub.f32 %v941, %v957
  %v974 = vsub.f32 %v942, %v960
  %v975 = vsub.f32 %v943, %v963
  %v976 = vsub.f32 %v944, %v966
  %v977 = vsub.f32 %v945, %v969
  %v978 = vmul.f32 %v970, 1.442695
  %v979 = vpow.pop %v978
  %v980 = vmul.f32 %v971, 1.442695
  %v981 = vpow.pop %v980
  %v982 = vmul.f32 %v972, 1.442695
  %v983 = vpow.pop %v982
  %v984 = vmul.f32 %v973, 1.442695
  %v985 = vpow.pop %v984
  %v986 = vmul.f32 %v974, 1.442695
  %v987 = vpow.pop %v986
  %v988 = vmul.f32 %v975, 1.442695
  %v989 = vpow.pop %v988
  %v990 = vmul.f32 %v976, 1.442695
  %v991 = vpow.pop %v990
  %v992 = vmul.f32 %v977, 1.442695
  %v993 = vpow.pop %v992
  %v994 = vmul.f32 %v979, %v46
  %v995 = vmul.f32 %v981, %v47
  %v996 = vmul.f32 %v983, %v48
  %v997 = vmul.f32 %v985, %v49
  %v998 = vmul.f32 %v987, %v50
  %v999 = vmul.f32 %v989, %v51
  %v1000 = vmul.f32 %v991, %v52
  %v1001 = vmul.f32 %v993, %v53
  %v1002 = vsel %vm138, %v994, 0.0
  %1003 = vadd.xlane.f32.xlu0 %v1002
  %v1004 = vpop.xlane.xlu0 %1003
  %v1005 = vsel %vm138, %v995, 0.0
  %1006 = vadd.xlane.f32.xlu0 %v1005
  %v1007 = vpop.xlane.xlu0 %1006
  %v1008 = vsel %vm138, %v996, 0.0
  %1009 = vadd.xlane.f32.xlu0 %v1008
  %v1010 = vpop.xlane.xlu0 %1009
  %v1011 = vsel %vm138, %v997, 0.0
  %1012 = vadd.xlane.f32.xlu0 %v1011
  %v1013 = vpop.xlane.xlu0 %1012
  %v1014 = vsel %vm138, %v998, 0.0
  %1015 = vadd.xlane.f32.xlu0 %v1014
  %v1016 = vpop.xlane.xlu0 %1015
  %v1017 = vsel %vm138, %v999, 0.0
  %1018 = vadd.xlane.f32.xlu0 %v1017
  %v1019 = vpop.xlane.xlu0 %1018
  %v1020 = vsel %vm138, %v1000, 0.0
  %1021 = vadd.xlane.f32.xlu0 %v1020
  %v1022 = vpop.xlane.xlu0 %1021
  %v1023 = vsel %vm138, %v1001, 0.0
  %1024 = vadd.xlane.f32.xlu0 %v1023
  %v1025 = vpop.xlane.xlu0 %1024
  %v1026 = vmax.f32 %v1004, 1e-30
  %v1027 = vmax.f32 %v1007, 1e-30
  %v1028 = vmax.f32 %v1010, 1e-30
  %v1029 = vmax.f32 %v1013, 1e-30
  %v1030 = vmax.f32 %v1016, 1e-30
  %v1031 = vmax.f32 %v1019, 1e-30
  %v1032 = vmax.f32 %v1022, 1e-30
  %v1033 = vmax.f32 %v1025, 1e-30
  %v1034 = vrcp.pop %v1026
  %v1035 = vrcp.pop %v1027
  %v1036 = vrcp.pop %v1028
  %v1037 = vrcp.pop %v1029
  %v1038 = vrcp.pop %v1030
  %v1039 = vrcp.pop %v1031
  %v1040 = vrcp.pop %v1032
  %v1041 = vrcp.pop %v1033
  %v1042 = vmul.f32 %v994, %v1034
  %v1043 = vmul.f32 %v995, %v1035
  %v1044 = vmul.f32 %v996, %v1036
  %v1045 = vmul.f32 %v997, %v1037
  %v1046 = vmul.f32 %v998, %v1038
  %v1047 = vmul.f32 %v999, %v1039
  %v1048 = vmul.f32 %v1000, %v1040
  %v1049 = vmul.f32 %v1001, %v1041
  %v1050 = vpack.c.bf16 %v1043, %v1042
  %v1051 = vpack.c.bf16 %v1045, %v1044
  %v1052 = vpack.c.bf16 %v1047, %v1046
  %v1053 = vpack.c.bf16 %v1049, %v1048
  %1054 = vrot.lane.b32.xlu0 %v263, 32
  %v1055 = vpop.permute.xlu0 %1054
  %1056 = vrot.lane.b32.xlu0 %v264, 32
  %v1057 = vpop.permute.xlu0 %1056
  %1058 = vrot.lane.b32.xlu0 %v265, 32
  %v1059 = vpop.permute.xlu0 %1058
  %1060 = vrot.lane.b32.xlu0 %v266, 32
  %v1061 = vpop.permute.xlu0 %1060
  %v1067 = vsel %vm138, %v1050, 0
  %v1070 = vsel %vm138, %v1051, 0
  %v1073 = vsel %vm138, %v1052, 0
  %v1076 = vsel %vm138, %v1053, 0
  %1078 = vmatprep.subr.bf16.mxu0 0
  %1079 = vmatpush1.bf16.msra.mxu0 0
  %1080 = vmatprep.subr.bf16.mxu0 0
  %1081 = vmatpush1.bf16.msra.mxu0 0
  %1082 = vmatprep.subr.bf16.mxu0 0
  %1083 = vmatpush1.bf16.msra.mxu0 0
  %1084 = vmatprep.subr.bf16.mxu0 0
  %1085 = vmatpush1.bf16.msra.mxu0 0
  %1086 = vmatprep.subr.bf16.mxu0 0
  %1087 = vmatpush1.bf16.msra.mxu0 %v1061
  %1088 = vmatprep.subr.bf16.mxu0 0
  %1089 = vmatpush1.bf16.msra.mxu0 %v1059
  %1090 = vmatprep.subr.bf16.mxu0 0
  %1091 = vmatpush1.bf16.msra.mxu0 %v1057
  %1092 = vmatprep.subr.bf16.mxu0 0
  %1093 = vmatpush1.bf16.msra.mxu0 %v1055
  %1094 = vmatprep.subr.bf16.mxu0 0
  %1095 = vmatpush2.bf16.msra.mxu0 0
  %1096 = vmatprep.subr.bf16.mxu0 0
  %1097 = vmatpush2.bf16.msra.mxu0 0
  %1098 = vmatprep.subr.bf16.mxu0 0
  %1099 = vmatpush2.bf16.msra.mxu0 0
  %1100 = vmatprep.subr.bf16.mxu0 0
  %1101 = vmatpush2.bf16.msra.mxu0 0
  %1102 = vmatprep.subr.bf16.mxu0 0
  %1103 = vmatpush2.bf16.msra.mxu0 0
  %1104 = vmatprep.subr.bf16.mxu0 0
  %1105 = vmatpush2.bf16.msra.mxu0 0
  %1106 = vmatprep.subr.bf16.mxu0 0
  %1107 = vmatpush2.bf16.msra.mxu0 0
  %1108 = vmatprep.subr.bf16.mxu0 0
  %1109 = vmatpush2.bf16.msra.mxu0 0
  %1110 = vmatprep.mubr.bf16.mxu0 0
  %1111 = vmatmul.mubr.bf16.gmra.mxu0 %v1067
  %v1112 = vpop.f32.mrf.mxu0
  %v1113 = vadd.f32 0.0, %v1112
  %v1114 = vpop.f32.mrf.mxu0
  %v1115 = vpop.f32.mrf.mxu0
  %v1116 = vadd.f32 0.0, %v1115
  %v1117 = vpop.f32.mrf.mxu0
  %1118 = vmatprep.mubr.bf16.mxu0 0
  %1119 = vmatmul.mubr.bf16.gmra.mxu0 %v1070
  %v1120 = vpop.f32.mrf.mxu0
  %v1121 = vadd.f32 0.0, %v1120
  %v1122 = vpop.f32.mrf.mxu0
  %v1123 = vpop.f32.mrf.mxu0
  %v1124 = vadd.f32 0.0, %v1123
  %v1125 = vpop.f32.mrf.mxu0
  %1126 = vmatprep.mubr.bf16.mxu0 0
  %1127 = vmatmul.mubr.bf16.gmra.mxu0 %v1073
  %v1128 = vpop.f32.mrf.mxu0
  %v1129 = vadd.f32 0.0, %v1128
  %v1130 = vpop.f32.mrf.mxu0
  %v1131 = vpop.f32.mrf.mxu0
  %v1132 = vadd.f32 0.0, %v1131
  %v1133 = vpop.f32.mrf.mxu0
  %1134 = vmatprep.mubr.bf16.mxu0 0
  %1135 = vmatmul.mubr.bf16.gmra.mxu0 %v1076
  %v1136 = vpop.f32.mrf.mxu0
  %v1137 = vadd.f32 0.0, %v1136
  %v1138 = vpop.f32.mrf.mxu0
  %v1139 = vpop.f32.mrf.mxu0
  %v1140 = vadd.f32 0.0, %v1139
  %v1141 = vpop.f32.mrf.mxu0
  %1142 = vdwg.mxu0
  %1143 = vset.pattern.permute.xlu0 4
  %1144 = vperm.xlu0 %1143, %v21
  %v1145 = vpop.permute.xlu0 %1144
  %1147 = vset.pattern.permute.xlu0 4
  %1148 = vperm.xlu0 %1147, %v22
  %v1149 = vpop.permute.xlu0 %1148
  %1151 = vset.pattern.permute.xlu0 4
  %1152 = vperm.xlu0 %1151, %v23
  %v1153 = vpop.permute.xlu0 %1152
  %1155 = vset.pattern.permute.xlu0 4
  %1156 = vperm.xlu0 %1155, %v24
  %v1157 = vpop.permute.xlu0 %1156
  %1159 = vset.pattern.permute.xlu0 4
  %1160 = vperm.xlu0 %1159, %v25
  %v1161 = vpop.permute.xlu0 %1160
  %1163 = vset.pattern.permute.xlu0 4
  %1164 = vperm.xlu0 %1163, %v26
  %v1165 = vpop.permute.xlu0 %1164
  %1167 = vset.pattern.permute.xlu0 4
  %1168 = vperm.xlu0 %1167, %v27
  %v1169 = vpop.permute.xlu0 %1168
  %1171 = vset.pattern.permute.xlu0 4
  %1172 = vperm.xlu0 %1171, %v28
  %v1173 = vpop.permute.xlu0 %1172
  %v1175 = vlaneseq
  %v1176 = vshrl.u32 %v1175, 7
  %v1177 = vsub.s32 4, %v1176
  %v1178 = vrot.slane %v29, %v1177
  %v1179 = vadd.f32 %v1145, %v1178
  %v1180 = vadd.f32 %v1149, %v1178
  %v1181 = vadd.f32 %v1153, %v1178
  %v1182 = vadd.f32 %v1157, %v1178
  %v1183 = vadd.f32 %v1161, %v1178
  %v1184 = vadd.f32 %v1165, %v1178
  %v1185 = vadd.f32 %v1169, %v1178
  %v1186 = vadd.f32 %v1173, %v1178
  %v1187 = vmul.f32 %v1179, 0.2
  %v1188 = vmul.f32 %v1180, 0.2
  %v1189 = vmul.f32 %v1181, 0.2
  %v1190 = vmul.f32 %v1182, 0.2
  %v1191 = vmul.f32 %v1183, 0.2
  %v1192 = vmul.f32 %v1184, 0.2
  %v1193 = vmul.f32 %v1185, 0.2
  %v1194 = vmul.f32 %v1186, 0.2
  %v1195 = vmax.f32 %v1179, %v1187
  %v1196 = vmax.f32 %v1180, %v1188
  %v1197 = vmax.f32 %v1181, %v1189
  %v1198 = vmax.f32 %v1182, %v1190
  %v1199 = vmax.f32 %v1183, %v1191
  %v1200 = vmax.f32 %v1184, %v1192
  %v1201 = vmax.f32 %v1185, %v1193
  %v1202 = vmax.f32 %v1186, %v1194
  %v1203 = vsel %vm54, %v1195, -1e+30
  %v1204 = vsel %vm55, %v1196, -1e+30
  %v1205 = vsel %vm56, %v1197, -1e+30
  %v1206 = vsel %vm57, %v1198, -1e+30
  %v1207 = vsel %vm58, %v1199, -1e+30
  %v1208 = vsel %vm59, %v1200, -1e+30
  %v1209 = vsel %vm60, %v1201, -1e+30
  %v1210 = vsel %vm61, %v1202, -1e+30
  %v1211 = vsel %vm138, %v1203, -inf
  %1212 = vmax.xlane.f32.xlu0 %v1211
  %v1213 = vpop.xlane.xlu0 %1212
  %v1214 = vsel %vm138, %v1204, -inf
  %1215 = vmax.xlane.f32.xlu0 %v1214
  %v1216 = vpop.xlane.xlu0 %1215
  %v1217 = vsel %vm138, %v1205, -inf
  %1218 = vmax.xlane.f32.xlu0 %v1217
  %v1219 = vpop.xlane.xlu0 %1218
  %v1220 = vsel %vm138, %v1206, -inf
  %1221 = vmax.xlane.f32.xlu0 %v1220
  %v1222 = vpop.xlane.xlu0 %1221
  %v1223 = vsel %vm138, %v1207, -inf
  %1224 = vmax.xlane.f32.xlu0 %v1223
  %v1225 = vpop.xlane.xlu0 %1224
  %v1226 = vsel %vm138, %v1208, -inf
  %1227 = vmax.xlane.f32.xlu0 %v1226
  %v1228 = vpop.xlane.xlu0 %1227
  %v1229 = vsel %vm138, %v1209, -inf
  %1230 = vmax.xlane.f32.xlu0 %v1229
  %v1231 = vpop.xlane.xlu0 %1230
  %v1232 = vsel %vm138, %v1210, -inf
  %1233 = vmax.xlane.f32.xlu0 %v1232
  %v1234 = vpop.xlane.xlu0 %1233
  %v1235 = vsub.f32 %v1203, %v1213
  %v1236 = vsub.f32 %v1204, %v1216
  %v1237 = vsub.f32 %v1205, %v1219
  %v1238 = vsub.f32 %v1206, %v1222
  %v1239 = vsub.f32 %v1207, %v1225
  %v1240 = vsub.f32 %v1208, %v1228
  %v1241 = vsub.f32 %v1209, %v1231
  %v1242 = vsub.f32 %v1210, %v1234
  %v1243 = vmul.f32 %v1235, 1.442695
  %v1244 = vpow.pop %v1243
  %v1245 = vmul.f32 %v1236, 1.442695
  %v1246 = vpow.pop %v1245
  %v1247 = vmul.f32 %v1237, 1.442695
  %v1248 = vpow.pop %v1247
  %v1249 = vmul.f32 %v1238, 1.442695
  %v1250 = vpow.pop %v1249
  %v1251 = vmul.f32 %v1239, 1.442695
  %v1252 = vpow.pop %v1251
  %v1253 = vmul.f32 %v1240, 1.442695
  %v1254 = vpow.pop %v1253
  %v1255 = vmul.f32 %v1241, 1.442695
  %v1256 = vpow.pop %v1255
  %v1257 = vmul.f32 %v1242, 1.442695
  %v1258 = vpow.pop %v1257
  %v1259 = vmul.f32 %v1244, %v46
  %v1260 = vmul.f32 %v1246, %v47
  %v1261 = vmul.f32 %v1248, %v48
  %v1262 = vmul.f32 %v1250, %v49
  %v1263 = vmul.f32 %v1252, %v50
  %v1264 = vmul.f32 %v1254, %v51
  %v1265 = vmul.f32 %v1256, %v52
  %v1266 = vmul.f32 %v1258, %v53
  %v1267 = vsel %vm138, %v1259, 0.0
  %1268 = vadd.xlane.f32.xlu0 %v1267
  %v1269 = vpop.xlane.xlu0 %1268
  %v1270 = vsel %vm138, %v1260, 0.0
  %1271 = vadd.xlane.f32.xlu0 %v1270
  %v1272 = vpop.xlane.xlu0 %1271
  %v1273 = vsel %vm138, %v1261, 0.0
  %1274 = vadd.xlane.f32.xlu0 %v1273
  %v1275 = vpop.xlane.xlu0 %1274
  %v1276 = vsel %vm138, %v1262, 0.0
  %1277 = vadd.xlane.f32.xlu0 %v1276
  %v1278 = vpop.xlane.xlu0 %1277
  %v1279 = vsel %vm138, %v1263, 0.0
  %1280 = vadd.xlane.f32.xlu0 %v1279
  %v1281 = vpop.xlane.xlu0 %1280
  %v1282 = vsel %vm138, %v1264, 0.0
  %1283 = vadd.xlane.f32.xlu0 %v1282
  %v1284 = vpop.xlane.xlu0 %1283
  %v1285 = vsel %vm138, %v1265, 0.0
  %1286 = vadd.xlane.f32.xlu0 %v1285
  %v1287 = vpop.xlane.xlu0 %1286
  %v1288 = vsel %vm138, %v1266, 0.0
  %1289 = vadd.xlane.f32.xlu0 %v1288
  %v1290 = vpop.xlane.xlu0 %1289
  %v1291 = vmax.f32 %v1269, 1e-30
  %v1292 = vmax.f32 %v1272, 1e-30
  %v1293 = vmax.f32 %v1275, 1e-30
  %v1294 = vmax.f32 %v1278, 1e-30
  %v1295 = vmax.f32 %v1281, 1e-30
  %v1296 = vmax.f32 %v1284, 1e-30
  %v1297 = vmax.f32 %v1287, 1e-30
  %v1298 = vmax.f32 %v1290, 1e-30
  %v1299 = vrcp.pop %v1291
  %v1300 = vrcp.pop %v1292
  %v1301 = vrcp.pop %v1293
  %v1302 = vrcp.pop %v1294
  %v1303 = vrcp.pop %v1295
  %v1304 = vrcp.pop %v1296
  %v1305 = vrcp.pop %v1297
  %v1306 = vrcp.pop %v1298
  %v1307 = vmul.f32 %v1259, %v1299
  %v1308 = vmul.f32 %v1260, %v1300
  %v1309 = vmul.f32 %v1261, %v1301
  %v1310 = vmul.f32 %v1262, %v1302
  %v1311 = vmul.f32 %v1263, %v1303
  %v1312 = vmul.f32 %v1264, %v1304
  %v1313 = vmul.f32 %v1265, %v1305
  %v1314 = vmul.f32 %v1266, %v1306
  %v1315 = vpack.c.bf16 %v1308, %v1307
  %v1316 = vpack.c.bf16 %v1310, %v1309
  %v1317 = vpack.c.bf16 %v1312, %v1311
  %v1318 = vpack.c.bf16 %v1314, %v1313
  %v1319 = vunpack.c.h.b16 %v30
  %v1320 = vunpack.c.h.b16 %v31
  %v1321 = vunpack.c.h.b16 %v32
  %v1322 = vunpack.c.h.b16 %v33
  %v1323 = vunpack.c.h.b16 %v34
  %v1324 = vunpack.c.h.b16 %v35
  %v1325 = vunpack.c.h.b16 %v36
  %v1326 = vunpack.c.h.b16 %v37
  %v1327 = vpack.c.b16 %v1320, %v1319
  %v1328 = vpack.c.b16 %v1322, %v1321
  %v1329 = vpack.c.b16 %v1324, %v1323
  %v1330 = vpack.c.b16 %v1326, %v1325
  %v1336 = vsel %vm138, %v1315, 0
  %v1339 = vsel %vm138, %v1316, 0
  %v1342 = vsel %vm138, %v1317, 0
  %v1345 = vsel %vm138, %v1318, 0
  %1347 = vmatprep.subr.bf16.mxu0 0
  %1348 = vmatpush1.bf16.msra.mxu0 0
  %1349 = vmatprep.subr.bf16.mxu0 0
  %1350 = vmatpush1.bf16.msra.mxu0 0
  %1351 = vmatprep.subr.bf16.mxu0 0
  %1352 = vmatpush1.bf16.msra.mxu0 0
  %1353 = vmatprep.subr.bf16.mxu0 0
  %1354 = vmatpush1.bf16.msra.mxu0 0
  %1355 = vmatprep.subr.bf16.mxu0 0
  %1356 = vmatpush1.bf16.msra.mxu0 %v1330
  %1357 = vmatprep.subr.bf16.mxu0 0
  %1358 = vmatpush1.bf16.msra.mxu0 %v1329
  %1359 = vmatprep.subr.bf16.mxu0 0
  %1360 = vmatpush1.bf16.msra.mxu0 %v1328
  %1361 = vmatprep.subr.bf16.mxu0 0
  %1362 = vmatpush1.bf16.msra.mxu0 %v1327
  %1363 = vmatprep.subr.bf16.mxu0 0
  %1364 = vmatpush2.bf16.msra.mxu0 0
  %1365 = vmatprep.subr.bf16.mxu0 0
  %1366 = vmatpush2.bf16.msra.mxu0 0
  %1367 = vmatprep.subr.bf16.mxu0 0
  %1368 = vmatpush2.bf16.msra.mxu0 0
  %1369 = vmatprep.subr.bf16.mxu0 0
  %1370 = vmatpush2.bf16.msra.mxu0 0
  %1371 = vmatprep.subr.bf16.mxu0 0
  %1372 = vmatpush2.bf16.msra.mxu0 0
  %1373 = vmatprep.subr.bf16.mxu0 0
  %1374 = vmatpush2.bf16.msra.mxu0 0
  %1375 = vmatprep.subr.bf16.mxu0 0
  %1376 = vmatpush2.bf16.msra.mxu0 0
  %1377 = vmatprep.subr.bf16.mxu0 0
  %1378 = vmatpush2.bf16.msra.mxu0 0
  %1379 = vmatprep.mubr.bf16.mxu0 0
  %1380 = vmatmul.mubr.bf16.gmra.mxu0 %v1336
  %v1381 = vpop.f32.mrf.mxu0
  %v1382 = vadd.f32 0.0, %v1381
  %v1383 = vpop.f32.mrf.mxu0
  %v1384 = vpop.f32.mrf.mxu0
  %v1385 = vadd.f32 0.0, %v1384
  %v1386 = vpop.f32.mrf.mxu0
  %1387 = vmatprep.mubr.bf16.mxu0 0
  %1388 = vmatmul.mubr.bf16.gmra.mxu0 %v1339
  %v1389 = vpop.f32.mrf.mxu0
  %v1390 = vadd.f32 0.0, %v1389
  %v1391 = vpop.f32.mrf.mxu0
  %v1392 = vpop.f32.mrf.mxu0
  %v1393 = vadd.f32 0.0, %v1392
  %v1394 = vpop.f32.mrf.mxu0
  %1395 = vmatprep.mubr.bf16.mxu0 0
  %1396 = vmatmul.mubr.bf16.gmra.mxu0 %v1342
  %v1397 = vpop.f32.mrf.mxu0
  %v1398 = vadd.f32 0.0, %v1397
  %v1399 = vpop.f32.mrf.mxu0
  %v1400 = vpop.f32.mrf.mxu0
  %v1401 = vadd.f32 0.0, %v1400
  %v1402 = vpop.f32.mrf.mxu0
  %1403 = vmatprep.mubr.bf16.mxu0 0
  %1404 = vmatmul.mubr.bf16.gmra.mxu0 %v1345
  %v1405 = vpop.f32.mrf.mxu0
  %v1406 = vadd.f32 0.0, %v1405
  %v1407 = vpop.f32.mrf.mxu0
  %v1408 = vpop.f32.mrf.mxu0
  %v1409 = vadd.f32 0.0, %v1408
  %v1410 = vpop.f32.mrf.mxu0
  %1411 = vdwg.mxu0
  %1412 = vset.pattern.permute.xlu0 5
  %1413 = vperm.xlu0 %1412, %v21
  %v1414 = vpop.permute.xlu0 %1413
  %1416 = vset.pattern.permute.xlu0 5
  %1417 = vperm.xlu0 %1416, %v22
  %v1418 = vpop.permute.xlu0 %1417
  %1420 = vset.pattern.permute.xlu0 5
  %1421 = vperm.xlu0 %1420, %v23
  %v1422 = vpop.permute.xlu0 %1421
  %1424 = vset.pattern.permute.xlu0 5
  %1425 = vperm.xlu0 %1424, %v24
  %v1426 = vpop.permute.xlu0 %1425
  %1428 = vset.pattern.permute.xlu0 5
  %1429 = vperm.xlu0 %1428, %v25
  %v1430 = vpop.permute.xlu0 %1429
  %1432 = vset.pattern.permute.xlu0 5
  %1433 = vperm.xlu0 %1432, %v26
  %v1434 = vpop.permute.xlu0 %1433
  %1436 = vset.pattern.permute.xlu0 5
  %1437 = vperm.xlu0 %1436, %v27
  %v1438 = vpop.permute.xlu0 %1437
  %1440 = vset.pattern.permute.xlu0 5
  %1441 = vperm.xlu0 %1440, %v28
  %v1442 = vpop.permute.xlu0 %1441
  %v1444 = vlaneseq
  %v1445 = vshrl.u32 %v1444, 7
  %v1446 = vsub.s32 5, %v1445
  %v1447 = vrot.slane %v29, %v1446
  %v1448 = vadd.f32 %v1414, %v1447
  %v1449 = vadd.f32 %v1418, %v1447
  %v1450 = vadd.f32 %v1422, %v1447
  %v1451 = vadd.f32 %v1426, %v1447
  %v1452 = vadd.f32 %v1430, %v1447
  %v1453 = vadd.f32 %v1434, %v1447
  %v1454 = vadd.f32 %v1438, %v1447
  %v1455 = vadd.f32 %v1442, %v1447
  %v1456 = vmul.f32 %v1448, 0.2
  %v1457 = vmul.f32 %v1449, 0.2
  %v1458 = vmul.f32 %v1450, 0.2
  %v1459 = vmul.f32 %v1451, 0.2
  %v1460 = vmul.f32 %v1452, 0.2
  %v1461 = vmul.f32 %v1453, 0.2
  %v1462 = vmul.f32 %v1454, 0.2
  %v1463 = vmul.f32 %v1455, 0.2
  %v1464 = vmax.f32 %v1448, %v1456
  %v1465 = vmax.f32 %v1449, %v1457
  %v1466 = vmax.f32 %v1450, %v1458
  %v1467 = vmax.f32 %v1451, %v1459
  %v1468 = vmax.f32 %v1452, %v1460
  %v1469 = vmax.f32 %v1453, %v1461
  %v1470 = vmax.f32 %v1454, %v1462
  %v1471 = vmax.f32 %v1455, %v1463
  %v1472 = vsel %vm54, %v1464, -1e+30
  %v1473 = vsel %vm55, %v1465, -1e+30
  %v1474 = vsel %vm56, %v1466, -1e+30
  %v1475 = vsel %vm57, %v1467, -1e+30
  %v1476 = vsel %vm58, %v1468, -1e+30
  %v1477 = vsel %vm59, %v1469, -1e+30
  %v1478 = vsel %vm60, %v1470, -1e+30
  %v1479 = vsel %vm61, %v1471, -1e+30
  %v1480 = vsel %vm138, %v1472, -inf
  %1481 = vmax.xlane.f32.xlu0 %v1480
  %v1482 = vpop.xlane.xlu0 %1481
  %v1483 = vsel %vm138, %v1473, -inf
  %1484 = vmax.xlane.f32.xlu0 %v1483
  %v1485 = vpop.xlane.xlu0 %1484
  %v1486 = vsel %vm138, %v1474, -inf
  %1487 = vmax.xlane.f32.xlu0 %v1486
  %v1488 = vpop.xlane.xlu0 %1487
  %v1489 = vsel %vm138, %v1475, -inf
  %1490 = vmax.xlane.f32.xlu0 %v1489
  %v1491 = vpop.xlane.xlu0 %1490
  %v1492 = vsel %vm138, %v1476, -inf
  %1493 = vmax.xlane.f32.xlu0 %v1492
  %v1494 = vpop.xlane.xlu0 %1493
  %v1495 = vsel %vm138, %v1477, -inf
  %1496 = vmax.xlane.f32.xlu0 %v1495
  %v1497 = vpop.xlane.xlu0 %1496
  %v1498 = vsel %vm138, %v1478, -inf
  %1499 = vmax.xlane.f32.xlu0 %v1498
  %v1500 = vpop.xlane.xlu0 %1499
  %v1501 = vsel %vm138, %v1479, -inf
  %1502 = vmax.xlane.f32.xlu0 %v1501
  %v1503 = vpop.xlane.xlu0 %1502
  %v1504 = vsub.f32 %v1472, %v1482
  %v1505 = vsub.f32 %v1473, %v1485
  %v1506 = vsub.f32 %v1474, %v1488
  %v1507 = vsub.f32 %v1475, %v1491
  %v1508 = vsub.f32 %v1476, %v1494
  %v1509 = vsub.f32 %v1477, %v1497
  %v1510 = vsub.f32 %v1478, %v1500
  %v1511 = vsub.f32 %v1479, %v1503
  %v1512 = vmul.f32 %v1504, 1.442695
  %v1513 = vpow.pop %v1512
  %v1514 = vmul.f32 %v1505, 1.442695
  %v1515 = vpow.pop %v1514
  %v1516 = vmul.f32 %v1506, 1.442695
  %v1517 = vpow.pop %v1516
  %v1518 = vmul.f32 %v1507, 1.442695
  %v1519 = vpow.pop %v1518
  %v1520 = vmul.f32 %v1508, 1.442695
  %v1521 = vpow.pop %v1520
  %v1522 = vmul.f32 %v1509, 1.442695
  %v1523 = vpow.pop %v1522
  %v1524 = vmul.f32 %v1510, 1.442695
  %v1525 = vpow.pop %v1524
  %v1526 = vmul.f32 %v1511, 1.442695
  %v1527 = vpow.pop %v1526
  %v1528 = vmul.f32 %v1513, %v46
  %v1529 = vmul.f32 %v1515, %v47
  %v1530 = vmul.f32 %v1517, %v48
  %v1531 = vmul.f32 %v1519, %v49
  %v1532 = vmul.f32 %v1521, %v50
  %v1533 = vmul.f32 %v1523, %v51
  %v1534 = vmul.f32 %v1525, %v52
  %v1535 = vmul.f32 %v1527, %v53
  %v1536 = vsel %vm138, %v1528, 0.0
  %1537 = vadd.xlane.f32.xlu0 %v1536
  %v1538 = vpop.xlane.xlu0 %1537
  %v1539 = vsel %vm138, %v1529, 0.0
  %1540 = vadd.xlane.f32.xlu0 %v1539
  %v1541 = vpop.xlane.xlu0 %1540
  %v1542 = vsel %vm138, %v1530, 0.0
  %1543 = vadd.xlane.f32.xlu0 %v1542
  %v1544 = vpop.xlane.xlu0 %1543
  %v1545 = vsel %vm138, %v1531, 0.0
  %1546 = vadd.xlane.f32.xlu0 %v1545
  %v1547 = vpop.xlane.xlu0 %1546
  %v1548 = vsel %vm138, %v1532, 0.0
  %1549 = vadd.xlane.f32.xlu0 %v1548
  %v1550 = vpop.xlane.xlu0 %1549
  %v1551 = vsel %vm138, %v1533, 0.0
  %1552 = vadd.xlane.f32.xlu0 %v1551
  %v1553 = vpop.xlane.xlu0 %1552
  %v1554 = vsel %vm138, %v1534, 0.0
  %1555 = vadd.xlane.f32.xlu0 %v1554
  %v1556 = vpop.xlane.xlu0 %1555
  %v1557 = vsel %vm138, %v1535, 0.0
  %1558 = vadd.xlane.f32.xlu0 %v1557
  %v1559 = vpop.xlane.xlu0 %1558
  %v1560 = vmax.f32 %v1538, 1e-30
  %v1561 = vmax.f32 %v1541, 1e-30
  %v1562 = vmax.f32 %v1544, 1e-30
  %v1563 = vmax.f32 %v1547, 1e-30
  %v1564 = vmax.f32 %v1550, 1e-30
  %v1565 = vmax.f32 %v1553, 1e-30
  %v1566 = vmax.f32 %v1556, 1e-30
  %v1567 = vmax.f32 %v1559, 1e-30
  %v1568 = vrcp.pop %v1560
  %v1569 = vrcp.pop %v1561
  %v1570 = vrcp.pop %v1562
  %v1571 = vrcp.pop %v1563
  %v1572 = vrcp.pop %v1564
  %v1573 = vrcp.pop %v1565
  %v1574 = vrcp.pop %v1566
  %v1575 = vrcp.pop %v1567
  %v1576 = vmul.f32 %v1528, %v1568
  %v1577 = vmul.f32 %v1529, %v1569
  %v1578 = vmul.f32 %v1530, %v1570
  %v1579 = vmul.f32 %v1531, %v1571
  %v1580 = vmul.f32 %v1532, %v1572
  %v1581 = vmul.f32 %v1533, %v1573
  %v1582 = vmul.f32 %v1534, %v1574
  %v1583 = vmul.f32 %v1535, %v1575
  %v1584 = vpack.c.bf16 %v1577, %v1576
  %v1585 = vpack.c.bf16 %v1579, %v1578
  %v1586 = vpack.c.bf16 %v1581, %v1580
  %v1587 = vpack.c.bf16 %v1583, %v1582
  %1588 = vrot.lane.b32.xlu0 %v1327, 96
  %v1589 = vpop.permute.xlu0 %1588
  %1590 = vrot.lane.b32.xlu0 %v1328, 96
  %v1591 = vpop.permute.xlu0 %1590
  %1592 = vrot.lane.b32.xlu0 %v1329, 96
  %v1593 = vpop.permute.xlu0 %1592
  %1594 = vrot.lane.b32.xlu0 %v1330, 96
  %v1595 = vpop.permute.xlu0 %1594
  %v1601 = vsel %vm138, %v1584, 0
  %v1604 = vsel %vm138, %v1585, 0
  %v1607 = vsel %vm138, %v1586, 0
  %v1610 = vsel %vm138, %v1587, 0
  %1612 = vmatprep.subr.bf16.mxu0 0
  %1613 = vmatpush1.bf16.msra.mxu0 0
  %1614 = vmatprep.subr.bf16.mxu0 0
  %1615 = vmatpush1.bf16.msra.mxu0 0
  %1616 = vmatprep.subr.bf16.mxu0 0
  %1617 = vmatpush1.bf16.msra.mxu0 0
  %1618 = vmatprep.subr.bf16.mxu0 0
  %1619 = vmatpush1.bf16.msra.mxu0 0
  %1620 = vmatprep.subr.bf16.mxu0 0
  %1621 = vmatpush1.bf16.msra.mxu0 %v1595
  %1622 = vmatprep.subr.bf16.mxu0 0
  %1623 = vmatpush1.bf16.msra.mxu0 %v1593
  %1624 = vmatprep.subr.bf16.mxu0 0
  %1625 = vmatpush1.bf16.msra.mxu0 %v1591
  %1626 = vmatprep.subr.bf16.mxu0 0
  %1627 = vmatpush1.bf16.msra.mxu0 %v1589
  %1628 = vmatprep.subr.bf16.mxu0 0
  %1629 = vmatpush2.bf16.msra.mxu0 0
  %1630 = vmatprep.subr.bf16.mxu0 0
  %1631 = vmatpush2.bf16.msra.mxu0 0
  %1632 = vmatprep.subr.bf16.mxu0 0
  %1633 = vmatpush2.bf16.msra.mxu0 0
  %1634 = vmatprep.subr.bf16.mxu0 0
  %1635 = vmatpush2.bf16.msra.mxu0 0
  %1636 = vmatprep.subr.bf16.mxu0 0
  %1637 = vmatpush2.bf16.msra.mxu0 0
  %1638 = vmatprep.subr.bf16.mxu0 0
  %1639 = vmatpush2.bf16.msra.mxu0 0
  %1640 = vmatprep.subr.bf16.mxu0 0
  %1641 = vmatpush2.bf16.msra.mxu0 0
  %1642 = vmatprep.subr.bf16.mxu0 0
  %1643 = vmatpush2.bf16.msra.mxu0 0
  %1644 = vmatprep.mubr.bf16.mxu0 0
  %1645 = vmatmul.mubr.bf16.gmra.mxu0 %v1601
  %v1646 = vpop.f32.mrf.mxu0
  %v1647 = vadd.f32 0.0, %v1646
  %v1648 = vpop.f32.mrf.mxu0
  %v1649 = vpop.f32.mrf.mxu0
  %v1650 = vadd.f32 0.0, %v1649
  %v1651 = vpop.f32.mrf.mxu0
  %1652 = vmatprep.mubr.bf16.mxu0 0
  %1653 = vmatmul.mubr.bf16.gmra.mxu0 %v1604
  %v1654 = vpop.f32.mrf.mxu0
  %v1655 = vadd.f32 0.0, %v1654
  %v1656 = vpop.f32.mrf.mxu0
  %v1657 = vpop.f32.mrf.mxu0
  %v1658 = vadd.f32 0.0, %v1657
  %v1659 = vpop.f32.mrf.mxu0
  %1660 = vmatprep.mubr.bf16.mxu0 0
  %1661 = vmatmul.mubr.bf16.gmra.mxu0 %v1607
  %v1662 = vpop.f32.mrf.mxu0
  %v1663 = vadd.f32 0.0, %v1662
  %v1664 = vpop.f32.mrf.mxu0
  %v1665 = vpop.f32.mrf.mxu0
  %v1666 = vadd.f32 0.0, %v1665
  %v1667 = vpop.f32.mrf.mxu0
  %1668 = vmatprep.mubr.bf16.mxu0 0
  %1669 = vmatmul.mubr.bf16.gmra.mxu0 %v1610
  %v1670 = vpop.f32.mrf.mxu0
  %v1671 = vadd.f32 0.0, %v1670
  %v1672 = vpop.f32.mrf.mxu0
  %v1673 = vpop.f32.mrf.mxu0
  %v1674 = vadd.f32 0.0, %v1673
  %v1675 = vpop.f32.mrf.mxu0
  %1676 = vdwg.mxu0
  %1677 = vset.pattern.permute.xlu0 6
  %1678 = vperm.xlu0 %1677, %v21
  %v1679 = vpop.permute.xlu0 %1678
  %1681 = vset.pattern.permute.xlu0 6
  %1682 = vperm.xlu0 %1681, %v22
  %v1683 = vpop.permute.xlu0 %1682
  %1685 = vset.pattern.permute.xlu0 6
  %1686 = vperm.xlu0 %1685, %v23
  %v1687 = vpop.permute.xlu0 %1686
  %1689 = vset.pattern.permute.xlu0 6
  %1690 = vperm.xlu0 %1689, %v24
  %v1691 = vpop.permute.xlu0 %1690
  %1693 = vset.pattern.permute.xlu0 6
  %1694 = vperm.xlu0 %1693, %v25
  %v1695 = vpop.permute.xlu0 %1694
  %1697 = vset.pattern.permute.xlu0 6
  %1698 = vperm.xlu0 %1697, %v26
  %v1699 = vpop.permute.xlu0 %1698
  %1701 = vset.pattern.permute.xlu0 6
  %1702 = vperm.xlu0 %1701, %v27
  %v1703 = vpop.permute.xlu0 %1702
  %1705 = vset.pattern.permute.xlu0 6
  %1706 = vperm.xlu0 %1705, %v28
  %v1707 = vpop.permute.xlu0 %1706
  %v1709 = vlaneseq
  %v1710 = vshrl.u32 %v1709, 7
  %v1711 = vsub.s32 6, %v1710
  %v1712 = vrot.slane %v29, %v1711
  %v1713 = vadd.f32 %v1679, %v1712
  %v1714 = vadd.f32 %v1683, %v1712
  %v1715 = vadd.f32 %v1687, %v1712
  %v1716 = vadd.f32 %v1691, %v1712
  %v1717 = vadd.f32 %v1695, %v1712
  %v1718 = vadd.f32 %v1699, %v1712
  %v1719 = vadd.f32 %v1703, %v1712
  %v1720 = vadd.f32 %v1707, %v1712
  %v1721 = vmul.f32 %v1713, 0.2
  %v1722 = vmul.f32 %v1714, 0.2
  %v1723 = vmul.f32 %v1715, 0.2
  %v1724 = vmul.f32 %v1716, 0.2
  %v1725 = vmul.f32 %v1717, 0.2
  %v1726 = vmul.f32 %v1718, 0.2
  %v1727 = vmul.f32 %v1719, 0.2
  %v1728 = vmul.f32 %v1720, 0.2
  %v1729 = vmax.f32 %v1713, %v1721
  %v1730 = vmax.f32 %v1714, %v1722
  %v1731 = vmax.f32 %v1715, %v1723
  %v1732 = vmax.f32 %v1716, %v1724
  %v1733 = vmax.f32 %v1717, %v1725
  %v1734 = vmax.f32 %v1718, %v1726
  %v1735 = vmax.f32 %v1719, %v1727
  %v1736 = vmax.f32 %v1720, %v1728
  %v1737 = vsel %vm54, %v1729, -1e+30
  %v1738 = vsel %vm55, %v1730, -1e+30
  %v1739 = vsel %vm56, %v1731, -1e+30
  %v1740 = vsel %vm57, %v1732, -1e+30
  %v1741 = vsel %vm58, %v1733, -1e+30
  %v1742 = vsel %vm59, %v1734, -1e+30
  %v1743 = vsel %vm60, %v1735, -1e+30
  %v1744 = vsel %vm61, %v1736, -1e+30
  %v1745 = vsel %vm138, %v1737, -inf
  %1746 = vmax.xlane.f32.xlu0 %v1745
  %v1747 = vpop.xlane.xlu0 %1746
  %v1748 = vsel %vm138, %v1738, -inf
  %1749 = vmax.xlane.f32.xlu0 %v1748
  %v1750 = vpop.xlane.xlu0 %1749
  %v1751 = vsel %vm138, %v1739, -inf
  %1752 = vmax.xlane.f32.xlu0 %v1751
  %v1753 = vpop.xlane.xlu0 %1752
  %v1754 = vsel %vm138, %v1740, -inf
  %1755 = vmax.xlane.f32.xlu0 %v1754
  %v1756 = vpop.xlane.xlu0 %1755
  %v1757 = vsel %vm138, %v1741, -inf
  %1758 = vmax.xlane.f32.xlu0 %v1757
  %v1759 = vpop.xlane.xlu0 %1758
  %v1760 = vsel %vm138, %v1742, -inf
  %1761 = vmax.xlane.f32.xlu0 %v1760
  %v1762 = vpop.xlane.xlu0 %1761
  %v1763 = vsel %vm138, %v1743, -inf
  %1764 = vmax.xlane.f32.xlu0 %v1763
  %v1765 = vpop.xlane.xlu0 %1764
  %v1766 = vsel %vm138, %v1744, -inf
  %1767 = vmax.xlane.f32.xlu0 %v1766
  %v1768 = vpop.xlane.xlu0 %1767
  %v1769 = vsub.f32 %v1737, %v1747
  %v1770 = vsub.f32 %v1738, %v1750
  %v1771 = vsub.f32 %v1739, %v1753
  %v1772 = vsub.f32 %v1740, %v1756
  %v1773 = vsub.f32 %v1741, %v1759
  %v1774 = vsub.f32 %v1742, %v1762
  %v1775 = vsub.f32 %v1743, %v1765
  %v1776 = vsub.f32 %v1744, %v1768
  %v1777 = vmul.f32 %v1769, 1.442695
  %v1778 = vpow.pop %v1777
  %v1779 = vmul.f32 %v1770, 1.442695
  %v1780 = vpow.pop %v1779
  %v1781 = vmul.f32 %v1771, 1.442695
  %v1782 = vpow.pop %v1781
  %v1783 = vmul.f32 %v1772, 1.442695
  %v1784 = vpow.pop %v1783
  %v1785 = vmul.f32 %v1773, 1.442695
  %v1786 = vpow.pop %v1785
  %v1787 = vmul.f32 %v1774, 1.442695
  %v1788 = vpow.pop %v1787
  %v1789 = vmul.f32 %v1775, 1.442695
  %v1790 = vpow.pop %v1789
  %v1791 = vmul.f32 %v1776, 1.442695
  %v1792 = vpow.pop %v1791
  %v1793 = vmul.f32 %v1778, %v46
  %v1794 = vmul.f32 %v1780, %v47
  %v1795 = vmul.f32 %v1782, %v48
  %v1796 = vmul.f32 %v1784, %v49
  %v1797 = vmul.f32 %v1786, %v50
  %v1798 = vmul.f32 %v1788, %v51
  %v1799 = vmul.f32 %v1790, %v52
  %v1800 = vmul.f32 %v1792, %v53
  %v1801 = vsel %vm138, %v1793, 0.0
  %1802 = vadd.xlane.f32.xlu0 %v1801
  %v1803 = vpop.xlane.xlu0 %1802
  %v1804 = vsel %vm138, %v1794, 0.0
  %1805 = vadd.xlane.f32.xlu0 %v1804
  %v1806 = vpop.xlane.xlu0 %1805
  %v1807 = vsel %vm138, %v1795, 0.0
  %1808 = vadd.xlane.f32.xlu0 %v1807
  %v1809 = vpop.xlane.xlu0 %1808
  %v1810 = vsel %vm138, %v1796, 0.0
  %1811 = vadd.xlane.f32.xlu0 %v1810
  %v1812 = vpop.xlane.xlu0 %1811
  %v1813 = vsel %vm138, %v1797, 0.0
  %1814 = vadd.xlane.f32.xlu0 %v1813
  %v1815 = vpop.xlane.xlu0 %1814
  %v1816 = vsel %vm138, %v1798, 0.0
  %1817 = vadd.xlane.f32.xlu0 %v1816
  %v1818 = vpop.xlane.xlu0 %1817
  %v1819 = vsel %vm138, %v1799, 0.0
  %1820 = vadd.xlane.f32.xlu0 %v1819
  %v1821 = vpop.xlane.xlu0 %1820
  %v1822 = vsel %vm138, %v1800, 0.0
  %1823 = vadd.xlane.f32.xlu0 %v1822
  %v1824 = vpop.xlane.xlu0 %1823
  %v1825 = vmax.f32 %v1803, 1e-30
  %v1826 = vmax.f32 %v1806, 1e-30
  %v1827 = vmax.f32 %v1809, 1e-30
  %v1828 = vmax.f32 %v1812, 1e-30
  %v1829 = vmax.f32 %v1815, 1e-30
  %v1830 = vmax.f32 %v1818, 1e-30
  %v1831 = vmax.f32 %v1821, 1e-30
  %v1832 = vmax.f32 %v1824, 1e-30
  %v1833 = vrcp.pop %v1825
  %v1834 = vrcp.pop %v1826
  %v1835 = vrcp.pop %v1827
  %v1836 = vrcp.pop %v1828
  %v1837 = vrcp.pop %v1829
  %v1838 = vrcp.pop %v1830
  %v1839 = vrcp.pop %v1831
  %v1840 = vrcp.pop %v1832
  %v1841 = vmul.f32 %v1793, %v1833
  %v1842 = vmul.f32 %v1794, %v1834
  %v1843 = vmul.f32 %v1795, %v1835
  %v1844 = vmul.f32 %v1796, %v1836
  %v1845 = vmul.f32 %v1797, %v1837
  %v1846 = vmul.f32 %v1798, %v1838
  %v1847 = vmul.f32 %v1799, %v1839
  %v1848 = vmul.f32 %v1800, %v1840
  %v1849 = vpack.c.bf16 %v1842, %v1841
  %v1850 = vpack.c.bf16 %v1844, %v1843
  %v1851 = vpack.c.bf16 %v1846, %v1845
  %v1852 = vpack.c.bf16 %v1848, %v1847
  %1853 = vrot.lane.b32.xlu0 %v1327, 64
  %v1854 = vpop.permute.xlu0 %1853
  %1855 = vrot.lane.b32.xlu0 %v1328, 64
  %v1856 = vpop.permute.xlu0 %1855
  %1857 = vrot.lane.b32.xlu0 %v1329, 64
  %v1858 = vpop.permute.xlu0 %1857
  %1859 = vrot.lane.b32.xlu0 %v1330, 64
  %v1860 = vpop.permute.xlu0 %1859
  %v1866 = vsel %vm138, %v1849, 0
  %v1869 = vsel %vm138, %v1850, 0
  %v1872 = vsel %vm138, %v1851, 0
  %v1875 = vsel %vm138, %v1852, 0
  %1877 = vmatprep.subr.bf16.mxu0 0
  %1878 = vmatpush1.bf16.msra.mxu0 0
  %1879 = vmatprep.subr.bf16.mxu0 0
  %1880 = vmatpush1.bf16.msra.mxu0 0
  %1881 = vmatprep.subr.bf16.mxu0 0
  %1882 = vmatpush1.bf16.msra.mxu0 0
  %1883 = vmatprep.subr.bf16.mxu0 0
  %1884 = vmatpush1.bf16.msra.mxu0 0
  %1885 = vmatprep.subr.bf16.mxu0 0
  %1886 = vmatpush1.bf16.msra.mxu0 %v1860
  %1887 = vmatprep.subr.bf16.mxu0 0
  %1888 = vmatpush1.bf16.msra.mxu0 %v1858
  %1889 = vmatprep.subr.bf16.mxu0 0
  %1890 = vmatpush1.bf16.msra.mxu0 %v1856
  %1891 = vmatprep.subr.bf16.mxu0 0
  %1892 = vmatpush1.bf16.msra.mxu0 %v1854
  %1893 = vmatprep.subr.bf16.mxu0 0
  %1894 = vmatpush2.bf16.msra.mxu0 0
  %1895 = vmatprep.subr.bf16.mxu0 0
  %1896 = vmatpush2.bf16.msra.mxu0 0
  %1897 = vmatprep.subr.bf16.mxu0 0
  %1898 = vmatpush2.bf16.msra.mxu0 0
  %1899 = vmatprep.subr.bf16.mxu0 0
  %1900 = vmatpush2.bf16.msra.mxu0 0
  %1901 = vmatprep.subr.bf16.mxu0 0
  %1902 = vmatpush2.bf16.msra.mxu0 0
  %1903 = vmatprep.subr.bf16.mxu0 0
  %1904 = vmatpush2.bf16.msra.mxu0 0
  %1905 = vmatprep.subr.bf16.mxu0 0
  %1906 = vmatpush2.bf16.msra.mxu0 0
  %1907 = vmatprep.subr.bf16.mxu0 0
  %1908 = vmatpush2.bf16.msra.mxu0 0
  %1909 = vmatprep.mubr.bf16.mxu0 0
  %1910 = vmatmul.mubr.bf16.gmra.mxu0 %v1866
  %v1911 = vpop.f32.mrf.mxu0
  %v1912 = vadd.f32 0.0, %v1911
  %v1913 = vpop.f32.mrf.mxu0
  %v1914 = vpop.f32.mrf.mxu0
  %v1915 = vadd.f32 0.0, %v1914
  %v1916 = vpop.f32.mrf.mxu0
  %1917 = vmatprep.mubr.bf16.mxu0 0
  %1918 = vmatmul.mubr.bf16.gmra.mxu0 %v1869
  %v1919 = vpop.f32.mrf.mxu0
  %v1920 = vadd.f32 0.0, %v1919
  %v1921 = vpop.f32.mrf.mxu0
  %v1922 = vpop.f32.mrf.mxu0
  %v1923 = vadd.f32 0.0, %v1922
  %v1924 = vpop.f32.mrf.mxu0
  %1925 = vmatprep.mubr.bf16.mxu0 0
  %1926 = vmatmul.mubr.bf16.gmra.mxu0 %v1872
  %v1927 = vpop.f32.mrf.mxu0
  %v1928 = vadd.f32 0.0, %v1927
  %v1929 = vpop.f32.mrf.mxu0
  %v1930 = vpop.f32.mrf.mxu0
  %v1931 = vadd.f32 0.0, %v1930
  %v1932 = vpop.f32.mrf.mxu0
  %1933 = vmatprep.mubr.bf16.mxu0 0
  %1934 = vmatmul.mubr.bf16.gmra.mxu0 %v1875
  %v1935 = vpop.f32.mrf.mxu0
  %v1936 = vadd.f32 0.0, %v1935
  %v1937 = vpop.f32.mrf.mxu0
  %v1938 = vpop.f32.mrf.mxu0
  %v1939 = vadd.f32 0.0, %v1938
  %v1940 = vpop.f32.mrf.mxu0
  %1941 = vdwg.mxu0
  %1942 = vset.pattern.permute.xlu0 7
  %1943 = vperm.xlu0 %1942, %v21
  %v1944 = vpop.permute.xlu0 %1943
  %1946 = vset.pattern.permute.xlu0 7
  %1947 = vperm.xlu0 %1946, %v22
  %v1948 = vpop.permute.xlu0 %1947
  %1950 = vset.pattern.permute.xlu0 7
  %1951 = vperm.xlu0 %1950, %v23
  %v1952 = vpop.permute.xlu0 %1951
  %1954 = vset.pattern.permute.xlu0 7
  %1955 = vperm.xlu0 %1954, %v24
  %v1956 = vpop.permute.xlu0 %1955
  %1958 = vset.pattern.permute.xlu0 7
  %1959 = vperm.xlu0 %1958, %v25
  %v1960 = vpop.permute.xlu0 %1959
  %1962 = vset.pattern.permute.xlu0 7
  %1963 = vperm.xlu0 %1962, %v26
  %v1964 = vpop.permute.xlu0 %1963
  %1966 = vset.pattern.permute.xlu0 7
  %1967 = vperm.xlu0 %1966, %v27
  %v1968 = vpop.permute.xlu0 %1967
  %1970 = vset.pattern.permute.xlu0 7
  %1971 = vperm.xlu0 %1970, %v28
  %v1972 = vpop.permute.xlu0 %1971
  %v1974 = vlaneseq
  %v1975 = vshrl.u32 %v1974, 7
  %v1976 = vsub.s32 7, %v1975
  %v1977 = vrot.slane %v29, %v1976
  %v1978 = vadd.f32 %v1944, %v1977
  %v1979 = vadd.f32 %v1948, %v1977
  %v1980 = vadd.f32 %v1952, %v1977
  %v1981 = vadd.f32 %v1956, %v1977
  %v1982 = vadd.f32 %v1960, %v1977
  %v1983 = vadd.f32 %v1964, %v1977
  %v1984 = vadd.f32 %v1968, %v1977
  %v1985 = vadd.f32 %v1972, %v1977
  %v1986 = vmul.f32 %v1978, 0.2
  %v1987 = vmul.f32 %v1979, 0.2
  %v1988 = vmul.f32 %v1980, 0.2
  %v1989 = vmul.f32 %v1981, 0.2
  %v1990 = vmul.f32 %v1982, 0.2
  %v1991 = vmul.f32 %v1983, 0.2
  %v1992 = vmul.f32 %v1984, 0.2
  %v1993 = vmul.f32 %v1985, 0.2
  %v1994 = vmax.f32 %v1978, %v1986
  %v1995 = vmax.f32 %v1979, %v1987
  %v1996 = vmax.f32 %v1980, %v1988
  %v1997 = vmax.f32 %v1981, %v1989
  %v1998 = vmax.f32 %v1982, %v1990
  %v1999 = vmax.f32 %v1983, %v1991
  %v2000 = vmax.f32 %v1984, %v1992
  %v2001 = vmax.f32 %v1985, %v1993
  %v2002 = vsel %vm54, %v1994, -1e+30
  %v2003 = vsel %vm55, %v1995, -1e+30
  %v2004 = vsel %vm56, %v1996, -1e+30
  %v2005 = vsel %vm57, %v1997, -1e+30
  %v2006 = vsel %vm58, %v1998, -1e+30
  %v2007 = vsel %vm59, %v1999, -1e+30
  %v2008 = vsel %vm60, %v2000, -1e+30
  %v2009 = vsel %vm61, %v2001, -1e+30
  %v2010 = vsel %vm138, %v2002, -inf
  %2011 = vmax.xlane.f32.xlu0 %v2010
  %v2012 = vpop.xlane.xlu0 %2011
  %v2013 = vsel %vm138, %v2003, -inf
  %2014 = vmax.xlane.f32.xlu0 %v2013
  %v2015 = vpop.xlane.xlu0 %2014
  %v2016 = vsel %vm138, %v2004, -inf
  %2017 = vmax.xlane.f32.xlu0 %v2016
  %v2018 = vpop.xlane.xlu0 %2017
  %v2019 = vsel %vm138, %v2005, -inf
  %2020 = vmax.xlane.f32.xlu0 %v2019
  %v2021 = vpop.xlane.xlu0 %2020
  %v2022 = vsel %vm138, %v2006, -inf
  %2023 = vmax.xlane.f32.xlu0 %v2022
  %v2024 = vpop.xlane.xlu0 %2023
  %v2025 = vsel %vm138, %v2007, -inf
  %2026 = vmax.xlane.f32.xlu0 %v2025
  %v2027 = vpop.xlane.xlu0 %2026
  %v2028 = vsel %vm138, %v2008, -inf
  %2029 = vmax.xlane.f32.xlu0 %v2028
  %v2030 = vpop.xlane.xlu0 %2029
  %v2031 = vsel %vm138, %v2009, -inf
  %2032 = vmax.xlane.f32.xlu0 %v2031
  %v2033 = vpop.xlane.xlu0 %2032
  %v2034 = vsub.f32 %v2002, %v2012
  %v2035 = vsub.f32 %v2003, %v2015
  %v2036 = vsub.f32 %v2004, %v2018
  %v2037 = vsub.f32 %v2005, %v2021
  %v2038 = vsub.f32 %v2006, %v2024
  %v2039 = vsub.f32 %v2007, %v2027
  %v2040 = vsub.f32 %v2008, %v2030
  %v2041 = vsub.f32 %v2009, %v2033
  %v2042 = vmul.f32 %v2034, 1.442695
  %v2043 = vpow.pop %v2042
  %v2044 = vmul.f32 %v2035, 1.442695
  %v2045 = vpow.pop %v2044
  %v2046 = vmul.f32 %v2036, 1.442695
  %v2047 = vpow.pop %v2046
  %v2048 = vmul.f32 %v2037, 1.442695
  %v2049 = vpow.pop %v2048
  %v2050 = vmul.f32 %v2038, 1.442695
  %v2051 = vpow.pop %v2050
  %v2052 = vmul.f32 %v2039, 1.442695
  %v2053 = vpow.pop %v2052
  %v2054 = vmul.f32 %v2040, 1.442695
  %v2055 = vpow.pop %v2054
  %v2056 = vmul.f32 %v2041, 1.442695
  %v2057 = vpow.pop %v2056
  %v2058 = vmul.f32 %v2043, %v46
  %v2059 = vmul.f32 %v2045, %v47
  %v2060 = vmul.f32 %v2047, %v48
  %v2061 = vmul.f32 %v2049, %v49
  %v2062 = vmul.f32 %v2051, %v50
  %v2063 = vmul.f32 %v2053, %v51
  %v2064 = vmul.f32 %v2055, %v52
  %v2065 = vmul.f32 %v2057, %v53
  %v2066 = vsel %vm138, %v2058, 0.0
  %2067 = vadd.xlane.f32.xlu0 %v2066
  %v2068 = vpop.xlane.xlu0 %2067
  %v2069 = vsel %vm138, %v2059, 0.0
  %2070 = vadd.xlane.f32.xlu0 %v2069
  %v2071 = vpop.xlane.xlu0 %2070
  %v2072 = vsel %vm138, %v2060, 0.0
  %2073 = vadd.xlane.f32.xlu0 %v2072
  %v2074 = vpop.xlane.xlu0 %2073
  %v2075 = vsel %vm138, %v2061, 0.0
  %2076 = vadd.xlane.f32.xlu0 %v2075
  %v2077 = vpop.xlane.xlu0 %2076
  %v2078 = vsel %vm138, %v2062, 0.0
  %2079 = vadd.xlane.f32.xlu0 %v2078
  %v2080 = vpop.xlane.xlu0 %2079
  %v2081 = vsel %vm138, %v2063, 0.0
  %2082 = vadd.xlane.f32.xlu0 %v2081
  %v2083 = vpop.xlane.xlu0 %2082
  %v2084 = vsel %vm138, %v2064, 0.0
  %2085 = vadd.xlane.f32.xlu0 %v2084
  %v2086 = vpop.xlane.xlu0 %2085
  %v2087 = vsel %vm138, %v2065, 0.0
  %2088 = vadd.xlane.f32.xlu0 %v2087
  %v2089 = vpop.xlane.xlu0 %2088
  %v2090 = vmax.f32 %v2068, 1e-30
  %v2091 = vmax.f32 %v2071, 1e-30
  %v2092 = vmax.f32 %v2074, 1e-30
  %v2093 = vmax.f32 %v2077, 1e-30
  %v2094 = vmax.f32 %v2080, 1e-30
  %v2095 = vmax.f32 %v2083, 1e-30
  %v2096 = vmax.f32 %v2086, 1e-30
  %v2097 = vmax.f32 %v2089, 1e-30
  %v2098 = vrcp.pop %v2090
  %v2099 = vrcp.pop %v2091
  %v2100 = vrcp.pop %v2092
  %v2101 = vrcp.pop %v2093
  %v2102 = vrcp.pop %v2094
  %v2103 = vrcp.pop %v2095
  %v2104 = vrcp.pop %v2096
  %v2105 = vrcp.pop %v2097
  %v2106 = vmul.f32 %v2058, %v2098
  %v2107 = vmul.f32 %v2059, %v2099
  %v2108 = vmul.f32 %v2060, %v2100
  %v2109 = vmul.f32 %v2061, %v2101
  %v2110 = vmul.f32 %v2062, %v2102
  %v2111 = vmul.f32 %v2063, %v2103
  %v2112 = vmul.f32 %v2064, %v2104
  %v2113 = vmul.f32 %v2065, %v2105
  %v2114 = vpack.c.bf16 %v2107, %v2106
  %v2115 = vpack.c.bf16 %v2109, %v2108
  %v2116 = vpack.c.bf16 %v2111, %v2110
  %v2117 = vpack.c.bf16 %v2113, %v2112
  %2118 = vrot.lane.b32.xlu0 %v1327, 32
  %v2119 = vpop.permute.xlu0 %2118
  %2120 = vrot.lane.b32.xlu0 %v1328, 32
  %v2121 = vpop.permute.xlu0 %2120
  %2122 = vrot.lane.b32.xlu0 %v1329, 32
  %v2123 = vpop.permute.xlu0 %2122
  %2124 = vrot.lane.b32.xlu0 %v1330, 32
  %v2125 = vpop.permute.xlu0 %2124
  %v2131 = vsel %vm138, %v2114, 0
  %v2134 = vsel %vm138, %v2115, 0
  %v2137 = vsel %vm138, %v2116, 0
  %v2140 = vsel %vm138, %v2117, 0
  %2142 = vmatprep.subr.bf16.mxu0 0
  %2143 = vmatpush1.bf16.msra.mxu0 0
  %2144 = vmatprep.subr.bf16.mxu0 0
  %2145 = vmatpush1.bf16.msra.mxu0 0
  %2146 = vmatprep.subr.bf16.mxu0 0
  %2147 = vmatpush1.bf16.msra.mxu0 0
  %2148 = vmatprep.subr.bf16.mxu0 0
  %2149 = vmatpush1.bf16.msra.mxu0 0
  %2150 = vmatprep.subr.bf16.mxu0 0
  %2151 = vmatpush1.bf16.msra.mxu0 %v2125
  %2152 = vmatprep.subr.bf16.mxu0 0
  %2153 = vmatpush1.bf16.msra.mxu0 %v2123
  %2154 = vmatprep.subr.bf16.mxu0 0
  %2155 = vmatpush1.bf16.msra.mxu0 %v2121
  %2156 = vmatprep.subr.bf16.mxu0 0
  %2157 = vmatpush1.bf16.msra.mxu0 %v2119
  %2158 = vmatprep.subr.bf16.mxu0 0
  %2159 = vmatpush2.bf16.msra.mxu0 0
  %2160 = vmatprep.subr.bf16.mxu0 0
  %2161 = vmatpush2.bf16.msra.mxu0 0
  %2162 = vmatprep.subr.bf16.mxu0 0
  %2163 = vmatpush2.bf16.msra.mxu0 0
  %2164 = vmatprep.subr.bf16.mxu0 0
  %2165 = vmatpush2.bf16.msra.mxu0 0
  %2166 = vmatprep.subr.bf16.mxu0 0
  %2167 = vmatpush2.bf16.msra.mxu0 0
  %2168 = vmatprep.subr.bf16.mxu0 0
  %2169 = vmatpush2.bf16.msra.mxu0 0
  %2170 = vmatprep.subr.bf16.mxu0 0
  %2171 = vmatpush2.bf16.msra.mxu0 0
  %2172 = vmatprep.subr.bf16.mxu0 0
  %2173 = vmatpush2.bf16.msra.mxu0 0
  %2174 = vmatprep.mubr.bf16.mxu0 0
  %2175 = vmatmul.mubr.bf16.gmra.mxu0 %v2131
  %v2176 = vpop.f32.mrf.mxu0
  %v2177 = vadd.f32 0.0, %v2176
  %v2178 = vpop.f32.mrf.mxu0
  %v2179 = vpop.f32.mrf.mxu0
  %v2180 = vadd.f32 0.0, %v2179
  %v2181 = vpop.f32.mrf.mxu0
  %2182 = vmatprep.mubr.bf16.mxu0 0
  %2183 = vmatmul.mubr.bf16.gmra.mxu0 %v2134
  %v2184 = vpop.f32.mrf.mxu0
  %v2185 = vadd.f32 0.0, %v2184
  %v2186 = vpop.f32.mrf.mxu0
  %v2187 = vpop.f32.mrf.mxu0
  %v2188 = vadd.f32 0.0, %v2187
  %v2189 = vpop.f32.mrf.mxu0
  %2190 = vmatprep.mubr.bf16.mxu0 0
  %2191 = vmatmul.mubr.bf16.gmra.mxu0 %v2137
  %v2192 = vpop.f32.mrf.mxu0
  %v2193 = vadd.f32 0.0, %v2192
  %v2194 = vpop.f32.mrf.mxu0
  %v2195 = vpop.f32.mrf.mxu0
  %v2196 = vadd.f32 0.0, %v2195
  %v2197 = vpop.f32.mrf.mxu0
  %2198 = vmatprep.mubr.bf16.mxu0 0
  %2199 = vmatmul.mubr.bf16.gmra.mxu0 %v2140
  %v2200 = vpop.f32.mrf.mxu0
  %v2201 = vadd.f32 0.0, %v2200
  %v2202 = vpop.f32.mrf.mxu0
  %v2203 = vpop.f32.mrf.mxu0
  %v2204 = vadd.f32 0.0, %v2203
  %v2205 = vpop.f32.mrf.mxu0
  %2206 = vdwg.mxu0
  %2215 = vrot.lane.b32.xlu0 %v583, 32
  %v2216 = vpop.permute.xlu0 %2215
  %2217 = vrot.lane.b32.xlu0 %v586, 32
  %v2218 = vpop.permute.xlu0 %2217
  %2219 = vrot.lane.b32.xlu0 %v591, 32
  %v2220 = vpop.permute.xlu0 %2219
  %2221 = vrot.lane.b32.xlu0 %v594, 32
  %v2222 = vpop.permute.xlu0 %2221
  %2223 = vrot.lane.b32.xlu0 %v599, 32
  %v2224 = vpop.permute.xlu0 %2223
  %2225 = vrot.lane.b32.xlu0 %v602, 32
  %v2226 = vpop.permute.xlu0 %2225
  %2227 = vrot.lane.b32.xlu0 %v607, 32
  %v2228 = vpop.permute.xlu0 %2227
  %2229 = vrot.lane.b32.xlu0 %v610, 32
  %v2230 = vpop.permute.xlu0 %2229
  %2247 = vrot.lane.b32.xlu0 %v848, 64
  %v2248 = vpop.permute.xlu0 %2247
  %2249 = vrot.lane.b32.xlu0 %v851, 64
  %v2250 = vpop.permute.xlu0 %2249
  %2251 = vrot.lane.b32.xlu0 %v856, 64
  %v2252 = vpop.permute.xlu0 %2251
  %2253 = vrot.lane.b32.xlu0 %v859, 64
  %v2254 = vpop.permute.xlu0 %2253
  %2255 = vrot.lane.b32.xlu0 %v864, 64
  %v2256 = vpop.permute.xlu0 %2255
  %2257 = vrot.lane.b32.xlu0 %v867, 64
  %v2258 = vpop.permute.xlu0 %2257
  %2259 = vrot.lane.b32.xlu0 %v872, 64
  %v2260 = vpop.permute.xlu0 %2259
  %2261 = vrot.lane.b32.xlu0 %v875, 64
  %v2262 = vpop.permute.xlu0 %2261
  %2279 = vrot.lane.b32.xlu0 %v1113, 96
  %v2280 = vpop.permute.xlu0 %2279
  %2281 = vrot.lane.b32.xlu0 %v1116, 96
  %v2282 = vpop.permute.xlu0 %2281
  %2283 = vrot.lane.b32.xlu0 %v1121, 96
  %v2284 = vpop.permute.xlu0 %2283
  %2285 = vrot.lane.b32.xlu0 %v1124, 96
  %v2286 = vpop.permute.xlu0 %2285
  %2287 = vrot.lane.b32.xlu0 %v1129, 96
  %v2288 = vpop.permute.xlu0 %2287
  %2289 = vrot.lane.b32.xlu0 %v1132, 96
  %v2290 = vpop.permute.xlu0 %2289
  %2291 = vrot.lane.b32.xlu0 %v1137, 96
  %v2292 = vpop.permute.xlu0 %2291
  %2293 = vrot.lane.b32.xlu0 %v1140, 96
  %v2294 = vpop.permute.xlu0 %2293
  %2311 = vrot.lane.b32.xlu0 %v1647, 32
  %v2312 = vpop.permute.xlu0 %2311
  %2313 = vrot.lane.b32.xlu0 %v1650, 32
  %v2314 = vpop.permute.xlu0 %2313
  %2315 = vrot.lane.b32.xlu0 %v1655, 32
  %v2316 = vpop.permute.xlu0 %2315
  %2317 = vrot.lane.b32.xlu0 %v1658, 32
  %v2318 = vpop.permute.xlu0 %2317
  %2319 = vrot.lane.b32.xlu0 %v1663, 32
  %v2320 = vpop.permute.xlu0 %2319
  %2321 = vrot.lane.b32.xlu0 %v1666, 32
  %v2322 = vpop.permute.xlu0 %2321
  %2323 = vrot.lane.b32.xlu0 %v1671, 32
  %v2324 = vpop.permute.xlu0 %2323
  %2325 = vrot.lane.b32.xlu0 %v1674, 32
  %v2326 = vpop.permute.xlu0 %2325
  %2343 = vrot.lane.b32.xlu0 %v1912, 64
  %v2344 = vpop.permute.xlu0 %2343
  %2345 = vrot.lane.b32.xlu0 %v1915, 64
  %v2346 = vpop.permute.xlu0 %2345
  %2347 = vrot.lane.b32.xlu0 %v1920, 64
  %v2348 = vpop.permute.xlu0 %2347
  %2349 = vrot.lane.b32.xlu0 %v1923, 64
  %v2350 = vpop.permute.xlu0 %2349
  %2351 = vrot.lane.b32.xlu0 %v1928, 64
  %v2352 = vpop.permute.xlu0 %2351
  %2353 = vrot.lane.b32.xlu0 %v1931, 64
  %v2354 = vpop.permute.xlu0 %2353
  %2355 = vrot.lane.b32.xlu0 %v1936, 64
  %v2356 = vpop.permute.xlu0 %2355
  %2357 = vrot.lane.b32.xlu0 %v1939, 64
  %v2358 = vpop.permute.xlu0 %2357
  %2375 = vrot.lane.b32.xlu0 %v2177, 96
  %v2376 = vpop.permute.xlu0 %2375
  %2377 = vrot.lane.b32.xlu0 %v2180, 96
  %v2378 = vpop.permute.xlu0 %2377
  %2379 = vrot.lane.b32.xlu0 %v2185, 96
  %v2380 = vpop.permute.xlu0 %2379
  %2381 = vrot.lane.b32.xlu0 %v2188, 96
  %v2382 = vpop.permute.xlu0 %2381
  %2383 = vrot.lane.b32.xlu0 %v2193, 96
  %v2384 = vpop.permute.xlu0 %2383
  %2385 = vrot.lane.b32.xlu0 %v2196, 96
  %v2386 = vpop.permute.xlu0 %2385
  %2387 = vrot.lane.b32.xlu0 %v2201, 96
  %v2388 = vpop.permute.xlu0 %2387
  %2389 = vrot.lane.b32.xlu0 %v2204, 96
  %v2390 = vpop.permute.xlu0 %2389
  %vm2399 = vcmask 261120
  %v2400 = vsel %vm2399, %v318, %v2216
  %v2401 = vsel %vm2399, %v321, %v2218
  %v2402 = vsel %vm2399, %v326, %v2220
  %v2403 = vsel %vm2399, %v329, %v2222
  %v2404 = vsel %vm2399, %v334, %v2224
  %v2405 = vsel %vm2399, %v337, %v2226
  %v2406 = vsel %vm2399, %v342, %v2228
  %v2407 = vsel %vm2399, %v345, %v2230
  %v2408 = vsel %vm138, %v2400, %v2248
  %v2409 = vsel %vm138, %v2401, %v2250
  %v2410 = vsel %vm138, %v2402, %v2252
  %v2411 = vsel %vm138, %v2403, %v2254
  %v2412 = vsel %vm138, %v2404, %v2256
  %v2413 = vsel %vm138, %v2405, %v2258
  %v2414 = vsel %vm138, %v2406, %v2260
  %v2415 = vsel %vm138, %v2407, %v2262
  %vm2416 = vcmask 785408
  %v2417 = vsel %vm2416, %v2408, %v2280
  %v2418 = vsel %vm2416, %v2409, %v2282
  %v2419 = vsel %vm2416, %v2410, %v2284
  %v2420 = vsel %vm2416, %v2411, %v2286
  %v2421 = vsel %vm2416, %v2412, %v2288
  %v2422 = vsel %vm2416, %v2413, %v2290
  %v2423 = vsel %vm2416, %v2414, %v2292
  %v2424 = vsel %vm2416, %v2415, %v2294
  %v2425 = vsel %vm2399, %v1382, %v2312
  %v2426 = vsel %vm2399, %v1385, %v2314
  %v2427 = vsel %vm2399, %v1390, %v2316
  %v2428 = vsel %vm2399, %v1393, %v2318
  %v2429 = vsel %vm2399, %v1398, %v2320
  %v2430 = vsel %vm2399, %v1401, %v2322
  %v2431 = vsel %vm2399, %v1406, %v2324
  %v2432 = vsel %vm2399, %v1409, %v2326
  %v2433 = vsel %vm138, %v2425, %v2344
  %v2434 = vsel %vm138, %v2426, %v2346
  %v2435 = vsel %vm138, %v2427, %v2348
  %v2436 = vsel %vm138, %v2428, %v2350
  %v2437 = vsel %vm138, %v2429, %v2352
  %v2438 = vsel %vm138, %v2430, %v2354
  %v2439 = vsel %vm138, %v2431, %v2356
  %v2440 = vsel %vm138, %v2432, %v2358
  %v2441 = vsel %vm2416, %v2433, %v2376
  %v2442 = vsel %vm2416, %v2434, %v2378
  %v2443 = vsel %vm2416, %v2435, %v2380
  %v2444 = vsel %vm2416, %v2436, %v2382
  %v2445 = vsel %vm2416, %v2437, %v2384
  %v2446 = vsel %vm2416, %v2438, %v2386
  %v2447 = vsel %vm2416, %v2439, %v2388
  %v2448 = vsel %vm2416, %v2440, %v2390
  %v2449 = vld [vmem:[%s4] sm:$0x3]
  %v2451 = vlaneseq
  %v2452 = vshrl.u32 %v2451, 7
  %v2453 = vsub.s32 0, %v2452
  %v2454 = vrot.slane %v2449, %v2453
  %v2455 = vlaneseq
  %v2456 = vshrl.u32 %v2455, 7
  %v2457 = vsub.s32 1, %v2456
  %v2458 = vrot.slane %v2449, %v2457
  %v2461 = vadd.f32 %v2417, %v2454
  %v2462 = vadd.f32 %v2441, %v2458
  %v2463 = vadd.f32 %v2418, %v2454
  %v2464 = vadd.f32 %v2442, %v2458
  %v2465 = vadd.f32 %v2419, %v2454
  %v2466 = vadd.f32 %v2443, %v2458
  %v2467 = vadd.f32 %v2420, %v2454
  %v2468 = vadd.f32 %v2444, %v2458
  %v2469 = vadd.f32 %v2421, %v2454
  %v2470 = vadd.f32 %v2445, %v2458
  %v2471 = vadd.f32 %v2422, %v2454
  %v2472 = vadd.f32 %v2446, %v2458
  %v2473 = vadd.f32 %v2423, %v2454
  %v2474 = vadd.f32 %v2447, %v2458
  %v2475 = vadd.f32 %v2424, %v2454
  %v2476 = vadd.f32 %v2448, %v2458
  %v2477 = vmax.f32 %v2461, 0.0
  %v2478 = vmax.f32 %v2462, 0.0
  %v2479 = vmax.f32 %v2463, 0.0
  %v2480 = vmax.f32 %v2464, 0.0
  %v2481 = vmax.f32 %v2465, 0.0
  %v2482 = vmax.f32 %v2466, 0.0
  %v2483 = vmax.f32 %v2467, 0.0
  %v2484 = vmax.f32 %v2468, 0.0
  %v2485 = vmax.f32 %v2469, 0.0
  %v2486 = vmax.f32 %v2470, 0.0
  %v2487 = vmax.f32 %v2471, 0.0
  %v2488 = vmax.f32 %v2472, 0.0
  %v2489 = vmax.f32 %v2473, 0.0
  %v2490 = vmax.f32 %v2474, 0.0
  %v2491 = vmax.f32 %v2475, 0.0
  %v2492 = vmax.f32 %v2476, 0.0
  %v2493 = vpack.c.bf16 %v2479, %v2477
  %v2494 = vpack.c.bf16 %v2480, %v2478
  %v2495 = vpack.c.bf16 %v2483, %v2481
  %v2496 = vpack.c.bf16 %v2484, %v2482
  %v2497 = vpack.c.bf16 %v2487, %v2485
  %v2498 = vpack.c.bf16 %v2488, %v2486
  %v2499 = vpack.c.bf16 %v2491, %v2489
  %v2500 = vpack.c.bf16 %v2492, %v2490
  %v2509 = vunpack.c.l.b16 %v2493
  %v2510 = vunpack.c.l.b16 %v2494
  %v2511 = vunpack.c.h.b16 %v2493
  %v2512 = vunpack.c.h.b16 %v2494
  %v2513 = vunpack.c.l.b16 %v2495
  %v2514 = vunpack.c.l.b16 %v2496
  %v2515 = vunpack.c.h.b16 %v2495
  %v2516 = vunpack.c.h.b16 %v2496
  %v2517 = vunpack.c.l.b16 %v2497
  %v2518 = vunpack.c.l.b16 %v2498
  %v2519 = vunpack.c.h.b16 %v2497
  %v2520 = vunpack.c.h.b16 %v2498
  %v2521 = vunpack.c.l.b16 %v2499
  %v2522 = vunpack.c.l.b16 %v2500
  %v2523 = vunpack.c.h.b16 %v2499
  %v2524 = vunpack.c.h.b16 %v2500
  %v2525 = vpack.c.b16 %v2510, %v2509
  %v2526 = vpack.c.b16 %v2512, %v2511
  %v2527 = vpack.c.b16 %v2514, %v2513
  %v2528 = vpack.c.b16 %v2516, %v2515
  %v2529 = vpack.c.b16 %v2518, %v2517
  %v2530 = vpack.c.b16 %v2520, %v2519
  %v2531 = vpack.c.b16 %v2522, %v2521
  %v2532 = vpack.c.b16 %v2524, %v2523
  %2541 = vst [vmem:[%s5] sm:$0xff] %v2525
  %2542 = vst [vmem:[%s5 + $0x8] sm:$0xff] %v2526
  %2543 = vst [vmem:[%s5 + $0x10] sm:$0xff] %v2527
  %2544 = vst [vmem:[%s5 + $0x18] sm:$0xff] %v2528
  %2545 = vst [vmem:[%s5 + $0x20] sm:$0xff] %v2529
  %2546 = vst [vmem:[%s5 + $0x28] sm:$0xff] %v2530
  %2547 = vst [vmem:[%s5 + $0x30] sm:$0xff] %v2531
  %2548 = vst [vmem:[%s5 + $0x38] sm:$0xff] %v2532
  // Predicated region
  $region22: #{model_forward.5} parent=0 // pred_check
    _
  $region23: #{model_forward.5} parent=0 // pred_check_branch
    %2550 = sbr.rel (0) target = $region25
  $region24: #{model_forward.5} parent=0 // pred_region
    _
  $region25: #{model_forward.5} parent=0 // pred_fallthru
    _
  // Predicated region
  $region26: #{model_forward.5} parent=0 // pred_check
    _
  $region27: #{model_forward.5} parent=0 // pred_check_branch
    %2552 = sbr.rel (0) target = $region29
  $region28: #{model_forward.5} parent=0 // pred_region
    _
  $region29: #{model_forward.5} parent=0 // pred_fallthru
    _

// kernel: model_forward.7
$region0: #{model_forward.7}
  #allocation0 [shape = 'u32[]', space=smem, size = 0x4, offset = 0x4, fixed_abs, tag = 'smem constant byte address 0x4 - core index']
  #allocation1 [shape = 'u32[144,128]{1,0:T(1,128)}', space=vmem, size = 0x12000, scoped, tag = 'internal scratch']
  %s0 = inlined_call_operand.vmem [shape: f32[64,1], index: 0, kind: input, shape index: {}]
  %s1 = inlined_call_operand.vmem [shape: f32[1,64], index: 1, kind: input, shape index: {}]
  %s2 = inlined_call_operand.vmem [shape: bf16[64,32], index: 2, kind: input, shape index: {}]
  %s3 = inlined_call_operand.vmem [shape: bf16[64,64], index: 3, kind: input, shape index: {}]
  %s4 = inlined_call_operand.vmem [shape: f32[1,32], index: 4, kind: input, shape index: {}]
  %s5 = inlined_call_operand.vmem [shape: f32[64,32], index: 5, kind: output, shape index: {}]
  %s6 = sld [smem:[#allocation0]]
  $region30: #{model_forward.7} parent=0
    _
  %s8 = ssub.s32 1, %s6
  %s9 = scalar_select 0, %s8, %s6
  // Predicated region
  $region2: #{model_forward.7} parent=0 // pred_check
    _
  $region3: #{model_forward.7} parent=0 // pred_check_branch
    %11 = sbr.rel (0) target = $region5
  $region4: #{model_forward.7} parent=0 // pred_region
    _
  $region5: #{model_forward.7} parent=0 // pred_fallthru
    _
  // Predicated region
  $region6: #{model_forward.7} parent=0 // pred_check
    _
  $region7: #{model_forward.7} parent=0 // pred_check_branch
    %13 = sbr.rel (0) target = $region9
  $region8: #{model_forward.7} parent=0 // pred_region
    _
  $region9: #{model_forward.7} parent=0 // pred_fallthru
    _
  // Predicated region
  $region10: #{model_forward.7} parent=0 // pred_check
    _
  $region11: #{model_forward.7} parent=0 // pred_check_branch
    %15 = sbr.rel (0) target = $region13
  $region12: #{model_forward.7} parent=0 // pred_region
    _
  $region13: #{model_forward.7} parent=0 // pred_fallthru
    _
  // Predicated region
  $region14: #{model_forward.7} parent=0 // pred_check
    _
  $region15: #{model_forward.7} parent=0 // pred_check_branch
    %17 = sbr.rel (0) target = $region17
  $region16: #{model_forward.7} parent=0 // pred_region
    _
  $region17: #{model_forward.7} parent=0 // pred_fallthru
    _
  // Predicated region
  $region18: #{model_forward.7} parent=0 // pred_check
    _
  $region19: #{model_forward.7} parent=0 // pred_check_branch
    %19 = sbr.rel (0) target = $region21
  $region20: #{model_forward.7} parent=0 // pred_region
    _
  $region21: #{model_forward.7} parent=0 // pred_fallthru
    _
  %v21 = vld [vmem:[%s0] sm:$0xff]
  %v22 = vld [vmem:[%s0 + $0x8] sm:$0xff]
  %v23 = vld [vmem:[%s0 + $0x10] sm:$0xff]
  %v24 = vld [vmem:[%s0 + $0x18] sm:$0xff]
  %v25 = vld [vmem:[%s0 + $0x20] sm:$0xff]
  %v26 = vld [vmem:[%s0 + $0x28] sm:$0xff]
  %v27 = vld [vmem:[%s0 + $0x30] sm:$0xff]
  %v28 = vld [vmem:[%s0 + $0x38] sm:$0xff]
  %v29 = vld [vmem:[%s1] sm:$0x1]
  %v30 = vld [vmem:[%s2] sm:$0xf]
  %v31 = vld [vmem:[%s2 + $0x4] sm:$0xf]
  %v32 = vld [vmem:[%s2 + $0x8] sm:$0xf]
  %v33 = vld [vmem:[%s2 + $0xc] sm:$0xf]
  %v34 = vld [vmem:[%s2 + $0x10] sm:$0xf]
  %v35 = vld [vmem:[%s2 + $0x14] sm:$0xf]
  %v36 = vld [vmem:[%s2 + $0x18] sm:$0xf]
  %v37 = vld [vmem:[%s2 + $0x1c] sm:$0xf]
  %v38 = vld [vmem:[%s3] sm:$0xf]
  %v39 = vld [vmem:[%s3 + $0x4] sm:$0xf]
  %v40 = vld [vmem:[%s3 + $0x8] sm:$0xf]
  %v41 = vld [vmem:[%s3 + $0xc] sm:$0xf]
  %v42 = vld [vmem:[%s3 + $0x10] sm:$0xf]
  %v43 = vld [vmem:[%s3 + $0x14] sm:$0xf]
  %v44 = vld [vmem:[%s3 + $0x18] sm:$0xf]
  %v45 = vld [vmem:[%s3 + $0x1c] sm:$0xf]
  %v46 = vunpack.c.l.bf16 %v38
  %v47 = vunpack.c.l.bf16 %v39
  %v48 = vunpack.c.l.bf16 %v40
  %v49 = vunpack.c.l.bf16 %v41
  %v50 = vunpack.c.l.bf16 %v42
  %v51 = vunpack.c.l.bf16 %v43
  %v52 = vunpack.c.l.bf16 %v44
  %v53 = vunpack.c.l.bf16 %v45
  %vm54 = vcmp.gt.f32.partialorder %v46, 0.0
  %vm55 = vcmp.gt.f32.partialorder %v47, 0.0
  %vm56 = vcmp.gt.f32.partialorder %v48, 0.0
  %vm57 = vcmp.gt.f32.partialorder %v49, 0.0
  %vm58 = vcmp.gt.f32.partialorder %v50, 0.0
  %vm59 = vcmp.gt.f32.partialorder %v51, 0.0
  %vm60 = vcmp.gt.f32.partialorder %v52, 0.0
  %vm61 = vcmp.gt.f32.partialorder %v53, 0.0
  %63 = vset.pattern.permute.xlu0 0
  %64 = vperm.xlu0 %63, %v21
  %v65 = vpop.permute.xlu0 %64
  %68 = vset.pattern.permute.xlu0 0
  %69 = vperm.xlu0 %68, %v22
  %v70 = vpop.permute.xlu0 %69
  %73 = vset.pattern.permute.xlu0 0
  %74 = vperm.xlu0 %73, %v23
  %v75 = vpop.permute.xlu0 %74
  %78 = vset.pattern.permute.xlu0 0
  %79 = vperm.xlu0 %78, %v24
  %v80 = vpop.permute.xlu0 %79
  %83 = vset.pattern.permute.xlu0 0
  %84 = vperm.xlu0 %83, %v25
  %v85 = vpop.permute.xlu0 %84
  %88 = vset.pattern.permute.xlu0 0
  %89 = vperm.xlu0 %88, %v26
  %v90 = vpop.permute.xlu0 %89
  %93 = vset.pattern.permute.xlu0 0
  %94 = vperm.xlu0 %93, %v27
  %v95 = vpop.permute.xlu0 %94
  %98 = vset.pattern.permute.xlu0 0
  %99 = vperm.xlu0 %98, %v28
  %v100 = vpop.permute.xlu0 %99
  %v103 = vlaneseq
  %v104 = vshrl.u32 %v103, 7
  %v105 = vsub.s32 0, %v104
  %v106 = vrot.slane %v29, %v105
  %v108 = vadd.f32 %v65, %v106
  %v109 = vadd.f32 %v70, %v106
  %v110 = vadd.f32 %v75, %v106
  %v111 = vadd.f32 %v80, %v106
  %v112 = vadd.f32 %v85, %v106
  %v113 = vadd.f32 %v90, %v106
  %v114 = vadd.f32 %v95, %v106
  %v115 = vadd.f32 %v100, %v106
  %v116 = vmul.f32 %v108, 0.2
  %v117 = vmul.f32 %v109, 0.2
  %v118 = vmul.f32 %v110, 0.2
  %v119 = vmul.f32 %v111, 0.2
  %v120 = vmul.f32 %v112, 0.2
  %v121 = vmul.f32 %v113, 0.2
  %v122 = vmul.f32 %v114, 0.2
  %v123 = vmul.f32 %v115, 0.2
  %v124 = vmax.f32 %v108, %v116
  %v125 = vmax.f32 %v109, %v117
  %v126 = vmax.f32 %v110, %v118
  %v127 = vmax.f32 %v111, %v119
  %v128 = vmax.f32 %v112, %v120
  %v129 = vmax.f32 %v113, %v121
  %v130 = vmax.f32 %v114, %v122
  %v131 = vmax.f32 %v115, %v123
  %v132 = vsel %vm54, %v124, -1e+30
  %v133 = vsel %vm55, %v125, -1e+30
  %v134 = vsel %vm56, %v126, -1e+30
  %v135 = vsel %vm57, %v127, -1e+30
  %v136 = vsel %vm58, %v128, -1e+30
  %v137 = vsel %vm59, %v129, -1e+30
  %v138 = vsel %vm60, %v130, -1e+30
  %v139 = vsel %vm61, %v131, -1e+30
  %vm140 = vcmask 523264
  %v141 = vsel %vm140, %v132, -inf
  %142 = vmax.xlane.f32.xlu0 %v141
  %v143 = vpop.xlane.xlu0 %142
  %v144 = vsel %vm140, %v133, -inf
  %145 = vmax.xlane.f32.xlu0 %v144
  %v146 = vpop.xlane.xlu0 %145
  %v147 = vsel %vm140, %v134, -inf
  %148 = vmax.xlane.f32.xlu0 %v147
  %v149 = vpop.xlane.xlu0 %148
  %v150 = vsel %vm140, %v135, -inf
  %151 = vmax.xlane.f32.xlu0 %v150
  %v152 = vpop.xlane.xlu0 %151
  %v153 = vsel %vm140, %v136, -inf
  %154 = vmax.xlane.f32.xlu0 %v153
  %v155 = vpop.xlane.xlu0 %154
  %v156 = vsel %vm140, %v137, -inf
  %157 = vmax.xlane.f32.xlu0 %v156
  %v158 = vpop.xlane.xlu0 %157
  %v159 = vsel %vm140, %v138, -inf
  %160 = vmax.xlane.f32.xlu0 %v159
  %v161 = vpop.xlane.xlu0 %160
  %v162 = vsel %vm140, %v139, -inf
  %163 = vmax.xlane.f32.xlu0 %v162
  %v164 = vpop.xlane.xlu0 %163
  %v165 = vsub.f32 %v132, %v143
  %v166 = vsub.f32 %v133, %v146
  %v167 = vsub.f32 %v134, %v149
  %v168 = vsub.f32 %v135, %v152
  %v169 = vsub.f32 %v136, %v155
  %v170 = vsub.f32 %v137, %v158
  %v171 = vsub.f32 %v138, %v161
  %v172 = vsub.f32 %v139, %v164
  %v173 = vmul.f32 %v165, 1.442695
  %v174 = vpow.pop %v173
  %v175 = vmul.f32 %v166, 1.442695
  %v176 = vpow.pop %v175
  %v177 = vmul.f32 %v167, 1.442695
  %v178 = vpow.pop %v177
  %v179 = vmul.f32 %v168, 1.442695
  %v180 = vpow.pop %v179
  %v181 = vmul.f32 %v169, 1.442695
  %v182 = vpow.pop %v181
  %v183 = vmul.f32 %v170, 1.442695
  %v184 = vpow.pop %v183
  %v185 = vmul.f32 %v171, 1.442695
  %v186 = vpow.pop %v185
  %v187 = vmul.f32 %v172, 1.442695
  %v188 = vpow.pop %v187
  %v189 = vmul.f32 %v174, %v46
  %v190 = vmul.f32 %v176, %v47
  %v191 = vmul.f32 %v178, %v48
  %v192 = vmul.f32 %v180, %v49
  %v193 = vmul.f32 %v182, %v50
  %v194 = vmul.f32 %v184, %v51
  %v195 = vmul.f32 %v186, %v52
  %v196 = vmul.f32 %v188, %v53
  %v197 = vsel %vm140, %v189, 0.0
  %198 = vadd.xlane.f32.xlu0 %v197
  %v199 = vpop.xlane.xlu0 %198
  %v200 = vsel %vm140, %v190, 0.0
  %201 = vadd.xlane.f32.xlu0 %v200
  %v202 = vpop.xlane.xlu0 %201
  %v203 = vsel %vm140, %v191, 0.0
  %204 = vadd.xlane.f32.xlu0 %v203
  %v205 = vpop.xlane.xlu0 %204
  %v206 = vsel %vm140, %v192, 0.0
  %207 = vadd.xlane.f32.xlu0 %v206
  %v208 = vpop.xlane.xlu0 %207
  %v209 = vsel %vm140, %v193, 0.0
  %210 = vadd.xlane.f32.xlu0 %v209
  %v211 = vpop.xlane.xlu0 %210
  %v212 = vsel %vm140, %v194, 0.0
  %213 = vadd.xlane.f32.xlu0 %v212
  %v214 = vpop.xlane.xlu0 %213
  %v215 = vsel %vm140, %v195, 0.0
  %216 = vadd.xlane.f32.xlu0 %v215
  %v217 = vpop.xlane.xlu0 %216
  %v218 = vsel %vm140, %v196, 0.0
  %219 = vadd.xlane.f32.xlu0 %v218
  %v220 = vpop.xlane.xlu0 %219
  %v221 = vmax.f32 %v199, 1e-30
  %v222 = vmax.f32 %v202, 1e-30
  %v223 = vmax.f32 %v205, 1e-30
  %v224 = vmax.f32 %v208, 1e-30
  %v225 = vmax.f32 %v211, 1e-30
  %v226 = vmax.f32 %v214, 1e-30
  %v227 = vmax.f32 %v217, 1e-30
  %v228 = vmax.f32 %v220, 1e-30
  %v229 = vrcp.pop %v221
  %v230 = vrcp.pop %v222
  %v231 = vrcp.pop %v223
  %v232 = vrcp.pop %v224
  %v233 = vrcp.pop %v225
  %v234 = vrcp.pop %v226
  %v235 = vrcp.pop %v227
  %v236 = vrcp.pop %v228
  %v237 = vmul.f32 %v189, %v229
  %v238 = vmul.f32 %v190, %v230
  %v239 = vmul.f32 %v191, %v231
  %v240 = vmul.f32 %v192, %v232
  %v241 = vmul.f32 %v193, %v233
  %v242 = vmul.f32 %v194, %v234
  %v243 = vmul.f32 %v195, %v235
  %v244 = vmul.f32 %v196, %v236
  %v245 = vpack.c.bf16 %v238, %v237
  %v246 = vpack.c.bf16 %v240, %v239
  %v247 = vpack.c.bf16 %v242, %v241
  %v248 = vpack.c.bf16 %v244, %v243
  %v249 = vld [vmem:[%s4] sm:$0x1]
  %v251 = vlaneseq
  %v252 = vshrl.u32 %v251, 7
  %v253 = vsub.s32 0, %v252
  %v254 = vrot.slane %v249, %v253
  %v264 = vunpack.c.l.b16 %v30
  %v265 = vunpack.c.l.b16 %v31
  %v266 = vunpack.c.l.b16 %v32
  %v267 = vunpack.c.l.b16 %v33
  %v268 = vunpack.c.l.b16 %v34
  %v269 = vunpack.c.l.b16 %v35
  %v270 = vunpack.c.l.b16 %v36
  %v271 = vunpack.c.l.b16 %v37
  %v272 = vpack.c.b16 %v265, %v264
  %v273 = vpack.c.b16 %v267, %v266
  %v274 = vpack.c.b16 %v269, %v268
  %v275 = vpack.c.b16 %v271, %v270
  %v281 = vsel %vm140, %v245, 0
  %v284 = vsel %vm140, %v246, 0
  %v287 = vsel %vm140, %v247, 0
  %v290 = vsel %vm140, %v248, 0
  %292 = vmatprep.subr.bf16.mxu0 0
  %293 = vmatpush1.bf16.msra.mxu0 0
  %294 = vmatprep.subr.bf16.mxu0 0
  %295 = vmatpush1.bf16.msra.mxu0 0
  %296 = vmatprep.subr.bf16.mxu0 0
  %297 = vmatpush1.bf16.msra.mxu0 0
  %298 = vmatprep.subr.bf16.mxu0 0
  %299 = vmatpush1.bf16.msra.mxu0 0
  %300 = vmatprep.subr.bf16.mxu0 0
  %301 = vmatpush1.bf16.msra.mxu0 %v275
  %302 = vmatprep.subr.bf16.mxu0 0
  %303 = vmatpush1.bf16.msra.mxu0 %v274
  %304 = vmatprep.subr.bf16.mxu0 0
  %305 = vmatpush1.bf16.msra.mxu0 %v273
  %306 = vmatprep.subr.bf16.mxu0 0
  %307 = vmatpush1.bf16.msra.mxu0 %v272
  %308 = vmatprep.subr.bf16.mxu0 0
  %309 = vmatpush2.bf16.msra.mxu0 0
  %310 = vmatprep.subr.bf16.mxu0 0
  %311 = vmatpush2.bf16.msra.mxu0 0
  %312 = vmatprep.subr.bf16.mxu0 0
  %313 = vmatpush2.bf16.msra.mxu0 0
  %314 = vmatprep.subr.bf16.mxu0 0
  %315 = vmatpush2.bf16.msra.mxu0 0
  %316 = vmatprep.subr.bf16.mxu0 0
  %317 = vmatpush2.bf16.msra.mxu0 0
  %318 = vmatprep.subr.bf16.mxu0 0
  %319 = vmatpush2.bf16.msra.mxu0 0
  %320 = vmatprep.subr.bf16.mxu0 0
  %321 = vmatpush2.bf16.msra.mxu0 0
  %322 = vmatprep.subr.bf16.mxu0 0
  %323 = vmatpush2.bf16.msra.mxu0 0
  %324 = vmatprep.mubr.bf16.mxu0 0
  %325 = vmatmul.mubr.bf16.gmra.mxu0 %v281
  %v326 = vpop.f32.mrf.mxu0
  %v327 = vadd.f32 %v254, %v326
  %v328 = vpop.f32.mrf.mxu0
  %v329 = vpop.f32.mrf.mxu0
  %v330 = vadd.f32 %v254, %v329
  %v331 = vpop.f32.mrf.mxu0
  %332 = vmatprep.mubr.bf16.mxu0 0
  %333 = vmatmul.mubr.bf16.gmra.mxu0 %v284
  %v334 = vpop.f32.mrf.mxu0
  %v335 = vadd.f32 %v254, %v334
  %v336 = vpop.f32.mrf.mxu0
  %v337 = vpop.f32.mrf.mxu0
  %v338 = vadd.f32 %v254, %v337
  %v339 = vpop.f32.mrf.mxu0
  %340 = vmatprep.mubr.bf16.mxu0 0
  %341 = vmatmul.mubr.bf16.gmra.mxu0 %v287
  %v342 = vpop.f32.mrf.mxu0
  %v343 = vadd.f32 %v254, %v342
  %v344 = vpop.f32.mrf.mxu0
  %v345 = vpop.f32.mrf.mxu0
  %v346 = vadd.f32 %v254, %v345
  %v347 = vpop.f32.mrf.mxu0
  %348 = vmatprep.mubr.bf16.mxu0 0
  %349 = vmatmul.mubr.bf16.gmra.mxu0 %v290
  %v350 = vpop.f32.mrf.mxu0
  %v351 = vadd.f32 %v254, %v350
  %v352 = vpop.f32.mrf.mxu0
  %v353 = vpop.f32.mrf.mxu0
  %v354 = vadd.f32 %v254, %v353
  %v355 = vpop.f32.mrf.mxu0
  %356 = vdwg.mxu0
  %vm357 = vcmask 261120
  %358 = vst.msk [vmem:[%s5] sm:$0xff] %vm357, %v327
  %359 = vst.msk [vmem:[%s5 + $0x8] sm:$0xff] %vm357, %v330
  %360 = vst.msk [vmem:[%s5 + $0x10] sm:$0xff] %vm357, %v335
  %361 = vst.msk [vmem:[%s5 + $0x18] sm:$0xff] %vm357, %v338
  %362 = vst.msk [vmem:[%s5 + $0x20] sm:$0xff] %vm357, %v343
  %363 = vst.msk [vmem:[%s5 + $0x28] sm:$0xff] %vm357, %v346
  %364 = vst.msk [vmem:[%s5 + $0x30] sm:$0xff] %vm357, %v351
  %365 = vst.msk [vmem:[%s5 + $0x38] sm:$0xff] %vm357, %v354
  // Predicated region
  $region22: #{model_forward.7} parent=0 // pred_check
    _
  $region23: #{model_forward.7} parent=0 // pred_check_branch
    %367 = sbr.rel (0) target = $region25
  $region24: #{model_forward.7} parent=0 // pred_region
    _
  $region25: #{model_forward.7} parent=0 // pred_fallthru
    _
  // Predicated region
  $region26: #{model_forward.7} parent=0 // pred_check
    _
  $region27: #{model_forward.7} parent=0 // pred_check_branch
    %369 = sbr.rel (0) target = $region29
  $region28: #{model_forward.7} parent=0 // pred_region
    _
  $region29: #{model_forward.7} parent=0 // pred_fallthru
    _

</llo_original>
